<compile_context>
chip_gen: v7x
topology: tpu7x:2x2x1
jax: 0.10.0
libtpu: 0.0.40
codegen_flags: <defaults>
</compile_context>

<pallas_src>
import jax
import jax.numpy as jnp
import numpy as np
from jax import lax
from jax.experimental import pallas as pl
from jax.experimental.pallas import tpu as pltpu

C = 64            # channels fixed by the module (Conv2d(64, 64, ...))
RED = 16
CH = C // RED     # SE hidden = 4
NTAP = 9
KPAD = 640        # im2col depth 9*64 = 576, zero-padded to 5 full 128-lane tiles
EPS = 1e-5        # InstanceNorm2d default eps
_T_DIMS = (((0,), (0,)), ((), ()))   # contract dim 0 of both operands (lhs-transposed dot)


def _shift2d(src, oh, ow):
    """out[h, w, :] = src[h + oh, w + ow, :], zero where out of range (static shifts)."""
    H, W = src.shape[0], src.shape[1]
    out = src
    if oh > 0:
        out = jnp.concatenate(
            [out[oh:], jnp.zeros((oh,) + out.shape[1:], out.dtype)], axis=0)
    elif oh < 0:
        out = jnp.concatenate(
            [jnp.zeros((-oh,) + out.shape[1:], out.dtype), out[:H + oh]], axis=0)
    if ow > 0:
        out = jnp.concatenate(
            [out[:, ow:], jnp.zeros(out.shape[:1] + (ow,) + out.shape[2:], out.dtype)], axis=1)
    elif ow < 0:
        out = jnp.concatenate(
            [jnp.zeros(out.shape[:1] + (-ow,) + out.shape[2:], out.dtype), out[:, :W + ow]], axis=1)
    return out


def _residual_block_kernel(x_ref, w1_ref, w2_ref, fc1_ref, fc2_ref, eye_ref,
                           out_ref, col_ref):
    # x_ref:   (1, C, H*W)  f32, NCHW lane-dense (pixels in lanes)
    # w*_ref:  (KPAD, C)    bf16 im2col weights, row = (kh*3+kw)*64 + ci, rows >=576 zero
    # fc1_ref: (C, 128)     SE fc1 zero-padded to 128 lanes (exact math)
    # fc2_ref: (128, C)     SE fc2 zero-padded on the contraction dim
    # eye_ref: (H*W, H*W)   f32 identity (MXU-based layout changes)
    # out_ref: (1, C, H*W)  f32, NCHW lane-dense output slab
    # col_ref: VMEM (H, W, KPAD) bf16 shared im2col scratch (reused by both convs)
    H, W = col_ref.shape[0], col_ref.shape[1]
    HW = H * W
    inv_n = 1.0 / HW

    # x (C, HW) -> (HW, C) on the MXU: dot_general contracting dim 0 of both operands
    # against the (C, C) corner of the identity.  The f32 value is consumed here; the
    # residual re-reads x_ref at the very end (short identity live range).
    eye_c = eye_ref[0:C, 0:C]
    x_hwc = lax.dot_general(x_ref[0], eye_c, _T_DIMS,
                            preferred_element_type=jnp.float32)      # (HW, C)
    src1 = x_hwc.reshape(H, W, C).astype(jnp.bfloat16)

    def fill_patches(src):
        # Nine dilated taps (dilation=2, padding=2 -> offsets -2/0/+2) written as five
        # dense, 128-lane-aligned (H, W, 128) pair slabs.  The shifted values carry the
        # "same"-conv zero borders, so no frame zeroing and no masked 64-lane stores.
        for p in range(5):
            t_a, t_b = 2 * p, 2 * p + 1
            val_a = _shift2d(src, 2 * (t_a // 3) - 2, 2 * (t_a % 3) - 2)
            if t_b < NTAP:
                val_b = _shift2d(src, 2 * (t_b // 3) - 2, 2 * (t_b % 3) - 2)
            else:
                val_b = jnp.zeros_like(val_a)       # K-padding lanes (zero weight rows)
            col_ref[:, :, p * 128:(p + 1) * 128] = jnp.concatenate([val_a, val_b], axis=-1)

    def conv(w_ref):
        # Single deep matmul: (HW, 640) x (640, 64), bf16 operands, f32 accumulation.
        patches = col_ref[...].reshape(HW, KPAD)    # free reshape (leading dims only)
        return jnp.dot(patches, w_ref[...], preferred_element_type=jnp.float32)

    def instance_norm(z):                           # (HW, C); one-pass fused stats
        s1 = jnp.sum(z, axis=0, keepdims=True)
        s2 = jnp.sum(z * z, axis=0, keepdims=True)
        mu = s1 * inv_n
        var = s2 * inv_n - mu * mu
        return (z - mu) * lax.rsqrt(var + EPS)

    # conv1 -> IN -> ReLU
    fill_patches(src1)
    h1 = jnp.maximum(instance_norm(conv(w1_ref)), 0.0)               # (HW, C) f32

    # conv2 -> IN  (h1 is already (HW, C): no transpose needed for the second fill)
    fill_patches(h1.reshape(H, W, C).astype(jnp.bfloat16))
    h2 = instance_norm(conv(w2_ref))                                  # (HW, C) f32

    # SE: global average pool -> fc1 -> ReLU -> fc2 -> sigmoid -> channel scale
    pooled = jnp.mean(h2, axis=0, keepdims=True)                      # (1, C)
    hid = jnp.maximum(jnp.dot(pooled, fc1_ref[...],
                              preferred_element_type=jnp.float32), 0.0)      # (1, 128)
    scale = jax.nn.sigmoid(jnp.dot(hid, fc2_ref[...],
                                   preferred_element_type=jnp.float32))      # (1, C)
    h2s = h2 * scale                                                  # (HW, C)

    # Back to NCHW (C, HW) on the MXU, add the identity (read late, native layout),
    # and store one dense lane-major slab.
    out_chw = lax.dot_general(h2s, eye_ref[...], _T_DIMS,
                              preferred_element_type=jnp.float32)     # (C, HW)
    out_ref[0] = (out_chw + x_ref[0]).astype(out_ref.dtype)


def residual_block(x_nchw, w1, w2, fc1, fc2):
    """x_nchw: (B, 64, H, W); w1/w2: (64, 64, 3, 3); fc1: (64, 4); fc2: (4, 64)."""
    B, Cc, H, W = x_nchw.shape
    assert Cc == C and H > 2 and W > 2 and H * W >= C

    # NCHW lane-dense view: pure reshape, no XLA transpose / extra HBM round trip.
    x_cl = x_nchw.reshape(B, C, H * W)

    # conv weights (Cout, Cin, kh, kw) -> im2col matrix ((kh*3+kw)*64 + ci, Cout),
    # zero-padded to KPAD rows so the im2col buffer is exactly five 128-lane tiles.
    def conv_w(w):
        m = jnp.transpose(w, (2, 3, 1, 0)).reshape(NTAP * C, C)
        m = jnp.concatenate([m, jnp.zeros((KPAD - NTAP * C, C), m.dtype)], axis=0)
        return m.astype(jnp.bfloat16)

    w1_m, w2_m = conv_w(w1), conv_w(w2)

    # Pad SE weights so the tiny hidden dim (4) becomes lane-friendly 128; zero padding
    # keeps the math exact (ReLU(0)=0, zero fc2 rows contribute nothing).
    fc1_p = jnp.zeros((C, 128), jnp.float32).at[:, :CH].set(fc1)
    fc2_p = jnp.zeros((128, C), jnp.float32).at[:CH, :].set(fc2)

    eye = jnp.eye(H * W, dtype=jnp.float32)      # MXU transpose helper (grid-invariant)

    out_cl = pl.pallas_call(
        _residual_block_kernel,
        out_shape=jax.ShapeDtypeStruct((B, C, H * W), x_nchw.dtype),
        grid_spec=pltpu.PrefetchScalarGridSpec(
            num_scalar_prefetch=0,
            grid=(B,),
            in_specs=[
                pl.BlockSpec((1, C, H * W), lambda b: (b, 0, 0)),
                pl.BlockSpec((KPAD, C), lambda b: (0, 0)),
                pl.BlockSpec((KPAD, C), lambda b: (0, 0)),
                pl.BlockSpec((C, 128), lambda b: (0, 0)),
                pl.BlockSpec((128, C), lambda b: (0, 0)),
                pl.BlockSpec((H * W, H * W), lambda b: (0, 0)),
            ],
            out_specs=pl.BlockSpec((1, C, H * W), lambda b: (b, 0, 0)),
            scratch_shapes=[pltpu.VMEM((H, W, KPAD), jnp.bfloat16)],
        ),
        compiler_params=pltpu.CompilerParams(
            dimension_semantics=("parallel",),      # batch independent -> both TCs on v7x
            vmem_limit_bytes=32 * 1024 * 1024,
        ),
    )(x_cl, w1_m, w2_m, fc1_p, fc2_p, eye)

    # Pure reshape back to NCHW; no transpose anywhere in the wrapper.
    return out_cl.reshape(B, C, H, W)


def ref_forward(x, w1, w2, fc1, fc2):
    """Pure-JAX f32 reference mirroring the PyTorch forward (NCHW)."""
    def conv(z, w):
        return lax.conv_general_dilated(
            z, w, window_strides=(1, 1), padding=((2, 2), (2, 2)),
            rhs_dilation=(2, 2), dimension_numbers=("NCHW", "OIHW", "NCHW"))

    def inorm(z):
        mu = jnp.mean(z, axis=(2, 3), keepdims=True)
        var = jnp.mean((z - mu) ** 2, axis=(2, 3), keepdims=True)
        return (z - mu) / jnp.sqrt(var + EPS)

    out = jax.nn.relu(inorm(conv(x, w1)))
    out = inorm(conv(out, w2))
    pooled = jnp.mean(out, axis=(2, 3))                              # (B, C)
    h = jax.nn.relu(pooled @ fc1)                                    # (B, 4)
    s = jax.nn.sigmoid(h @ fc2)                                      # (B, C)
    out = out * s[:, :, None, None]
    return out + x


if __name__ == "__main__":
    key = jax.random.PRNGKey(0)
    k1, k2, k3, k4, kx = jax.random.split(key, 5)

    B, H, W = 2, 16, 16
    x = jax.random.normal(kx, (B, C, H, W), jnp.float32)
    # deterministic synthetic parameters (shapes per the module's __init__; all bias-free)
    w1 = jax.random.normal(k1, (C, C, 3, 3), jnp.float32) * 0.05
    w2 = jax.random.normal(k2, (C, C, 3, 3), jnp.float32) * 0.05
    fc1 = jax.random.normal(k3, (C, CH), jnp.float32) * 0.2         # Linear(64->4), bias=False
    fc2 = jax.random.normal(k4, (CH, C), jnp.float32) * 0.2         # Linear(4->64), bias=False

    out = jax.block_until_ready(residual_block(x, w1, w2, fc1, fc2))
    ref = ref_forward(x, w1, w2, fc1, fc2)
    np.testing.assert_allclose(np.asarray(out), np.asarray(ref), atol=5e-2, rtol=5e-2)
    print("KERNEL_OK")
</pallas_src>

<mosaic_0001>
module attributes {stable_mosaic.version = 11 : i64} {
  func.func @_residual_block_kernel(%arg0: i32, %arg1: memref<1x64x256xf32, #tpu.memory_space<vmem>>, %arg2: memref<640x64xbf16, #tpu.memory_space<vmem>>, %arg3: memref<640x64xbf16, #tpu.memory_space<vmem>>, %arg4: memref<64x128xf32, #tpu.memory_space<vmem>>, %arg5: memref<128x64xf32, #tpu.memory_space<vmem>>, %arg6: memref<256x256xf32, #tpu.memory_space<vmem>>, %arg7: memref<1x64x256xf32, #tpu.memory_space<vmem>>, %arg8: memref<16x16x640xbf16, #tpu.memory_space<vmem>>) attributes {dimension_semantics = [#tpu.dimension_semantics<parallel>], iteration_bounds = array<i64: 2>, scalar_prefetch = 0 : i64, scratch_operands = 1 : i64, tpu.core_type = #tpu.core_type<tc>, window_params = [{transform_indices = @transform_0, window_bounds = array<i64: 1, 64, 256>}, {pipeline_mode = #tpu.pipeline_mode<synchronous>, transform_indices = @transform_1, window_bounds = array<i64: 640, 64>}, {pipeline_mode = #tpu.pipeline_mode<synchronous>, transform_indices = @transform_2, window_bounds = array<i64: 640, 64>}, {pipeline_mode = #tpu.pipeline_mode<synchronous>, transform_indices = @transform_3, window_bounds = array<i64: 64, 128>}, {pipeline_mode = #tpu.pipeline_mode<synchronous>, transform_indices = @transform_4, window_bounds = array<i64: 128, 64>}, {pipeline_mode = #tpu.pipeline_mode<synchronous>, transform_indices = @transform_5, window_bounds = array<i64: 256, 256>}, {transform_indices = @transform_6, window_bounds = array<i64: 1, 64, 256>}]} {
    %c0 = arith.constant 0 : index
    %c0_0 = arith.constant 0 : index
    %0 = vector.load %arg6[%c0, %c0_0] : memref<256x256xf32, #tpu.memory_space<vmem>>, vector<64x64xf32>
    %c0_1 = arith.constant 0 : index
    %c0_2 = arith.constant 0 : index
    %c0_3 = arith.constant 0 : index
    %1 = vector.load %arg1[%c0_1, %c0_2, %c0_3] : memref<1x64x256xf32, #tpu.memory_space<vmem>>, vector<1x64x256xf32>
    %2 = vector.shape_cast %1 : vector<1x64x256xf32> to vector<64x256xf32>
    %cst = arith.constant dense<0.000000e+00> : vector<256x64xf32>
    %3 = tpu.matmul %2, %0, %cst {dimension_numbers = #tpu.dot_dimension_numbers<[0], [0], [1], [1], [0, 1, 1, 1], [], []>} : vector<64x256xf32>, vector<64x64xf32>, vector<256x64xf32> -> vector<256x64xf32>
    %4 = vector.shape_cast %3 : vector<256x64xf32> to vector<16x16x64xf32>
    %5 = arith.truncf %4 : vector<16x16x64xf32> to vector<16x16x64xbf16>
    %cst_4 = arith.constant 0.000000e+00 : bf16
    %6 = vector.broadcast %cst_4 : bf16 to vector<2x16x64xbf16>
    %7 = vector.extract_strided_slice %5 {offsets = [0, 0, 0], sizes = [14, 16, 64], strides = [1, 1, 1]} : vector<16x16x64xbf16> to vector<14x16x64xbf16>
    %8 = tpu.concatenate %6, %7 in 0 : vector<2x16x64xbf16>, vector<14x16x64xbf16> -> vector<16x16x64xbf16>
    %cst_5 = arith.constant 0.000000e+00 : bf16
    %9 = vector.broadcast %cst_5 : bf16 to vector<16x2x64xbf16>
    %10 = vector.extract_strided_slice %8 {offsets = [0, 0, 0], sizes = [16, 14, 64], strides = [1, 1, 1]} : vector<16x16x64xbf16> to vector<16x14x64xbf16>
    %11 = tpu.concatenate %9, %10 in 1 : vector<16x2x64xbf16>, vector<16x14x64xbf16> -> vector<16x16x64xbf16>
    %cst_6 = arith.constant 0.000000e+00 : bf16
    %12 = vector.broadcast %cst_6 : bf16 to vector<2x16x64xbf16>
    %13 = vector.extract_strided_slice %5 {offsets = [0, 0, 0], sizes = [14, 16, 64], strides = [1, 1, 1]} : vector<16x16x64xbf16> to vector<14x16x64xbf16>
    %14 = tpu.concatenate %12, %13 in 0 : vector<2x16x64xbf16>, vector<14x16x64xbf16> -> vector<16x16x64xbf16>
    %15 = tpu.concatenate %11, %14 in 2 : vector<16x16x64xbf16>, vector<16x16x64xbf16> -> vector<16x16x128xbf16>
    %c0_7 = arith.constant 0 : index
    %c0_8 = arith.constant 0 : index
    %c0_9 = arith.constant 0 : index
    %16 = vector.load %arg8[%c0_7, %c0_8, %c0_9] : memref<16x16x640xbf16, #tpu.memory_space<vmem>>, vector<16x16x128xbf16>
    tpu.vector_store %arg8[%c0_7, %c0_8, %c0_9], %15 {strides = array<i32>} : memref<16x16x640xbf16, #tpu.memory_space<vmem>>, vector<16x16x128xbf16>,
    %cst_10 = arith.constant 0.000000e+00 : bf16
    %17 = vector.broadcast %cst_10 : bf16 to vector<2x16x64xbf16>
    %18 = vector.extract_strided_slice %5 {offsets = [0, 0, 0], sizes = [14, 16, 64], strides = [1, 1, 1]} : vector<16x16x64xbf16> to vector<14x16x64xbf16>
    %19 = tpu.concatenate %17, %18 in 0 : vector<2x16x64xbf16>, vector<14x16x64xbf16> -> vector<16x16x64xbf16>
    %20 = vector.extract_strided_slice %19 {offsets = [0, 2, 0], sizes = [16, 14, 64], strides = [1, 1, 1]} : vector<16x16x64xbf16> to vector<16x14x64xbf16>
    %cst_11 = arith.constant 0.000000e+00 : bf16
    %21 = vector.broadcast %cst_11 : bf16 to vector<16x2x64xbf16>
    %22 = tpu.concatenate %20, %21 in 1 : vector<16x14x64xbf16>, vector<16x2x64xbf16> -> vector<16x16x64xbf16>
    %cst_12 = arith.constant 0.000000e+00 : bf16
    %23 = vector.broadcast %cst_12 : bf16 to vector<16x2x64xbf16>
    %24 = vector.extract_strided_slice %5 {offsets = [0, 0, 0], sizes = [16, 14, 64], strides = [1, 1, 1]} : vector<16x16x64xbf16> to vector<16x14x64xbf16>
    %25 = tpu.concatenate %23, %24 in 1 : vector<16x2x64xbf16>, vector<16x14x64xbf16> -> vector<16x16x64xbf16>
    %26 = tpu.concatenate %22, %25 in 2 : vector<16x16x64xbf16>, vector<16x16x64xbf16> -> vector<16x16x128xbf16>
    %c0_13 = arith.constant 0 : index
    %c0_14 = arith.constant 0 : index
    %c128 = arith.constant 128 : index
    %27 = vector.load %arg8[%c0_13, %c0_14, %c128] : memref<16x16x640xbf16, #tpu.memory_space<vmem>>, vector<16x16x128xbf16>
    tpu.vector_store %arg8[%c0_13, %c0_14, %c128], %26 {strides = array<i32>} : memref<16x16x640xbf16, #tpu.memory_space<vmem>>, vector<16x16x128xbf16>,
    %28 = vector.extract_strided_slice %5 {offsets = [0, 2, 0], sizes = [16, 14, 64], strides = [1, 1, 1]} : vector<16x16x64xbf16> to vector<16x14x64xbf16>
    %cst_15 = arith.constant 0.000000e+00 : bf16
    %29 = vector.broadcast %cst_15 : bf16 to vector<16x2x64xbf16>
    %30 = tpu.concatenate %28, %29 in 1 : vector<16x14x64xbf16>, vector<16x2x64xbf16> -> vector<16x16x64xbf16>
    %31 = tpu.concatenate %5, %30 in 2 : vector<16x16x64xbf16>, vector<16x16x64xbf16> -> vector<16x16x128xbf16>
    %c0_16 = arith.constant 0 : index
    %c0_17 = arith.constant 0 : index
    %c256 = arith.constant 256 : index
    %32 = vector.load %arg8[%c0_16, %c0_17, %c256] : memref<16x16x640xbf16, #tpu.memory_space<vmem>>, vector<16x16x128xbf16>
    tpu.vector_store %arg8[%c0_16, %c0_17, %c256], %31 {strides = array<i32>} : memref<16x16x640xbf16, #tpu.memory_space<vmem>>, vector<16x16x128xbf16>,
    %33 = vector.extract_strided_slice %5 {offsets = [2, 0, 0], sizes = [14, 16, 64], strides = [1, 1, 1]} : vector<16x16x64xbf16> to vector<14x16x64xbf16>
    %cst_18 = arith.constant 0.000000e+00 : bf16
    %34 = vector.broadcast %cst_18 : bf16 to vector<2x16x64xbf16>
    %35 = tpu.concatenate %33, %34 in 0 : vector<14x16x64xbf16>, vector<2x16x64xbf16> -> vector<16x16x64xbf16>
    %cst_19 = arith.constant 0.000000e+00 : bf16
    %36 = vector.broadcast %cst_19 : bf16 to vector<16x2x64xbf16>
    %37 = vector.extract_strided_slice %35 {offsets = [0, 0, 0], sizes = [16, 14, 64], strides = [1, 1, 1]} : vector<16x16x64xbf16> to vector<16x14x64xbf16>
    %38 = tpu.concatenate %36, %37 in 1 : vector<16x2x64xbf16>, vector<16x14x64xbf16> -> vector<16x16x64xbf16>
    %39 = vector.extract_strided_slice %5 {offsets = [2, 0, 0], sizes = [14, 16, 64], strides = [1, 1, 1]} : vector<16x16x64xbf16> to vector<14x16x64xbf16>
    %cst_20 = arith.constant 0.000000e+00 : bf16
    %40 = vector.broadcast %cst_20 : bf16 to vector<2x16x64xbf16>
    %41 = tpu.concatenate %39, %40 in 0 : vector<14x16x64xbf16>, vector<2x16x64xbf16> -> vector<16x16x64xbf16>
    %42 = tpu.concatenate %38, %41 in 2 : vector<16x16x64xbf16>, vector<16x16x64xbf16> -> vector<16x16x128xbf16>
    %c0_21 = arith.constant 0 : index
    %c0_22 = arith.constant 0 : index
    %c384 = arith.constant 384 : index
    %43 = vector.load %arg8[%c0_21, %c0_22, %c384] : memref<16x16x640xbf16, #tpu.memory_space<vmem>>, vector<16x16x128xbf16>
    tpu.vector_store %arg8[%c0_21, %c0_22, %c384], %42 {strides = array<i32>} : memref<16x16x640xbf16, #tpu.memory_space<vmem>>, vector<16x16x128xbf16>,
    %44 = vector.extract_strided_slice %5 {offsets = [2, 0, 0], sizes = [14, 16, 64], strides = [1, 1, 1]} : vector<16x16x64xbf16> to vector<14x16x64xbf16>
    %cst_23 = arith.constant 0.000000e+00 : bf16
    %45 = vector.broadcast %cst_23 : bf16 to vector<2x16x64xbf16>
    %46 = tpu.concatenate %44, %45 in 0 : vector<14x16x64xbf16>, vector<2x16x64xbf16> -> vector<16x16x64xbf16>
    %47 = vector.extract_strided_slice %46 {offsets = [0, 2, 0], sizes = [16, 14, 64], strides = [1, 1, 1]} : vector<16x16x64xbf16> to vector<16x14x64xbf16>
    %cst_24 = arith.constant 0.000000e+00 : bf16
    %48 = vector.broadcast %cst_24 : bf16 to vector<16x2x64xbf16>
    %49 = tpu.concatenate %47, %48 in 1 : vector<16x14x64xbf16>, vector<16x2x64xbf16> -> vector<16x16x64xbf16>
    %cst_25 = arith.constant 0.000000e+00 : bf16
    %50 = vector.broadcast %cst_25 : bf16 to vector<16x16x64xbf16>
    %51 = tpu.concatenate %49, %50 in 2 : vector<16x16x64xbf16>, vector<16x16x64xbf16> -> vector<16x16x128xbf16>
    %c0_26 = arith.constant 0 : index
    %c0_27 = arith.constant 0 : index
    %c512 = arith.constant 512 : index
    %52 = vector.load %arg8[%c0_26, %c0_27, %c512] : memref<16x16x640xbf16, #tpu.memory_space<vmem>>, vector<16x16x128xbf16>
    tpu.vector_store %arg8[%c0_26, %c0_27, %c512], %51 {strides = array<i32>} : memref<16x16x640xbf16, #tpu.memory_space<vmem>>, vector<16x16x128xbf16>,
    %c0_28 = arith.constant 0 : index
    %c0_29 = arith.constant 0 : index
    %c0_30 = arith.constant 0 : index
    %53 = vector.load %arg8[%c0_28, %c0_29, %c0_30] : memref<16x16x640xbf16, #tpu.memory_space<vmem>>, vector<16x16x640xbf16>
    %54 = vector.shape_cast %53 : vector<16x16x640xbf16> to vector<256x640xbf16>
    %c0_31 = arith.constant 0 : index
    %c0_32 = arith.constant 0 : index
    %55 = vector.load %arg2[%c0_31, %c0_32] : memref<640x64xbf16, #tpu.memory_space<vmem>>, vector<640x64xbf16>
    %cst_33 = arith.constant dense<0.000000e+00> : vector<256x64xf32>
    %56 = tpu.matmul %54, %55, %cst_33 {dimension_numbers = #tpu.dot_dimension_numbers<[1], [0], [0], [1], [0, 0, 1, 1], [], []>} : vector<256x640xbf16>, vector<640x64xbf16>, vector<256x64xf32> -> vector<256x64xf32>
    %cst_34 = arith.constant dense<0.000000e+00> : vector<64xf32>
    %57 = vector.multi_reduction <add>, %56, %cst_34 [0] : vector<256x64xf32> to vector<64xf32>
    %58 = vector.shape_cast %57 : vector<64xf32> to vector<1x64xf32>
    %59 = arith.mulf %56, %56 : vector<256x64xf32>
    %cst_35 = arith.constant dense<0.000000e+00> : vector<64xf32>
    %60 = vector.multi_reduction <add>, %59, %cst_35 [0] : vector<256x64xf32> to vector<64xf32>
    %61 = vector.shape_cast %60 : vector<64xf32> to vector<1x64xf32>
    %cst_36 = arith.constant 3.906250e-03 : f32
    %62 = vector.broadcast %cst_36 : f32 to vector<1x64xf32>
    %63 = arith.mulf %58, %62 : vector<1x64xf32>
    %cst_37 = arith.constant 3.906250e-03 : f32
    %64 = vector.broadcast %cst_37 : f32 to vector<1x64xf32>
    %65 = arith.mulf %61, %64 : vector<1x64xf32>
    %66 = arith.mulf %63, %63 : vector<1x64xf32>
    %67 = arith.subf %65, %66 : vector<1x64xf32>
    %68 = vector.broadcast %63 : vector<1x64xf32> to vector<256x64xf32>
    %69 = arith.subf %56, %68 : vector<256x64xf32>
    %cst_38 = arith.constant 9.99999974E-6 : f32
    %70 = vector.broadcast %cst_38 : f32 to vector<1x64xf32>
    %71 = arith.addf %67, %70 : vector<1x64xf32>
    %72 = math.rsqrt %71 : vector<1x64xf32>
    %73 = vector.broadcast %72 : vector<1x64xf32> to vector<256x64xf32>
    %74 = arith.mulf %69, %73 : vector<256x64xf32>
    %cst_39 = arith.constant 0.000000e+00 : f32
    %75 = vector.broadcast %cst_39 : f32 to vector<256x64xf32>
    %76 = arith.maximumf %74, %75 : vector<256x64xf32>
    %77 = vector.shape_cast %76 : vector<256x64xf32> to vector<16x16x64xf32>
    %78 = arith.truncf %77 : vector<16x16x64xf32> to vector<16x16x64xbf16>
    %cst_40 = arith.constant 0.000000e+00 : bf16
    %79 = vector.broadcast %cst_40 : bf16 to vector<2x16x64xbf16>
    %80 = vector.extract_strided_slice %78 {offsets = [0, 0, 0], sizes = [14, 16, 64], strides = [1, 1, 1]} : vector<16x16x64xbf16> to vector<14x16x64xbf16>
    %81 = tpu.concatenate %79, %80 in 0 : vector<2x16x64xbf16>, vector<14x16x64xbf16> -> vector<16x16x64xbf16>
    %cst_41 = arith.constant 0.000000e+00 : bf16
    %82 = vector.broadcast %cst_41 : bf16 to vector<16x2x64xbf16>
    %83 = vector.extract_strided_slice %81 {offsets = [0, 0, 0], sizes = [16, 14, 64], strides = [1, 1, 1]} : vector<16x16x64xbf16> to vector<16x14x64xbf16>
    %84 = tpu.concatenate %82, %83 in 1 : vector<16x2x64xbf16>, vector<16x14x64xbf16> -> vector<16x16x64xbf16>
    %cst_42 = arith.constant 0.000000e+00 : bf16
    %85 = vector.broadcast %cst_42 : bf16 to vector<2x16x64xbf16>
    %86 = vector.extract_strided_slice %78 {offsets = [0, 0, 0], sizes = [14, 16, 64], strides = [1, 1, 1]} : vector<16x16x64xbf16> to vector<14x16x64xbf16>
    %87 = tpu.concatenate %85, %86 in 0 : vector<2x16x64xbf16>, vector<14x16x64xbf16> -> vector<16x16x64xbf16>
    %88 = tpu.concatenate %84, %87 in 2 : vector<16x16x64xbf16>, vector<16x16x64xbf16> -> vector<16x16x128xbf16>
    %c0_43 = arith.constant 0 : index
    %c0_44 = arith.constant 0 : index
    %c0_45 = arith.constant 0 : index
    %89 = vector.load %arg8[%c0_43, %c0_44, %c0_45] : memref<16x16x640xbf16, #tpu.memory_space<vmem>>, vector<16x16x128xbf16>
    tpu.vector_store %arg8[%c0_43, %c0_44, %c0_45], %88 {strides = array<i32>} : memref<16x16x640xbf16, #tpu.memory_space<vmem>>, vector<16x16x128xbf16>,
    %cst_46 = arith.constant 0.000000e+00 : bf16
    %90 = vector.broadcast %cst_46 : bf16 to vector<2x16x64xbf16>
    %91 = vector.extract_strided_slice %78 {offsets = [0, 0, 0], sizes = [14, 16, 64], strides = [1, 1, 1]} : vector<16x16x64xbf16> to vector<14x16x64xbf16>
    %92 = tpu.concatenate %90, %91 in 0 : vector<2x16x64xbf16>, vector<14x16x64xbf16> -> vector<16x16x64xbf16>
    %93 = vector.extract_strided_slice %92 {offsets = [0, 2, 0], sizes = [16, 14, 64], strides = [1, 1, 1]} : vector<16x16x64xbf16> to vector<16x14x64xbf16>
    %cst_47 = arith.constant 0.000000e+00 : bf16
    %94 = vector.broadcast %cst_47 : bf16 to vector<16x2x64xbf16>
    %95 = tpu.concatenate %93, %94 in 1 : vector<16x14x64xbf16>, vector<16x2x64xbf16> -> vector<16x16x64xbf16>
    %cst_48 = arith.constant 0.000000e+00 : bf16
    %96 = vector.broadcast %cst_48 : bf16 to vector<16x2x64xbf16>
    %97 = vector.extract_strided_slice %78 {offsets = [0, 0, 0], sizes = [16, 14, 64], strides = [1, 1, 1]} : vector<16x16x64xbf16> to vector<16x14x64xbf16>
    %98 = tpu.concatenate %96, %97 in 1 : vector<16x2x64xbf16>, vector<16x14x64xbf16> -> vector<16x16x64xbf16>
    %99 = tpu.concatenate %95, %98 in 2 : vector<16x16x64xbf16>, vector<16x16x64xbf16> -> vector<16x16x128xbf16>
    %c0_49 = arith.constant 0 : index
    %c0_50 = arith.constant 0 : index
    %c128_51 = arith.constant 128 : index
    %100 = vector.load %arg8[%c0_49, %c0_50, %c128_51] : memref<16x16x640xbf16, #tpu.memory_space<vmem>>, vector<16x16x128xbf16>
    tpu.vector_store %arg8[%c0_49, %c0_50, %c128_51], %99 {strides = array<i32>} : memref<16x16x640xbf16, #tpu.memory_space<vmem>>, vector<16x16x128xbf16>,
    %101 = vector.extract_strided_slice %78 {offsets = [0, 2, 0], sizes = [16, 14, 64], strides = [1, 1, 1]} : vector<16x16x64xbf16> to vector<16x14x64xbf16>
    %cst_52 = arith.constant 0.000000e+00 : bf16
    %102 = vector.broadcast %cst_52 : bf16 to vector<16x2x64xbf16>
    %103 = tpu.concatenate %101, %102 in 1 : vector<16x14x64xbf16>, vector<16x2x64xbf16> -> vector<16x16x64xbf16>
    %104 = tpu.concatenate %78, %103 in 2 : vector<16x16x64xbf16>, vector<16x16x64xbf16> -> vector<16x16x128xbf16>
    %c0_53 = arith.constant 0 : index
    %c0_54 = arith.constant 0 : index
    %c256_55 = arith.constant 256 : index
    %105 = vector.load %arg8[%c0_53, %c0_54, %c256_55] : memref<16x16x640xbf16, #tpu.memory_space<vmem>>, vector<16x16x128xbf16>
    tpu.vector_store %arg8[%c0_53, %c0_54, %c256_55], %104 {strides = array<i32>} : memref<16x16x640xbf16, #tpu.memory_space<vmem>>, vector<16x16x128xbf16>,
    %106 = vector.extract_strided_slice %78 {offsets = [2, 0, 0], sizes = [14, 16, 64], strides = [1, 1, 1]} : vector<16x16x64xbf16> to vector<14x16x64xbf16>
    %cst_56 = arith.constant 0.000000e+00 : bf16
    %107 = vector.broadcast %cst_56 : bf16 to vector<2x16x64xbf16>
    %108 = tpu.concatenate %106, %107 in 0 : vector<14x16x64xbf16>, vector<2x16x64xbf16> -> vector<16x16x64xbf16>
    %cst_57 = arith.constant 0.000000e+00 : bf16
    %109 = vector.broadcast %cst_57 : bf16 to vector<16x2x64xbf16>
    %110 = vector.extract_strided_slice %108 {offsets = [0, 0, 0], sizes = [16, 14, 64], strides = [1, 1, 1]} : vector<16x16x64xbf16> to vector<16x14x64xbf16>
    %111 = tpu.concatenate %109, %110 in 1 : vector<16x2x64xbf16>, vector<16x14x64xbf16> -> vector<16x16x64xbf16>
    %112 = vector.extract_strided_slice %78 {offsets = [2, 0, 0], sizes = [14, 16, 64], strides = [1, 1, 1]} : vector<16x16x64xbf16> to vector<14x16x64xbf16>
    %cst_58 = arith.constant 0.000000e+00 : bf16
    %113 = vector.broadcast %cst_58 : bf16 to vector<2x16x64xbf16>
    %114 = tpu.concatenate %112, %113 in 0 : vector<14x16x64xbf16>, vector<2x16x64xbf16> -> vector<16x16x64xbf16>
    %115 = tpu.concatenate %111, %114 in 2 : vector<16x16x64xbf16>, vector<16x16x64xbf16> -> vector<16x16x128xbf16>
    %c0_59 = arith.constant 0 : index
    %c0_60 = arith.constant 0 : index
    %c384_61 = arith.constant 384 : index
    %116 = vector.load %arg8[%c0_59, %c0_60, %c384_61] : memref<16x16x640xbf16, #tpu.memory_space<vmem>>, vector<16x16x128xbf16>
    tpu.vector_store %arg8[%c0_59, %c0_60, %c384_61], %115 {strides = array<i32>} : memref<16x16x640xbf16, #tpu.memory_space<vmem>>, vector<16x16x128xbf16>,
    %117 = vector.extract_strided_slice %78 {offsets = [2, 0, 0], sizes = [14, 16, 64], strides = [1, 1, 1]} : vector<16x16x64xbf16> to vector<14x16x64xbf16>
    %cst_62 = arith.constant 0.000000e+00 : bf16
    %118 = vector.broadcast %cst_62 : bf16 to vector<2x16x64xbf16>
    %119 = tpu.concatenate %117, %118 in 0 : vector<14x16x64xbf16>, vector<2x16x64xbf16> -> vector<16x16x64xbf16>
    %120 = vector.extract_strided_slice %119 {offsets = [0, 2, 0], sizes = [16, 14, 64], strides = [1, 1, 1]} : vector<16x16x64xbf16> to vector<16x14x64xbf16>
    %cst_63 = arith.constant 0.000000e+00 : bf16
    %121 = vector.broadcast %cst_63 : bf16 to vector<16x2x64xbf16>
    %122 = tpu.concatenate %120, %121 in 1 : vector<16x14x64xbf16>, vector<16x2x64xbf16> -> vector<16x16x64xbf16>
    %cst_64 = arith.constant 0.000000e+00 : bf16
    %123 = vector.broadcast %cst_64 : bf16 to vector<16x16x64xbf16>
    %124 = tpu.concatenate %122, %123 in 2 : vector<16x16x64xbf16>, vector<16x16x64xbf16> -> vector<16x16x128xbf16>
    %c0_65 = arith.constant 0 : index
    %c0_66 = arith.constant 0 : index
    %c512_67 = arith.constant 512 : index
    %125 = vector.load %arg8[%c0_65, %c0_66, %c512_67] : memref<16x16x640xbf16, #tpu.memory_space<vmem>>, vector<16x16x128xbf16>
    tpu.vector_store %arg8[%c0_65, %c0_66, %c512_67], %124 {strides = array<i32>} : memref<16x16x640xbf16, #tpu.memory_space<vmem>>, vector<16x16x128xbf16>,
    %c0_68 = arith.constant 0 : index
    %c0_69 = arith.constant 0 : index
    %c0_70 = arith.constant 0 : index
    %126 = vector.load %arg8[%c0_68, %c0_69, %c0_70] : memref<16x16x640xbf16, #tpu.memory_space<vmem>>, vector<16x16x640xbf16>
    %127 = vector.shape_cast %126 : vector<16x16x640xbf16> to vector<256x640xbf16>
    %c0_71 = arith.constant 0 : index
    %c0_72 = arith.constant 0 : index
    %128 = vector.load %arg3[%c0_71, %c0_72] : memref<640x64xbf16, #tpu.memory_space<vmem>>, vector<640x64xbf16>
    %cst_73 = arith.constant dense<0.000000e+00> : vector<256x64xf32>
    %129 = tpu.matmul %127, %128, %cst_73 {dimension_numbers = #tpu.dot_dimension_numbers<[1], [0], [0], [1], [0, 0, 1, 1], [], []>} : vector<256x640xbf16>, vector<640x64xbf16>, vector<256x64xf32> -> vector<256x64xf32>
    %cst_74 = arith.constant dense<0.000000e+00> : vector<64xf32>
    %130 = vector.multi_reduction <add>, %129, %cst_74 [0] : vector<256x64xf32> to vector<64xf32>
    %131 = vector.shape_cast %130 : vector<64xf32> to vector<1x64xf32>
    %132 = arith.mulf %129, %129 : vector<256x64xf32>
    %cst_75 = arith.constant dense<0.000000e+00> : vector<64xf32>
    %133 = vector.multi_reduction <add>, %132, %cst_75 [0] : vector<256x64xf32> to vector<64xf32>
    %134 = vector.shape_cast %133 : vector<64xf32> to vector<1x64xf32>
    %cst_76 = arith.constant 3.906250e-03 : f32
    %135 = vector.broadcast %cst_76 : f32 to vector<1x64xf32>
    %136 = arith.mulf %131, %135 : vector<1x64xf32>
    %cst_77 = arith.constant 3.906250e-03 : f32
    %137 = vector.broadcast %cst_77 : f32 to vector<1x64xf32>
    %138 = arith.mulf %134, %137 : vector<1x64xf32>
    %139 = arith.mulf %136, %136 : vector<1x64xf32>
    %140 = arith.subf %138, %139 : vector<1x64xf32>
    %141 = vector.broadcast %136 : vector<1x64xf32> to vector<256x64xf32>
    %142 = arith.subf %129, %141 : vector<256x64xf32>
    %cst_78 = arith.constant 9.99999974E-6 : f32
    %143 = vector.broadcast %cst_78 : f32 to vector<1x64xf32>
    %144 = arith.addf %140, %143 : vector<1x64xf32>
    %145 = math.rsqrt %144 : vector<1x64xf32>
    %146 = vector.broadcast %145 : vector<1x64xf32> to vector<256x64xf32>
    %147 = arith.mulf %142, %146 : vector<256x64xf32>
    %cst_79 = arith.constant dense<0.000000e+00> : vector<64xf32>
    %148 = vector.multi_reduction <add>, %147, %cst_79 [0] : vector<256x64xf32> to vector<64xf32>
    %149 = vector.shape_cast %148 : vector<64xf32> to vector<1x64xf32>
    %cst_80 = arith.constant 2.560000e+02 : f32
    %150 = vector.broadcast %cst_80 : f32 to vector<1x64xf32>
    %151 = arith.divf %149, %150 : vector<1x64xf32>
    %c0_81 = arith.constant 0 : index
    %c0_82 = arith.constant 0 : index
    %152 = vector.load %arg4[%c0_81, %c0_82] : memref<64x128xf32, #tpu.memory_space<vmem>>, vector<64x128xf32>
    %cst_83 = arith.constant dense<0.000000e+00> : vector<1x128xf32>
    %153 = tpu.matmul %151, %152, %cst_83 {dimension_numbers = #tpu.dot_dimension_numbers<[1], [0], [0], [1], [0, 0, 1, 1], [], []>} : vector<1x64xf32>, vector<64x128xf32>, vector<1x128xf32> -> vector<1x128xf32>
    %cst_84 = arith.constant 0.000000e+00 : f32
    %154 = vector.broadcast %cst_84 : f32 to vector<1x128xf32>
    %155 = arith.maximumf %153, %154 : vector<1x128xf32>
    %c0_85 = arith.constant 0 : index
    %c0_86 = arith.constant 0 : index
    %156 = vector.load %arg5[%c0_85, %c0_86] : memref<128x64xf32, #tpu.memory_space<vmem>>, vector<128x64xf32>
    %cst_87 = arith.constant dense<0.000000e+00> : vector<1x64xf32>
    %157 = tpu.matmul %155, %156, %cst_87 {dimension_numbers = #tpu.dot_dimension_numbers<[1], [0], [0], [1], [0, 0, 1, 1], [], []>} : vector<1x128xf32>, vector<128x64xf32>, vector<1x64xf32> -> vector<1x64xf32>
    %158 = arith.negf %157 : vector<1x64xf32>
    %159 = math.exp %158 : vector<1x64xf32>
    %cst_88 = arith.constant 1.000000e+00 : f32
    %160 = vector.broadcast %cst_88 : f32 to vector<1x64xf32>
    %161 = arith.addf %160, %159 : vector<1x64xf32>
    %162 = arith.divf %160, %161 : vector<1x64xf32>
    %163 = vector.broadcast %162 : vector<1x64xf32> to vector<256x64xf32>
    %164 = arith.mulf %147, %163 : vector<256x64xf32>
    %c0_89 = arith.constant 0 : index
    %c0_90 = arith.constant 0 : index
    %165 = vector.load %arg6[%c0_89, %c0_90] : memref<256x256xf32, #tpu.memory_space<vmem>>, vector<256x256xf32>
    %cst_91 = arith.constant dense<0.000000e+00> : vector<64x256xf32>
    %166 = tpu.matmul %164, %165, %cst_91 {dimension_numbers = #tpu.dot_dimension_numbers<[0], [0], [1], [1], [0, 1, 1, 1], [], []>} : vector<256x64xf32>, vector<256x256xf32>, vector<64x256xf32> -> vector<64x256xf32>
    %c0_92 = arith.constant 0 : index
    %c0_93 = arith.constant 0 : index
    %c0_94 = arith.constant 0 : index
    %167 = vector.load %arg1[%c0_92, %c0_93, %c0_94] : memref<1x64x256xf32, #tpu.memory_space<vmem>>, vector<1x64x256xf32>
    %168 = vector.shape_cast %167 : vector<1x64x256xf32> to vector<64x256xf32>
    %169 = arith.addf %166, %168 : vector<64x256xf32>
    %c0_95 = arith.constant 0 : index
    %c0_96 = arith.constant 0 : index
    %c0_97 = arith.constant 0 : index
    %170 = vector.load %arg7[%c0_95, %c0_96, %c0_97] : memref<1x64x256xf32, #tpu.memory_space<vmem>>, vector<1x64x256xf32>
    %171 = vector.shape_cast %170 : vector<1x64x256xf32> to vector<64x256xf32>
    %172 = vector.shape_cast %169 : vector<64x256xf32> to vector<1x64x256xf32>
    tpu.vector_store %arg7[%c0_95, %c0_96, %c0_97], %172 {strides = array<i32>} : memref<1x64x256xf32, #tpu.memory_space<vmem>>, vector<1x64x256xf32>,
    return
  }
  func.func @transform_0(%arg0: i32) -> (i32, i32, i32) {
    %c0_i32 = arith.constant 0 : i32
    %c0_i32_0 = arith.constant 0 : i32
    %c0_i32_1 = arith.constant 0 : i32
    return %arg0, %c0_i32, %c0_i32_0 : i32, i32, i32
  }
  func.func @transform_1(%arg0: i32) -> (i32, i32) {
    %c0_i32 = arith.constant 0 : i32
    %c0_i32_0 = arith.constant 0 : i32
    %c0_i32_1 = arith.constant 0 : i32
    return %c0_i32, %c0_i32_0 : i32, i32
  }
  func.func @transform_2(%arg0: i32) -> (i32, i32) {
    %c0_i32 = arith.constant 0 : i32
    %c0_i32_0 = arith.constant 0 : i32
    %c0_i32_1 = arith.constant 0 : i32
    return %c0_i32, %c0_i32_0 : i32, i32
  }
  func.func @transform_3(%arg0: i32) -> (i32, i32) {
    %c0_i32 = arith.constant 0 : i32
    %c0_i32_0 = arith.constant 0 : i32
    %c0_i32_1 = arith.constant 0 : i32
    return %c0_i32, %c0_i32_0 : i32, i32
  }
  func.func @transform_4(%arg0: i32) -> (i32, i32) {
    %c0_i32 = arith.constant 0 : i32
    %c0_i32_0 = arith.constant 0 : i32
    %c0_i32_1 = arith.constant 0 : i32
    return %c0_i32, %c0_i32_0 : i32, i32
  }
  func.func @transform_5(%arg0: i32) -> (i32, i32) {
    %c0_i32 = arith.constant 0 : i32
    %c0_i32_0 = arith.constant 0 : i32
    %c0_i32_1 = arith.constant 0 : i32
    return %c0_i32, %c0_i32_0 : i32, i32
  }
  func.func @transform_6(%arg0: i32) -> (i32, i32, i32) {
    %c0_i32 = arith.constant 0 : i32
    %c0_i32_0 = arith.constant 0 : i32
    %c0_i32_1 = arith.constant 0 : i32
    return %arg0, %c0_i32, %c0_i32_0 : i32, i32, i32
  }
}

</mosaic_0001>

<llo_original>
// kernel: tpu_custom_call.1
$region0: #{tpu_custom_call.1}
  #allocation0 [shape = 'u32[]', space=smem, size = 0x4, offset = 0x4, fixed_abs, tag = 'smem constant byte address 0x4 - core index']
  #allocation1 [shape = 'u32[144,128]{1,0:T(1,128)}', space=vmem, size = 0x12000, scoped, tag = 'internal scratch']
  #allocation2 [shape = 'bf16[16,16,640]{2,1,0:T(16,128)(2,1)}', space=vmem, size = 0x50000, scoped, tag = 'scratch operand']
  %s0 = inlined_call_operand.vmem [shape: f32[2,64,256], index: 0, kind: input, shape index: {}]
  %s1 = inlined_call_operand.vmem [shape: bf16[640,64], index: 1, kind: input, shape index: {}]
  %s2 = inlined_call_operand.vmem [shape: bf16[640,64], index: 2, kind: input, shape index: {}]
  %s3 = inlined_call_operand.vmem [shape: f32[64,128], index: 3, kind: input, shape index: {}]
  %s4 = inlined_call_operand.vmem [shape: f32[128,64], index: 4, kind: input, shape index: {}]
  %s5 = inlined_call_operand.vmem [shape: f32[256,256], index: 5, kind: input, shape index: {}]
  %s6 = inlined_call_operand.hbm [shape: f32[2,64,256], index: 6, kind: output, shape index: {}]
  %s7 = sld [smem:[#allocation0]]
  $region57: #{tpu_custom_call.1} parent=0
    _
  %s9 = ssub.s32 1, %s7
  %s10 = scalar_select 0, %s9, %s7
  $region1: #{tpu_custom_call.1} parent=0
    #allocation3 [shape = 'u8[131072]{0}', space=vmem, size = 0x20000, scoped, tag = 'output window, operand 0']
    #allocation4 [shape = 's32[2]{0}', space=sflag, size = 0x8, scoped, tag = 'scoped memory for tpu_custom_call.1']
    %11 = vsyncpa [#allocation4], 0
    %s12 = scalar_lea.sflag [#allocation4], 1
    %13 = vsyncpa %s12, 0
    loop: start=0, step=1, limit=4
    $region2: #{tpu_custom_call.1} parent=1 // loop_pre_header
      _
    $region3: #{tpu_custom_call.1} parent=1 // loop_header
      %s15 = sphi 0, %s19
      %p16 = scmp.ge.s32.totalorder %s15, 4
      %s25 = sphi 0, %s27
      %s28 = sphi 0, %s25
      %s29 = sphi 0, %s28
      %s45 = sphi 0, %s29
      %s49 = sphi 0, %s49
      %s51 = sphi 0, %s49
      %s52 = sphi 0, %s51
      %s66 = sphi 0, %s52
      %s70 = sphi 0, %s70
      %s72 = sphi 0, %s70
      %s73 = sphi 0, %s72
      %s87 = sphi 0, %s73
      %s91 = sphi 0, %s91
      %s93 = sphi 0, %s91
      %s94 = sphi 0, %s93
      %s108 = sphi 0, %s94
      %s112 = sphi 0, %s112
      %s114 = sphi 0, %s112
      %s115 = sphi 0, %s114
      %s129 = sphi 0, %s115
      %s133 = sphi 0, %s133
      %s135 = sphi 0, %s133
      %s136 = sphi 0, %s135
      %s150 = sphi 0, %s136
      %s156 = sphi 0, %s158
      %s159 = sphi 0, %s156
      %s160 = sphi 0, %s159
      %s176 = sphi 0, %s160
    $region4: #{tpu_custom_call.1} parent=1 // loop_header_branch
      %18 = sbr.rel (%p16) target = $region8
    $region5: #{tpu_custom_call.1} parent=1 // loop_body
      %s20 = ssub.s32 %s15, 1
      %s21 = ssub.s32 %s15, 2
      %s22 = sadd.s32 %s15, 1
      %s23 = ssub.s32 %s15, %s22
      %p24 = scmp.eq.s32.totalorder %s23, 0
      %s26 = sadd.s32 %s25, 1
      %s27 = scalar_select %p24, %s25, %s26
      %p30 = pneg %p24
      %p31 = scmp.eq.s32.totalorder %s15, 1
      %p32 = por %p30, %p31
      %p33 = scmp.ne.s32.totalorder %s25, %s28
      %p34 = scmp.eq.s32.totalorder %s15, 0
      %p35 = por %p33, %p34
      %p36 = scmp.ne.s32.totalorder %s25, %s28
      %p37 = scmp.eq.s32.totalorder %s20, 1
      %p38 = por %p36, %p37
      %p39 = scmp.ne.s32.totalorder %s28, %s29
      %p40 = scmp.eq.s32.totalorder %s20, 0
      %p41 = por %p39, %p40
      %p42 = scmp.ne.s32.totalorder %s28, %s29
      %p43 = scmp.eq.s32.totalorder %s21, 1
      %p44 = por %p42, %p43
      %p46 = scmp.ne.s32.totalorder %s29, %s45
      %p47 = scmp.eq.s32.totalorder %s21, 0
      %p48 = por %p46, %p47
      %s50 = sadd.s32 %s49, 1
      %p53 = scmp.eq.s32.totalorder %s15, 1
      %p54 = scmp.ne.s32.totalorder %s49, %s51
      %p55 = scmp.eq.s32.totalorder %s15, 0
      %p56 = por %p54, %p55
      %p57 = scmp.ne.s32.totalorder %s49, %s51
      %p58 = scmp.eq.s32.totalorder %s20, 1
      %p59 = por %p57, %p58
      %p60 = scmp.ne.s32.totalorder %s51, %s52
      %p61 = scmp.eq.s32.totalorder %s20, 0
      %p62 = por %p60, %p61
      %p63 = scmp.ne.s32.totalorder %s51, %s52
      %p64 = scmp.eq.s32.totalorder %s21, 1
      %p65 = por %p63, %p64
      %p67 = scmp.ne.s32.totalorder %s52, %s66
      %p68 = scmp.eq.s32.totalorder %s21, 0
      %p69 = por %p67, %p68
      %s71 = sadd.s32 %s70, 1
      %p74 = scmp.eq.s32.totalorder %s15, 1
      %p75 = scmp.ne.s32.totalorder %s70, %s72
      %p76 = scmp.eq.s32.totalorder %s15, 0
      %p77 = por %p75, %p76
      %p78 = scmp.ne.s32.totalorder %s70, %s72
      %p79 = scmp.eq.s32.totalorder %s20, 1
      %p80 = por %p78, %p79
      %p81 = scmp.ne.s32.totalorder %s72, %s73
      %p82 = scmp.eq.s32.totalorder %s20, 0
      %p83 = por %p81, %p82
      %p84 = scmp.ne.s32.totalorder %s72, %s73
      %p85 = scmp.eq.s32.totalorder %s21, 1
      %p86 = por %p84, %p85
      %p88 = scmp.ne.s32.totalorder %s73, %s87
      %p89 = scmp.eq.s32.totalorder %s21, 0
      %p90 = por %p88, %p89
      %s92 = sadd.s32 %s91, 1
      %p95 = scmp.eq.s32.totalorder %s15, 1
      %p96 = scmp.ne.s32.totalorder %s91, %s93
      %p97 = scmp.eq.s32.totalorder %s15, 0
      %p98 = por %p96, %p97
      %p99 = scmp.ne.s32.totalorder %s91, %s93
      %p100 = scmp.eq.s32.totalorder %s20, 1
      %p101 = por %p99, %p100
      %p102 = scmp.ne.s32.totalorder %s93, %s94
      %p103 = scmp.eq.s32.totalorder %s20, 0
      %p104 = por %p102, %p103
      %p105 = scmp.ne.s32.totalorder %s93, %s94
      %p106 = scmp.eq.s32.totalorder %s21, 1
      %p107 = por %p105, %p106
      %p109 = scmp.ne.s32.totalorder %s94, %s108
      %p110 = scmp.eq.s32.totalorder %s21, 0
      %p111 = por %p109, %p110
      %s113 = sadd.s32 %s112, 1
      %p116 = scmp.eq.s32.totalorder %s15, 1
      %p117 = scmp.ne.s32.totalorder %s112, %s114
      %p118 = scmp.eq.s32.totalorder %s15, 0
      %p119 = por %p117, %p118
      %p120 = scmp.ne.s32.totalorder %s112, %s114
      %p121 = scmp.eq.s32.totalorder %s20, 1
      %p122 = por %p120, %p121
      %p123 = scmp.ne.s32.totalorder %s114, %s115
      %p124 = scmp.eq.s32.totalorder %s20, 0
      %p125 = por %p123, %p124
      %p126 = scmp.ne.s32.totalorder %s114, %s115
      %p127 = scmp.eq.s32.totalorder %s21, 1
      %p128 = por %p126, %p127
      %p130 = scmp.ne.s32.totalorder %s115, %s129
      %p131 = scmp.eq.s32.totalorder %s21, 0
      %p132 = por %p130, %p131
      %s134 = sadd.s32 %s133, 1
      %p137 = scmp.eq.s32.totalorder %s15, 1
      %p138 = scmp.ne.s32.totalorder %s133, %s135
      %p139 = scmp.eq.s32.totalorder %s15, 0
      %p140 = por %p138, %p139
      %p141 = scmp.ne.s32.totalorder %s133, %s135
      %p142 = scmp.eq.s32.totalorder %s20, 1
      %p143 = por %p141, %p142
      %p144 = scmp.ne.s32.totalorder %s135, %s136
      %p145 = scmp.eq.s32.totalorder %s20, 0
      %p146 = por %p144, %p145
      %p147 = scmp.ne.s32.totalorder %s135, %s136
      %p148 = scmp.eq.s32.totalorder %s21, 1
      %p149 = por %p147, %p148
      %p151 = scmp.ne.s32.totalorder %s136, %s150
      %p152 = scmp.eq.s32.totalorder %s21, 0
      %p153 = por %p151, %p152
      %s154 = ssub.s32 %s15, %s22
      %p155 = scmp.eq.s32.totalorder %s154, 0
      %s157 = sadd.s32 %s156, 1
      %s158 = scalar_select %p155, %s156, %s157
      %p161 = pneg %p155
      %p162 = scmp.eq.s32.totalorder %s15, 1
      %p163 = por %p161, %p162
      %p164 = scmp.ne.s32.totalorder %s156, %s159
      %p165 = scmp.eq.s32.totalorder %s15, 0
      %p166 = por %p164, %p165
      %p167 = scmp.ne.s32.totalorder %s156, %s159
      %p168 = scmp.eq.s32.totalorder %s20, 1
      %p169 = por %p167, %p168
      %p170 = scmp.ne.s32.totalorder %s159, %s160
      %p171 = scmp.eq.s32.totalorder %s20, 0
      %p172 = por %p170, %p171
      %p173 = scmp.ne.s32.totalorder %s159, %s160
      %p174 = scmp.eq.s32.totalorder %s21, 1
      %p175 = por %p173, %p174
      %p177 = scmp.ne.s32.totalorder %s160, %s176
      %p178 = scmp.eq.s32.totalorder %s21, 0
      %p179 = por %p177, %p178
      %p180 = scmp.le.s32.totalorder 1, %s15
      %p181 = scmp.lt.s32.totalorder %s15, 3
      %p182 = pnand %p180, %p181
      %p183 = pneg %p182
      // Predicated region
      $region9: #{tpu_custom_call.1} parent=5 // pred_check
        _
      $region10: #{tpu_custom_call.1} parent=5 // pred_check_branch
        %185 = sbr.rel (%p182) target = $region12
      $region11: #{tpu_custom_call.1} parent=5 // pred_region
        %s186 = ssub.s32 %s15, 1
        // Predicated region
        $region13: #{tpu_custom_call.1} parent=11 // pred_check
          %p187 = pneg %p62
        $region14: #{tpu_custom_call.1} parent=11 // pred_check_branch
          %189 = sbr.rel (%p187) target = $region16
        $region15: #{tpu_custom_call.1} parent=11 // pred_region
          _
        $region16: #{tpu_custom_call.1} parent=11 // pred_fallthru
          _
        // Predicated region
        $region17: #{tpu_custom_call.1} parent=11 // pred_check
          %p190 = pneg %p83
        $region18: #{tpu_custom_call.1} parent=11 // pred_check_branch
          %192 = sbr.rel (%p190) target = $region20
        $region19: #{tpu_custom_call.1} parent=11 // pred_region
          _
        $region20: #{tpu_custom_call.1} parent=11 // pred_fallthru
          _
        // Predicated region
        $region21: #{tpu_custom_call.1} parent=11 // pred_check
          %p193 = pneg %p104
        $region22: #{tpu_custom_call.1} parent=11 // pred_check_branch
          %195 = sbr.rel (%p193) target = $region24
        $region23: #{tpu_custom_call.1} parent=11 // pred_region
          _
        $region24: #{tpu_custom_call.1} parent=11 // pred_fallthru
          _
        // Predicated region
        $region25: #{tpu_custom_call.1} parent=11 // pred_check
          %p196 = pneg %p125
        $region26: #{tpu_custom_call.1} parent=11 // pred_check_branch
          %198 = sbr.rel (%p196) target = $region28
        $region27: #{tpu_custom_call.1} parent=11 // pred_region
          _
        $region28: #{tpu_custom_call.1} parent=11 // pred_fallthru
          _
        // Predicated region
        $region29: #{tpu_custom_call.1} parent=11 // pred_check
          %p199 = pneg %p146
        $region30: #{tpu_custom_call.1} parent=11 // pred_check_branch
          %201 = sbr.rel (%p199) target = $region32
        $region31: #{tpu_custom_call.1} parent=11 // pred_region
          _
        $region32: #{tpu_custom_call.1} parent=11 // pred_fallthru
          _
      $region12: #{tpu_custom_call.1} parent=5 // pred_fallthru
        _
      %p202 = scmp.lt.s32.totalorder %s15, 2
      // Predicated region
      $region33: #{tpu_custom_call.1} parent=5 // pred_check
        %p203 = pneg %p202
      $region34: #{tpu_custom_call.1} parent=5 // pred_check_branch
        %205 = sbr.rel (%p203) target = $region36
      $region35: #{tpu_custom_call.1} parent=5 // pred_region
        // Predicated region
        $region37: #{tpu_custom_call.1} parent=35 // pred_check
          %p206 = pneg %p35
        $region38: #{tpu_custom_call.1} parent=35 // pred_check_branch
          %208 = sbr.rel (%p206) target = $region40
        $region39: #{tpu_custom_call.1} parent=35 // pred_region
          %p209 = scmp.lt.s32.totalorder %s15, 1
          %s210 = scalar_select %p209, %s15, 1
          %s211 = smul.addr %s210, 16
          %s212 = smul.addr %s211, 8
          %s213 = scalar_lea.vmem %s0, %s212
        $region40: #{tpu_custom_call.1} parent=35 // pred_fallthru
          _
      $region36: #{tpu_custom_call.1} parent=5 // pred_fallthru
        _
      %p214 = scmp.le.s32.totalorder 1, %s15
      %p215 = scmp.lt.s32.totalorder %s15, 3
      %p216 = pnand %p214, %p215
      %p217 = pneg %p216
      // Predicated region
      $region41: #{tpu_custom_call.1} parent=5 // pred_check
        _
      $region42: #{tpu_custom_call.1} parent=5 // pred_check_branch
        %219 = sbr.rel (%p216) target = $region44
      $region43: #{tpu_custom_call.1} parent=5 // pred_region
        %s220 = ssub.s32 %s15, 1
        %p221 = scmp.lt.s32.totalorder %s20, 1
        %s222 = scalar_select %p221, %s20, 1
        %s223 = smul.addr %s222, 16
        %s224 = smul.addr %s223, 8
        %s225 = scalar_lea.vmem %s0, %s224
        %p226 = pneg %p41
        %p227 = pneg %p38
        %p228 = pneg %p62
        %p229 = pneg %p59
        %p230 = pneg %p83
        %p231 = pneg %p80
        %p232 = pneg %p104
        %p233 = pneg %p101
        %p234 = pneg %p125
        %p235 = pneg %p122
        %p236 = pneg %p146
        %p237 = pneg %p143
        %p238 = pneg %p172
        %p239 = pneg %p169
        %s240 = sand.u32 %s159, 1
        %s241 = scalar_lea.sflag [#allocation4], %s240
        %s242 = sand.u32 %s159, 1
        %s243 = smul.addr %s242, 128
        %s244 = scalar_lea.vmem [#allocation3], %s243
        %p245 = scmp.lt.s32.totalorder %s20, 1
        %s246 = scalar_select %p245, %s20, 1
        %s247 = smul.addr %s246, 16
        %s248 = smul.addr %s247, 8
        %s249 = scalar_lea.vmem %s0, %s248
        %v251 = vld [vmem:[%s5] sm:$0xff]
        %v252 = vld [vmem:[%s5 + $0x10] sm:$0xff]
        %v253 = vld [vmem:[%s5 + $0x20] sm:$0xff]
        %v254 = vld [vmem:[%s5 + $0x30] sm:$0xff]
        %v255 = vld [vmem:[%s5 + $0x40] sm:$0xff]
        %v256 = vld [vmem:[%s5 + $0x50] sm:$0xff]
        %v257 = vld [vmem:[%s5 + $0x60] sm:$0xff]
        %v258 = vld [vmem:[%s5 + $0x70] sm:$0xff]
        %v259 = vld [vmem:[%s249] sm:$0xff]
        %v260 = vld [vmem:[%s249 + $0x8] sm:$0xff]
        %v261 = vld [vmem:[%s249 + $0x10] sm:$0xff]
        %v262 = vld [vmem:[%s249 + $0x18] sm:$0xff]
        %v263 = vld [vmem:[%s249 + $0x20] sm:$0xff]
        %v264 = vld [vmem:[%s249 + $0x28] sm:$0xff]
        %v265 = vld [vmem:[%s249 + $0x30] sm:$0xff]
        %v266 = vld [vmem:[%s249 + $0x38] sm:$0xff]
        %v267 = vld [vmem:[%s249 + $0x40] sm:$0xff]
        %v268 = vld [vmem:[%s249 + $0x48] sm:$0xff]
        %v269 = vld [vmem:[%s249 + $0x50] sm:$0xff]
        %v270 = vld [vmem:[%s249 + $0x58] sm:$0xff]
        %v271 = vld [vmem:[%s249 + $0x60] sm:$0xff]
        %v272 = vld [vmem:[%s249 + $0x68] sm:$0xff]
        %v273 = vld [vmem:[%s249 + $0x70] sm:$0xff]
        %v274 = vld [vmem:[%s249 + $0x78] sm:$0xff]
        %275 = vxpose.xlu0.b32.start [1/16] %v259, 128
        %276 = vxpose.xlu0.b32.cont [2/16] %v261, 128
        %277 = vxpose.xlu0.b32.cont [3/16] %v263, 128
        %278 = vxpose.xlu0.b32.cont [4/16] %v265, 128
        %279 = vxpose.xlu0.b32.cont [5/16] %v267, 128
        %280 = vxpose.xlu0.b32.cont [6/16] %v269, 128
        %281 = vxpose.xlu0.b32.cont [7/16] %v271, 128
        %282 = vxpose.xlu0.b32.cont [8/16] %v273, 128
        %283 = vxpose.xlu0.b32.cont [9/16] 0.0, 128
        %284 = vxpose.xlu0.b32.cont [10/16] 0.0, 128
        %285 = vxpose.xlu0.b32.cont [11/16] 0.0, 128
        %286 = vxpose.xlu0.b32.cont [12/16] 0.0, 128
        %287 = vxpose.xlu0.b32.cont [13/16] 0.0, 128
        %288 = vxpose.xlu0.b32.cont [14/16] 0.0, 128
        %289 = vxpose.xlu0.b32.cont [15/16] 0.0, 128
        %290 = vxpose.xlu0.b32.end [16/16] 0.0, 128
        %v291 = vpop.trf.xlu0
        %v292 = vpop.trf.xlu0
        %v293 = vpop.trf.xlu0
        %v294 = vpop.trf.xlu0
        %v295 = vpop.trf.xlu0
        %v296 = vpop.trf.xlu0
        %v297 = vpop.trf.xlu0
        %v298 = vpop.trf.xlu0
        %v299 = vpop.trf.xlu0
        %v300 = vpop.trf.xlu0
        %v301 = vpop.trf.xlu0
        %v302 = vpop.trf.xlu0
        %v303 = vpop.trf.xlu0
        %v304 = vpop.trf.xlu0
        %v305 = vpop.trf.xlu0
        %v306 = vpop.trf.xlu0
        %307 = vxpose.xlu0.b32.start [1/16] %v260, 128
        %308 = vxpose.xlu0.b32.cont [2/16] %v262, 128
        %309 = vxpose.xlu0.b32.cont [3/16] %v264, 128
        %310 = vxpose.xlu0.b32.cont [4/16] %v266, 128
        %311 = vxpose.xlu0.b32.cont [5/16] %v268, 128
        %312 = vxpose.xlu0.b32.cont [6/16] %v270, 128
        %313 = vxpose.xlu0.b32.cont [7/16] %v272, 128
        %314 = vxpose.xlu0.b32.cont [8/16] %v274, 128
        %315 = vxpose.xlu0.b32.cont [9/16] 0.0, 128
        %316 = vxpose.xlu0.b32.cont [10/16] 0.0, 128
        %317 = vxpose.xlu0.b32.cont [11/16] 0.0, 128
        %318 = vxpose.xlu0.b32.cont [12/16] 0.0, 128
        %319 = vxpose.xlu0.b32.cont [13/16] 0.0, 128
        %320 = vxpose.xlu0.b32.cont [14/16] 0.0, 128
        %321 = vxpose.xlu0.b32.cont [15/16] 0.0, 128
        %322 = vxpose.xlu0.b32.end [16/16] 0.0, 128
        %v323 = vpop.trf.xlu0
        %v324 = vpop.trf.xlu0
        %v325 = vpop.trf.xlu0
        %v326 = vpop.trf.xlu0
        %v327 = vpop.trf.xlu0
        %v328 = vpop.trf.xlu0
        %v329 = vpop.trf.xlu0
        %v330 = vpop.trf.xlu0
        %v331 = vpop.trf.xlu0
        %v332 = vpop.trf.xlu0
        %v333 = vpop.trf.xlu0
        %v334 = vpop.trf.xlu0
        %v335 = vpop.trf.xlu0
        %v336 = vpop.trf.xlu0
        %v337 = vpop.trf.xlu0
        %v338 = vpop.trf.xlu0
        %vm339 = vcmask 523264
        %v341 = vsel %vm339, %v291, 0
        %v344 = vsel %vm339, %v292, 0
        %v347 = vsel %vm339, %v293, 0
        %v350 = vsel %vm339, %v294, 0
        %v353 = vsel %vm339, %v295, 0
        %v356 = vsel %vm339, %v296, 0
        %v359 = vsel %vm339, %v297, 0
        %v362 = vsel %vm339, %v298, 0
        %v365 = vsel %vm339, %v299, 0
        %v368 = vsel %vm339, %v300, 0
        %v371 = vsel %vm339, %v301, 0
        %v374 = vsel %vm339, %v302, 0
        %v377 = vsel %vm339, %v303, 0
        %v380 = vsel %vm339, %v304, 0
        %v383 = vsel %vm339, %v305, 0
        %v386 = vsel %vm339, %v306, 0
        %v389 = vsel %vm339, %v323, 0
        %v392 = vsel %vm339, %v324, 0
        %v395 = vsel %vm339, %v325, 0
        %v398 = vsel %vm339, %v326, 0
        %v401 = vsel %vm339, %v327, 0
        %v404 = vsel %vm339, %v328, 0
        %v407 = vsel %vm339, %v329, 0
        %v410 = vsel %vm339, %v330, 0
        %v413 = vsel %vm339, %v331, 0
        %v416 = vsel %vm339, %v332, 0
        %v419 = vsel %vm339, %v333, 0
        %v422 = vsel %vm339, %v334, 0
        %v425 = vsel %vm339, %v335, 0
        %v428 = vsel %vm339, %v336, 0
        %v431 = vsel %vm339, %v337, 0
        %v434 = vsel %vm339, %v338, 0
        %436 = vmatprep.subr.mxu0 0.0
        %437 = vmatpush1.msra.mxu0 %v251
        %438 = vmatprep.subr.mxu0 0.0
        %439 = vmatpush1.msra.mxu0 %v252
        %440 = vmatprep.subr.mxu0 0.0
        %441 = vmatpush1.msra.mxu0 %v253
        %442 = vmatprep.subr.mxu0 0.0
        %443 = vmatpush1.msra.mxu0 %v254
        %444 = vmatprep.subr.mxu0 0.0
        %445 = vmatpush1.msra.mxu0 %v255
        %446 = vmatprep.subr.mxu0 0.0
        %447 = vmatpush1.msra.mxu0 %v256
        %448 = vmatprep.subr.mxu0 0.0
        %449 = vmatpush1.msra.mxu0 %v257
        %450 = vmatprep.subr.mxu0 0.0
        %451 = vmatpush1.msra.mxu0 %v258
        %452 = vmatprep.subr.mxu0 0.0
        %453 = vmatpush1.msra.mxu0 0.0
        %454 = vmatprep.subr.mxu0 0.0
        %455 = vmatpush1.msra.mxu0 0.0
        %456 = vmatprep.subr.mxu0 0.0
        %457 = vmatpush1.msra.mxu0 0.0
        %458 = vmatprep.subr.mxu0 0.0
        %459 = vmatpush1.msra.mxu0 0.0
        %460 = vmatprep.subr.mxu0 0.0
        %461 = vmatpush1.msra.mxu0 0.0
        %462 = vmatprep.subr.mxu0 0.0
        %463 = vmatpush1.msra.mxu0 0.0
        %464 = vmatprep.subr.mxu0 0.0
        %465 = vmatpush1.msra.mxu0 0.0
        %466 = vmatprep.subr.mxu0 0.0
        %467 = vmatpush1.msra.mxu0 0.0
        %468 = vmatprep.subr.mxu0 0.0
        %469 = vmatpush1.msra.mxu0 0.0
        %470 = vmatprep.subr.mxu0 0.0
        %471 = vmatpush1.msra.mxu0 0.0
        %472 = vmatprep.subr.mxu0 0.0
        %473 = vmatpush1.msra.mxu0 0.0
        %474 = vmatprep.subr.mxu0 0.0
        %475 = vmatpush1.msra.mxu0 0.0
        %476 = vmatprep.subr.mxu0 0.0
        %477 = vmatpush1.msra.mxu0 0.0
        %478 = vmatprep.subr.mxu0 0.0
        %479 = vmatpush1.msra.mxu0 0.0
        %480 = vmatprep.subr.mxu0 0.0
        %481 = vmatpush1.msra.mxu0 0.0
        %482 = vmatprep.subr.mxu0 0.0
        %483 = vmatpush1.msra.mxu0 0.0
        %484 = vmatprep.subr.mxu0 0.0
        %485 = vmatpush1.msra.mxu0 0.0
        %486 = vmatprep.subr.mxu0 0.0
        %487 = vmatpush1.msra.mxu0 0.0
        %488 = vmatprep.subr.mxu0 0.0
        %489 = vmatpush1.msra.mxu0 0.0
        %490 = vmatprep.subr.mxu0 0.0
        %491 = vmatpush1.msra.mxu0 0.0
        %492 = vmatprep.subr.mxu0 0.0
        %493 = vmatpush1.msra.mxu0 0.0
        %494 = vmatprep.subr.mxu0 0.0
        %495 = vmatpush1.msra.mxu0 0.0
        %496 = vmatprep.subr.mxu0 0.0
        %497 = vmatpush1.msra.mxu0 0.0
        %498 = vmatprep.subr.mxu0 0.0
        %499 = vmatpush1.msra.mxu0 0.0
        %500 = vmatprep.mubr.f32.mxu0 0.0
        %501 = vmatmul.mubr.f32.gmra.mrb[0].mxu0 %v341
        %v502 = vpop.f32.mrb[0].mxu0
        %v503 = vadd.f32 0.0, %v502
        %v504 = vpop.f32.mrb[0].mxu0
        %505 = vmatprep.mubr.f32.mxu0 0.0
        %506 = vmatmul.mubr.f32.gmra.mrb[0].mxu0 %v344
        %v507 = vpop.f32.mrb[0].mxu0
        %v508 = vadd.f32 0.0, %v507
        %v509 = vpop.f32.mrb[0].mxu0
        %510 = vmatprep.mubr.f32.mxu0 0.0
        %511 = vmatmul.mubr.f32.gmra.mrb[0].mxu0 %v347
        %v512 = vpop.f32.mrb[0].mxu0
        %v513 = vadd.f32 0.0, %v512
        %v514 = vpop.f32.mrb[0].mxu0
        %515 = vmatprep.mubr.f32.mxu0 0.0
        %516 = vmatmul.mubr.f32.gmra.mrb[0].mxu0 %v350
        %v517 = vpop.f32.mrb[0].mxu0
        %v518 = vadd.f32 0.0, %v517
        %v519 = vpop.f32.mrb[0].mxu0
        %520 = vmatprep.mubr.f32.mxu0 0.0
        %521 = vmatmul.mubr.f32.gmra.mrb[0].mxu0 %v353
        %v522 = vpop.f32.mrb[0].mxu0
        %v523 = vadd.f32 0.0, %v522
        %v524 = vpop.f32.mrb[0].mxu0
        %525 = vmatprep.mubr.f32.mxu0 0.0
        %526 = vmatmul.mubr.f32.gmra.mrb[0].mxu0 %v356
        %v527 = vpop.f32.mrb[0].mxu0
        %v528 = vadd.f32 0.0, %v527
        %v529 = vpop.f32.mrb[0].mxu0
        %530 = vmatprep.mubr.f32.mxu0 0.0
        %531 = vmatmul.mubr.f32.gmra.mrb[0].mxu0 %v359
        %v532 = vpop.f32.mrb[0].mxu0
        %v533 = vadd.f32 0.0, %v532
        %v534 = vpop.f32.mrb[0].mxu0
        %535 = vmatprep.mubr.f32.mxu0 0.0
        %536 = vmatmul.mubr.f32.gmra.mrb[0].mxu0 %v362
        %v537 = vpop.f32.mrb[0].mxu0
        %v538 = vadd.f32 0.0, %v537
        %v539 = vpop.f32.mrb[0].mxu0
        %540 = vmatprep.mubr.f32.mxu0 0.0
        %541 = vmatmul.mubr.f32.gmra.mrb[0].mxu0 %v365
        %v542 = vpop.f32.mrb[0].mxu0
        %v543 = vadd.f32 0.0, %v542
        %v544 = vpop.f32.mrb[0].mxu0
        %545 = vmatprep.mubr.f32.mxu0 0.0
        %546 = vmatmul.mubr.f32.gmra.mrb[0].mxu0 %v368
        %v547 = vpop.f32.mrb[0].mxu0
        %v548 = vadd.f32 0.0, %v547
        %v549 = vpop.f32.mrb[0].mxu0
        %550 = vmatprep.mubr.f32.mxu0 0.0
        %551 = vmatmul.mubr.f32.gmra.mrb[0].mxu0 %v371
        %v552 = vpop.f32.mrb[0].mxu0
        %v553 = vadd.f32 0.0, %v552
        %v554 = vpop.f32.mrb[0].mxu0
        %555 = vmatprep.mubr.f32.mxu0 0.0
        %556 = vmatmul.mubr.f32.gmra.mrb[0].mxu0 %v374
        %v557 = vpop.f32.mrb[0].mxu0
        %v558 = vadd.f32 0.0, %v557
        %v559 = vpop.f32.mrb[0].mxu0
        %560 = vmatprep.mubr.f32.mxu0 0.0
        %561 = vmatmul.mubr.f32.gmra.mrb[0].mxu0 %v377
        %v562 = vpop.f32.mrb[0].mxu0
        %v563 = vadd.f32 0.0, %v562
        %v564 = vpop.f32.mrb[0].mxu0
        %565 = vmatprep.mubr.f32.mxu0 0.0
        %566 = vmatmul.mubr.f32.gmra.mrb[0].mxu0 %v380
        %v567 = vpop.f32.mrb[0].mxu0
        %v568 = vadd.f32 0.0, %v567
        %v569 = vpop.f32.mrb[0].mxu0
        %570 = vmatprep.mubr.f32.mxu0 0.0
        %571 = vmatmul.mubr.f32.gmra.mrb[0].mxu0 %v383
        %v572 = vpop.f32.mrb[0].mxu0
        %v573 = vadd.f32 0.0, %v572
        %v574 = vpop.f32.mrb[0].mxu0
        %575 = vmatprep.mubr.f32.mxu0 0.0
        %576 = vmatmul.mubr.f32.gmra.mrb[0].mxu0 %v386
        %v577 = vpop.f32.mrb[0].mxu0
        %v578 = vadd.f32 0.0, %v577
        %v579 = vpop.f32.mrb[0].mxu0
        %580 = vmatprep.mubr.f32.mxu0 0.0
        %581 = vmatmul.mubr.f32.gmra.mrb[0].mxu0 %v389
        %v582 = vpop.f32.mrb[0].mxu0
        %v583 = vadd.f32 0.0, %v582
        %v584 = vpop.f32.mrb[0].mxu0
        %585 = vmatprep.mubr.f32.mxu0 0.0
        %586 = vmatmul.mubr.f32.gmra.mrb[0].mxu0 %v392
        %v587 = vpop.f32.mrb[0].mxu0
        %v588 = vadd.f32 0.0, %v587
        %v589 = vpop.f32.mrb[0].mxu0
        %590 = vmatprep.mubr.f32.mxu0 0.0
        %591 = vmatmul.mubr.f32.gmra.mrb[0].mxu0 %v395
        %v592 = vpop.f32.mrb[0].mxu0
        %v593 = vadd.f32 0.0, %v592
        %v594 = vpop.f32.mrb[0].mxu0
        %595 = vmatprep.mubr.f32.mxu0 0.0
        %596 = vmatmul.mubr.f32.gmra.mrb[0].mxu0 %v398
        %v597 = vpop.f32.mrb[0].mxu0
        %v598 = vadd.f32 0.0, %v597
        %v599 = vpop.f32.mrb[0].mxu0
        %600 = vmatprep.mubr.f32.mxu0 0.0
        %601 = vmatmul.mubr.f32.gmra.mrb[0].mxu0 %v401
        %v602 = vpop.f32.mrb[0].mxu0
        %v603 = vadd.f32 0.0, %v602
        %v604 = vpop.f32.mrb[0].mxu0
        %605 = vmatprep.mubr.f32.mxu0 0.0
        %606 = vmatmul.mubr.f32.gmra.mrb[0].mxu0 %v404
        %v607 = vpop.f32.mrb[0].mxu0
        %v608 = vadd.f32 0.0, %v607
        %v609 = vpop.f32.mrb[0].mxu0
        %610 = vmatprep.mubr.f32.mxu0 0.0
        %611 = vmatmul.mubr.f32.gmra.mrb[0].mxu0 %v407
        %v612 = vpop.f32.mrb[0].mxu0
        %v613 = vadd.f32 0.0, %v612
        %v614 = vpop.f32.mrb[0].mxu0
        %615 = vmatprep.mubr.f32.mxu0 0.0
        %616 = vmatmul.mubr.f32.gmra.mrb[0].mxu0 %v410
        %v617 = vpop.f32.mrb[0].mxu0
        %v618 = vadd.f32 0.0, %v617
        %v619 = vpop.f32.mrb[0].mxu0
        %620 = vmatprep.mubr.f32.mxu0 0.0
        %621 = vmatmul.mubr.f32.gmra.mrb[0].mxu0 %v413
        %v622 = vpop.f32.mrb[0].mxu0
        %v623 = vadd.f32 0.0, %v622
        %v624 = vpop.f32.mrb[0].mxu0
        %625 = vmatprep.mubr.f32.mxu0 0.0
        %626 = vmatmul.mubr.f32.gmra.mrb[0].mxu0 %v416
        %v627 = vpop.f32.mrb[0].mxu0
        %v628 = vadd.f32 0.0, %v627
        %v629 = vpop.f32.mrb[0].mxu0
        %630 = vmatprep.mubr.f32.mxu0 0.0
        %631 = vmatmul.mubr.f32.gmra.mrb[0].mxu0 %v419
        %v632 = vpop.f32.mrb[0].mxu0
        %v633 = vadd.f32 0.0, %v632
        %v634 = vpop.f32.mrb[0].mxu0
        %635 = vmatprep.mubr.f32.mxu0 0.0
        %636 = vmatmul.mubr.f32.gmra.mrb[0].mxu0 %v422
        %v637 = vpop.f32.mrb[0].mxu0
        %v638 = vadd.f32 0.0, %v637
        %v639 = vpop.f32.mrb[0].mxu0
        %640 = vmatprep.mubr.f32.mxu0 0.0
        %641 = vmatmul.mubr.f32.gmra.mrb[0].mxu0 %v425
        %v642 = vpop.f32.mrb[0].mxu0
        %v643 = vadd.f32 0.0, %v642
        %v644 = vpop.f32.mrb[0].mxu0
        %645 = vmatprep.mubr.f32.mxu0 0.0
        %646 = vmatmul.mubr.f32.gmra.mrb[0].mxu0 %v428
        %v647 = vpop.f32.mrb[0].mxu0
        %v648 = vadd.f32 0.0, %v647
        %v649 = vpop.f32.mrb[0].mxu0
        %650 = vmatprep.mubr.f32.mxu0 0.0
        %651 = vmatmul.mubr.f32.gmra.mrb[0].mxu0 %v431
        %v652 = vpop.f32.mrb[0].mxu0
        %v653 = vadd.f32 0.0, %v652
        %v654 = vpop.f32.mrb[0].mxu0
        %655 = vmatprep.mubr.f32.mxu0 0.0
        %656 = vmatmul.mubr.f32.gmra.mrb[0].mxu0 %v434
        %v657 = vpop.f32.mrb[0].mxu0
        %v658 = vadd.f32 0.0, %v657
        %v659 = vpop.f32.mrb[0].mxu0
        %660 = vdwg.mxu0
        %v661 = vpack.c.bf16 %v508, %v503
        %v662 = vpack.c.bf16 %v518, %v513
        %v663 = vpack.c.bf16 %v528, %v523
        %v664 = vpack.c.bf16 %v538, %v533
        %v665 = vpack.c.bf16 %v548, %v543
        %v666 = vpack.c.bf16 %v558, %v553
        %v667 = vpack.c.bf16 %v568, %v563
        %v668 = vpack.c.bf16 %v578, %v573
        %v669 = vpack.c.bf16 %v588, %v583
        %v670 = vpack.c.bf16 %v598, %v593
        %v671 = vpack.c.bf16 %v608, %v603
        %v672 = vpack.c.bf16 %v618, %v613
        %v673 = vpack.c.bf16 %v628, %v623
        %v674 = vpack.c.bf16 %v638, %v633
        %v675 = vpack.c.bf16 %v648, %v643
        %v676 = vpack.c.bf16 %v658, %v653
        %v692 = vrot.slane 0, 7
        %v693 = vrot.slane %v661, 7
        %v694 = vrot.slane %v662, 7
        %v695 = vrot.slane %v663, 7
        %v696 = vrot.slane %v664, 7
        %v697 = vrot.slane %v665, 7
        %v698 = vrot.slane %v666, 7
        %v699 = vrot.slane %v667, 7
        %v700 = vrot.slane %v668, 7
        %v701 = vrot.slane %v669, 7
        %v702 = vrot.slane %v670, 7
        %v703 = vrot.slane %v671, 7
        %v704 = vrot.slane %v672, 7
        %v705 = vrot.slane %v673, 7
        %v706 = vrot.slane %v674, 7
        %vm707 = vcmask 1040384
        %v710 = vsel %vm707, 0, %v692
        %v712 = vsel %vm707, 0, %v693
        %v714 = vsel %vm707, 0, %v694
        %v716 = vsel %vm707, 0, %v695
        %v718 = vsel %vm707, 0, %v696
        %v720 = vsel %vm707, 0, %v697
        %v722 = vsel %vm707, 0, %v698
        %v724 = vsel %vm707, 0, %v699
        %v726 = vsel %vm707, 0, %v700
        %v728 = vsel %vm707, 0, %v701
        %v730 = vsel %vm707, 0, %v702
        %v732 = vsel %vm707, 0, %v703
        %v734 = vsel %vm707, 0, %v704
        %v736 = vsel %vm707, 0, %v705
        %v738 = vsel %vm707, 0, %v706
        %739 = vrot.lane.b32.xlu0 0, 64
        %v740 = vpop.permute.xlu0 %739
        %741 = vrot.lane.b32.xlu0 %v661, 64
        %v742 = vpop.permute.xlu0 %741
        %743 = vrot.lane.b32.xlu0 %v662, 64
        %v744 = vpop.permute.xlu0 %743
        %745 = vrot.lane.b32.xlu0 %v663, 64
        %v746 = vpop.permute.xlu0 %745
        %747 = vrot.lane.b32.xlu0 %v664, 64
        %v748 = vpop.permute.xlu0 %747
        %749 = vrot.lane.b32.xlu0 %v665, 64
        %v750 = vpop.permute.xlu0 %749
        %751 = vrot.lane.b32.xlu0 %v666, 64
        %v752 = vpop.permute.xlu0 %751
        %753 = vrot.lane.b32.xlu0 %v667, 64
        %v754 = vpop.permute.xlu0 %753
        %755 = vrot.lane.b32.xlu0 %v668, 64
        %v756 = vpop.permute.xlu0 %755
        %757 = vrot.lane.b32.xlu0 %v669, 64
        %v758 = vpop.permute.xlu0 %757
        %759 = vrot.lane.b32.xlu0 %v670, 64
        %v760 = vpop.permute.xlu0 %759
        %761 = vrot.lane.b32.xlu0 %v671, 64
        %v762 = vpop.permute.xlu0 %761
        %763 = vrot.lane.b32.xlu0 %v672, 64
        %v764 = vpop.permute.xlu0 %763
        %765 = vrot.lane.b32.xlu0 %v673, 64
        %v766 = vpop.permute.xlu0 %765
        %767 = vrot.lane.b32.xlu0 %v674, 64
        %v768 = vpop.permute.xlu0 %767
        %v770 = vsel %vm339, %v710, %v740
        %v773 = vsel %vm339, %v712, %v742
        %v776 = vsel %vm339, %v714, %v744
        %v779 = vsel %vm339, %v716, %v746
        %v782 = vsel %vm339, %v718, %v748
        %v785 = vsel %vm339, %v720, %v750
        %v788 = vsel %vm339, %v722, %v752
        %v791 = vsel %vm339, %v724, %v754
        %v794 = vsel %vm339, %v726, %v756
        %v797 = vsel %vm339, %v728, %v758
        %v800 = vsel %vm339, %v730, %v760
        %v803 = vsel %vm339, %v732, %v762
        %v806 = vsel %vm339, %v734, %v764
        %v809 = vsel %vm339, %v736, %v766
        %v812 = vsel %vm339, %v738, %v768
        %814 = vst [vmem:[#allocation2] sm:$0xff] %v770
        %815 = vst [vmem:[#allocation2 + $0x28] sm:$0xff] %v770
        %816 = vst [vmem:[#allocation2 + $0x50] sm:$0xff] %v773
        %817 = vst [vmem:[#allocation2 + $0x78] sm:$0xff] %v776
        %818 = vst [vmem:[#allocation2 + $0xa0] sm:$0xff] %v779
        %819 = vst [vmem:[#allocation2 + $0xc8] sm:$0xff] %v782
        %820 = vst [vmem:[#allocation2 + $0xf0] sm:$0xff] %v785
        %821 = vst [vmem:[#allocation2 + $0x118] sm:$0xff] %v788
        %822 = vst [vmem:[#allocation2 + $0x140] sm:$0xff] %v791
        %823 = vst [vmem:[#allocation2 + $0x168] sm:$0xff] %v794
        %824 = vst [vmem:[#allocation2 + $0x190] sm:$0xff] %v797
        %825 = vst [vmem:[#allocation2 + $0x1b8] sm:$0xff] %v800
        %826 = vst [vmem:[#allocation2 + $0x1e0] sm:$0xff] %v803
        %827 = vst [vmem:[#allocation2 + $0x208] sm:$0xff] %v806
        %828 = vst [vmem:[#allocation2 + $0x230] sm:$0xff] %v809
        %829 = vst [vmem:[#allocation2 + $0x258] sm:$0xff] %v812
        %v830 = vrot.slane 0, 1
        %v831 = vrot.slane %v661, 1
        %v832 = vrot.slane %v662, 1
        %v833 = vrot.slane %v663, 1
        %v834 = vrot.slane %v664, 1
        %v835 = vrot.slane %v665, 1
        %v836 = vrot.slane %v666, 1
        %v837 = vrot.slane %v667, 1
        %v838 = vrot.slane %v668, 1
        %v839 = vrot.slane %v669, 1
        %v840 = vrot.slane %v670, 1
        %v841 = vrot.slane %v671, 1
        %v842 = vrot.slane %v672, 1
        %v843 = vrot.slane %v673, 1
        %v844 = vrot.slane %v674, 1
        %vm845 = vcmask 1046528
        %v847 = vsel %vm845, %v830, 0
        %v849 = vsel %vm845, %v831, 0
        %v851 = vsel %vm845, %v832, 0
        %v853 = vsel %vm845, %v833, 0
        %v855 = vsel %vm845, %v834, 0
        %v857 = vsel %vm845, %v835, 0
        %v859 = vsel %vm845, %v836, 0
        %v861 = vsel %vm845, %v837, 0
        %v863 = vsel %vm845, %v838, 0
        %v865 = vsel %vm845, %v839, 0
        %v867 = vsel %vm845, %v840, 0
        %v869 = vsel %vm845, %v841, 0
        %v871 = vsel %vm845, %v842, 0
        %v873 = vsel %vm845, %v843, 0
        %v875 = vsel %vm845, %v844, 0
        %v878 = vrot.slane %v675, 7
        %v879 = vrot.slane %v676, 7
        %v881 = vsel %vm707, 0, %v878
        %v883 = vsel %vm707, 0, %v879
        %900 = vrot.lane.b32.xlu0 %v712, 64
        %v901 = vpop.permute.xlu0 %900
        %902 = vrot.lane.b32.xlu0 %v714, 64
        %v903 = vpop.permute.xlu0 %902
        %904 = vrot.lane.b32.xlu0 %v716, 64
        %v905 = vpop.permute.xlu0 %904
        %906 = vrot.lane.b32.xlu0 %v718, 64
        %v907 = vpop.permute.xlu0 %906
        %908 = vrot.lane.b32.xlu0 %v720, 64
        %v909 = vpop.permute.xlu0 %908
        %910 = vrot.lane.b32.xlu0 %v722, 64
        %v911 = vpop.permute.xlu0 %910
        %912 = vrot.lane.b32.xlu0 %v724, 64
        %v913 = vpop.permute.xlu0 %912
        %914 = vrot.lane.b32.xlu0 %v726, 64
        %v915 = vpop.permute.xlu0 %914
        %916 = vrot.lane.b32.xlu0 %v728, 64
        %v917 = vpop.permute.xlu0 %916
        %918 = vrot.lane.b32.xlu0 %v730, 64
        %v919 = vpop.permute.xlu0 %918
        %920 = vrot.lane.b32.xlu0 %v732, 64
        %v921 = vpop.permute.xlu0 %920
        %922 = vrot.lane.b32.xlu0 %v734, 64
        %v923 = vpop.permute.xlu0 %922
        %924 = vrot.lane.b32.xlu0 %v736, 64
        %v925 = vpop.permute.xlu0 %924
        %926 = vrot.lane.b32.xlu0 %v738, 64
        %v927 = vpop.permute.xlu0 %926
        %928 = vrot.lane.b32.xlu0 %v881, 64
        %v929 = vpop.permute.xlu0 %928
        %930 = vrot.lane.b32.xlu0 %v883, 64
        %v931 = vpop.permute.xlu0 %930
        %v933 = vsel %vm339, %v847, %v901
        %v936 = vsel %vm339, %v847, %v903
        %v939 = vsel %vm339, %v849, %v905
        %v942 = vsel %vm339, %v851, %v907
        %v945 = vsel %vm339, %v853, %v909
        %v948 = vsel %vm339, %v855, %v911
        %v951 = vsel %vm339, %v857, %v913
        %v954 = vsel %vm339, %v859, %v915
        %v957 = vsel %vm339, %v861, %v917
        %v960 = vsel %vm339, %v863, %v919
        %v963 = vsel %vm339, %v865, %v921
        %v966 = vsel %vm339, %v867, %v923
        %v969 = vsel %vm339, %v869, %v925
        %v972 = vsel %vm339, %v871, %v927
        %v975 = vsel %vm339, %v873, %v929
        %v978 = vsel %vm339, %v875, %v931
        %980 = vst [vmem:[#allocation2 + $0x8] sm:$0xff] %v933
        %981 = vst [vmem:[#allocation2 + $0x30] sm:$0xff] %v936
        %982 = vst [vmem:[#allocation2 + $0x58] sm:$0xff] %v939
        %983 = vst [vmem:[#allocation2 + $0x80] sm:$0xff] %v942
        %984 = vst [vmem:[#allocation2 + $0xa8] sm:$0xff] %v945
        %985 = vst [vmem:[#allocation2 + $0xd0] sm:$0xff] %v948
        %986 = vst [vmem:[#allocation2 + $0xf8] sm:$0xff] %v951
        %987 = vst [vmem:[#allocation2 + $0x120] sm:$0xff] %v954
        %988 = vst [vmem:[#allocation2 + $0x148] sm:$0xff] %v957
        %989 = vst [vmem:[#allocation2 + $0x170] sm:$0xff] %v960
        %990 = vst [vmem:[#allocation2 + $0x198] sm:$0xff] %v963
        %991 = vst [vmem:[#allocation2 + $0x1c0] sm:$0xff] %v966
        %992 = vst [vmem:[#allocation2 + $0x1e8] sm:$0xff] %v969
        %993 = vst [vmem:[#allocation2 + $0x210] sm:$0xff] %v972
        %994 = vst [vmem:[#allocation2 + $0x238] sm:$0xff] %v975
        %995 = vst [vmem:[#allocation2 + $0x260] sm:$0xff] %v978
        %v996 = vrot.slane %v675, 1
        %v997 = vrot.slane %v676, 1
        %v999 = vsel %vm845, %v996, 0
        %v1001 = vsel %vm845, %v997, 0
        %1018 = vrot.lane.b32.xlu0 %v849, 64
        %v1019 = vpop.permute.xlu0 %1018
        %1020 = vrot.lane.b32.xlu0 %v851, 64
        %v1021 = vpop.permute.xlu0 %1020
        %1022 = vrot.lane.b32.xlu0 %v853, 64
        %v1023 = vpop.permute.xlu0 %1022
        %1024 = vrot.lane.b32.xlu0 %v855, 64
        %v1025 = vpop.permute.xlu0 %1024
        %1026 = vrot.lane.b32.xlu0 %v857, 64
        %v1027 = vpop.permute.xlu0 %1026
        %1028 = vrot.lane.b32.xlu0 %v859, 64
        %v1029 = vpop.permute.xlu0 %1028
        %1030 = vrot.lane.b32.xlu0 %v861, 64
        %v1031 = vpop.permute.xlu0 %1030
        %1032 = vrot.lane.b32.xlu0 %v863, 64
        %v1033 = vpop.permute.xlu0 %1032
        %1034 = vrot.lane.b32.xlu0 %v865, 64
        %v1035 = vpop.permute.xlu0 %1034
        %1036 = vrot.lane.b32.xlu0 %v867, 64
        %v1037 = vpop.permute.xlu0 %1036
        %1038 = vrot.lane.b32.xlu0 %v869, 64
        %v1039 = vpop.permute.xlu0 %1038
        %1040 = vrot.lane.b32.xlu0 %v871, 64
        %v1041 = vpop.permute.xlu0 %1040
        %1042 = vrot.lane.b32.xlu0 %v873, 64
        %v1043 = vpop.permute.xlu0 %1042
        %1044 = vrot.lane.b32.xlu0 %v875, 64
        %v1045 = vpop.permute.xlu0 %1044
        %1046 = vrot.lane.b32.xlu0 %v999, 64
        %v1047 = vpop.permute.xlu0 %1046
        %1048 = vrot.lane.b32.xlu0 %v1001, 64
        %v1049 = vpop.permute.xlu0 %1048
        %v1052 = vsel %vm339, %v661, %v1019
        %v1056 = vsel %vm339, %v662, %v1021
        %v1060 = vsel %vm339, %v663, %v1023
        %v1064 = vsel %vm339, %v664, %v1025
        %v1068 = vsel %vm339, %v665, %v1027
        %v1072 = vsel %vm339, %v666, %v1029
        %v1076 = vsel %vm339, %v667, %v1031
        %v1080 = vsel %vm339, %v668, %v1033
        %v1084 = vsel %vm339, %v669, %v1035
        %v1088 = vsel %vm339, %v670, %v1037
        %v1092 = vsel %vm339, %v671, %v1039
        %v1096 = vsel %vm339, %v672, %v1041
        %v1100 = vsel %vm339, %v673, %v1043
        %v1104 = vsel %vm339, %v674, %v1045
        %v1108 = vsel %vm339, %v675, %v1047
        %v1112 = vsel %vm339, %v676, %v1049
        %1114 = vst [vmem:[#allocation2 + $0x10] sm:$0xff] %v1052
        %1115 = vst [vmem:[#allocation2 + $0x38] sm:$0xff] %v1056
        %1116 = vst [vmem:[#allocation2 + $0x60] sm:$0xff] %v1060
        %1117 = vst [vmem:[#allocation2 + $0x88] sm:$0xff] %v1064
        %1118 = vst [vmem:[#allocation2 + $0xb0] sm:$0xff] %v1068
        %1119 = vst [vmem:[#allocation2 + $0xd8] sm:$0xff] %v1072
        %1120 = vst [vmem:[#allocation2 + $0x100] sm:$0xff] %v1076
        %1121 = vst [vmem:[#allocation2 + $0x128] sm:$0xff] %v1080
        %1122 = vst [vmem:[#allocation2 + $0x150] sm:$0xff] %v1084
        %1123 = vst [vmem:[#allocation2 + $0x178] sm:$0xff] %v1088
        %1124 = vst [vmem:[#allocation2 + $0x1a0] sm:$0xff] %v1092
        %1125 = vst [vmem:[#allocation2 + $0x1c8] sm:$0xff] %v1096
        %1126 = vst [vmem:[#allocation2 + $0x1f0] sm:$0xff] %v1100
        %1127 = vst [vmem:[#allocation2 + $0x218] sm:$0xff] %v1104
        %1128 = vst [vmem:[#allocation2 + $0x240] sm:$0xff] %v1108
        %1129 = vst [vmem:[#allocation2 + $0x268] sm:$0xff] %v1112
        %1130 = vrot.lane.b32.xlu0 %v675, 64
        %v1131 = vpop.permute.xlu0 %1130
        %1132 = vrot.lane.b32.xlu0 %v676, 64
        %v1133 = vpop.permute.xlu0 %1132
        %v1135 = vsel %vm339, %v881, %v1131
        %v1138 = vsel %vm339, %v883, %v1133
        %1140 = vst [vmem:[#allocation2 + $0x18] sm:$0xff] %v779
        %1141 = vst [vmem:[#allocation2 + $0x40] sm:$0xff] %v782
        %1142 = vst [vmem:[#allocation2 + $0x68] sm:$0xff] %v785
        %1143 = vst [vmem:[#allocation2 + $0x90] sm:$0xff] %v788
        %1144 = vst [vmem:[#allocation2 + $0xb8] sm:$0xff] %v791
        %1145 = vst [vmem:[#allocation2 + $0xe0] sm:$0xff] %v794
        %1146 = vst [vmem:[#allocation2 + $0x108] sm:$0xff] %v797
        %1147 = vst [vmem:[#allocation2 + $0x130] sm:$0xff] %v800
        %1148 = vst [vmem:[#allocation2 + $0x158] sm:$0xff] %v803
        %1149 = vst [vmem:[#allocation2 + $0x180] sm:$0xff] %v806
        %1150 = vst [vmem:[#allocation2 + $0x1a8] sm:$0xff] %v809
        %1151 = vst [vmem:[#allocation2 + $0x1d0] sm:$0xff] %v812
        %1152 = vst [vmem:[#allocation2 + $0x1f8] sm:$0xff] %v1135
        %1153 = vst [vmem:[#allocation2 + $0x220] sm:$0xff] %v1138
        %1154 = vst [vmem:[#allocation2 + $0x248] sm:$0xff] %v770
        %1155 = vst [vmem:[#allocation2 + $0x270] sm:$0xff] %v770
        %v1156 = vsel %vm339, %v853, 0
        %v1158 = vsel %vm339, %v855, 0
        %v1160 = vsel %vm339, %v857, 0
        %v1162 = vsel %vm339, %v859, 0
        %v1164 = vsel %vm339, %v861, 0
        %v1166 = vsel %vm339, %v863, 0
        %v1168 = vsel %vm339, %v865, 0
        %v1170 = vsel %vm339, %v867, 0
        %v1172 = vsel %vm339, %v869, 0
        %v1174 = vsel %vm339, %v871, 0
        %v1176 = vsel %vm339, %v873, 0
        %v1178 = vsel %vm339, %v875, 0
        %v1180 = vsel %vm339, %v999, 0
        %v1182 = vsel %vm339, %v1001, 0
        %v1184 = vsel %vm339, %v847, 0
        %1186 = vst [vmem:[#allocation2 + $0x20] sm:$0xff] %v1156
        %1187 = vst [vmem:[#allocation2 + $0x48] sm:$0xff] %v1158
        %1188 = vst [vmem:[#allocation2 + $0x70] sm:$0xff] %v1160
        %1189 = vst [vmem:[#allocation2 + $0x98] sm:$0xff] %v1162
        %1190 = vst [vmem:[#allocation2 + $0xc0] sm:$0xff] %v1164
        %1191 = vst [vmem:[#allocation2 + $0xe8] sm:$0xff] %v1166
        %1192 = vst [vmem:[#allocation2 + $0x110] sm:$0xff] %v1168
        %1193 = vst [vmem:[#allocation2 + $0x138] sm:$0xff] %v1170
        %1194 = vst [vmem:[#allocation2 + $0x160] sm:$0xff] %v1172
        %1195 = vst [vmem:[#allocation2 + $0x188] sm:$0xff] %v1174
        %1196 = vst [vmem:[#allocation2 + $0x1b0] sm:$0xff] %v1176
        %1197 = vst [vmem:[#allocation2 + $0x1d8] sm:$0xff] %v1178
        %1198 = vst [vmem:[#allocation2 + $0x200] sm:$0xff] %v1180
        %1199 = vst [vmem:[#allocation2 + $0x228] sm:$0xff] %v1182
        %1200 = vst [vmem:[#allocation2 + $0x250] sm:$0xff] %v1184
        %1201 = vst [vmem:[#allocation2 + $0x278] sm:$0xff] %v1184
        %v1202 = vld [vmem:[#allocation2] sm:$0xff]
        %v1203 = vld [vmem:[#allocation2 + $0x8] sm:$0xff]
        %v1204 = vld [vmem:[#allocation2 + $0x10] sm:$0xff]
        %v1205 = vld [vmem:[#allocation2 + $0x18] sm:$0xff]
        %v1206 = vld [vmem:[#allocation2 + $0x20] sm:$0xff]
        %v1207 = vld [vmem:[#allocation2 + $0x28] sm:$0xff]
        %v1208 = vld [vmem:[#allocation2 + $0x30] sm:$0xff]
        %v1209 = vld [vmem:[#allocation2 + $0x38] sm:$0xff]
        %v1210 = vld [vmem:[#allocation2 + $0x40] sm:$0xff]
        %v1211 = vld [vmem:[#allocation2 + $0x48] sm:$0xff]
        %v1212 = vld [vmem:[#allocation2 + $0x50] sm:$0xff]
        %v1213 = vld [vmem:[#allocation2 + $0x58] sm:$0xff]
        %v1214 = vld [vmem:[#allocation2 + $0x60] sm:$0xff]
        %v1215 = vld [vmem:[#allocation2 + $0x68] sm:$0xff]
        %v1216 = vld [vmem:[#allocation2 + $0x70] sm:$0xff]
        %v1217 = vld [vmem:[#allocation2 + $0x78] sm:$0xff]
        %v1218 = vld [vmem:[#allocation2 + $0x80] sm:$0xff]
        %v1219 = vld [vmem:[#allocation2 + $0x88] sm:$0xff]
        %v1220 = vld [vmem:[#allocation2 + $0x90] sm:$0xff]
        %v1221 = vld [vmem:[#allocation2 + $0x98] sm:$0xff]
        %v1222 = vld [vmem:[#allocation2 + $0xa0] sm:$0xff]
        %v1223 = vld [vmem:[#allocation2 + $0xa8] sm:$0xff]
        %v1224 = vld [vmem:[#allocation2 + $0xb0] sm:$0xff]
        %v1225 = vld [vmem:[#allocation2 + $0xb8] sm:$0xff]
        %v1226 = vld [vmem:[#allocation2 + $0xc0] sm:$0xff]
        %v1227 = vld [vmem:[#allocation2 + $0xc8] sm:$0xff]
        %v1228 = vld [vmem:[#allocation2 + $0xd0] sm:$0xff]
        %v1229 = vld [vmem:[#allocation2 + $0xd8] sm:$0xff]
        %v1230 = vld [vmem:[#allocation2 + $0xe0] sm:$0xff]
        %v1231 = vld [vmem:[#allocation2 + $0xe8] sm:$0xff]
        %v1232 = vld [vmem:[#allocation2 + $0xf0] sm:$0xff]
        %v1233 = vld [vmem:[#allocation2 + $0xf8] sm:$0xff]
        %v1234 = vld [vmem:[#allocation2 + $0x100] sm:$0xff]
        %v1235 = vld [vmem:[#allocation2 + $0x108] sm:$0xff]
        %v1236 = vld [vmem:[#allocation2 + $0x110] sm:$0xff]
        %v1237 = vld [vmem:[#allocation2 + $0x118] sm:$0xff]
        %v1238 = vld [vmem:[#allocation2 + $0x120] sm:$0xff]
        %v1239 = vld [vmem:[#allocation2 + $0x128] sm:$0xff]
        %v1240 = vld [vmem:[#allocation2 + $0x130] sm:$0xff]
        %v1241 = vld [vmem:[#allocation2 + $0x138] sm:$0xff]
        %v1242 = vld [vmem:[#allocation2 + $0x140] sm:$0xff]
        %v1243 = vld [vmem:[#allocation2 + $0x148] sm:$0xff]
        %v1244 = vld [vmem:[#allocation2 + $0x150] sm:$0xff]
        %v1245 = vld [vmem:[#allocation2 + $0x158] sm:$0xff]
        %v1246 = vld [vmem:[#allocation2 + $0x160] sm:$0xff]
        %v1247 = vld [vmem:[#allocation2 + $0x168] sm:$0xff]
        %v1248 = vld [vmem:[#allocation2 + $0x170] sm:$0xff]
        %v1249 = vld [vmem:[#allocation2 + $0x178] sm:$0xff]
        %v1250 = vld [vmem:[#allocation2 + $0x180] sm:$0xff]
        %v1251 = vld [vmem:[#allocation2 + $0x188] sm:$0xff]
        %v1252 = vld [vmem:[#allocation2 + $0x190] sm:$0xff]
        %v1253 = vld [vmem:[#allocation2 + $0x198] sm:$0xff]
        %v1254 = vld [vmem:[#allocation2 + $0x1a0] sm:$0xff]
        %v1255 = vld [vmem:[#allocation2 + $0x1a8] sm:$0xff]
        %v1256 = vld [vmem:[#allocation2 + $0x1b0] sm:$0xff]
        %v1257 = vld [vmem:[#allocation2 + $0x1b8] sm:$0xff]
        %v1258 = vld [vmem:[#allocation2 + $0x1c0] sm:$0xff]
        %v1259 = vld [vmem:[#allocation2 + $0x1c8] sm:$0xff]
        %v1260 = vld [vmem:[#allocation2 + $0x1d0] sm:$0xff]
        %v1261 = vld [vmem:[#allocation2 + $0x1d8] sm:$0xff]
        %v1262 = vld [vmem:[#allocation2 + $0x1e0] sm:$0xff]
        %v1263 = vld [vmem:[#allocation2 + $0x1e8] sm:$0xff]
        %v1264 = vld [vmem:[#allocation2 + $0x1f0] sm:$0xff]
        %v1265 = vld [vmem:[#allocation2 + $0x1f8] sm:$0xff]
        %v1266 = vld [vmem:[#allocation2 + $0x200] sm:$0xff]
        %v1267 = vld [vmem:[#allocation2 + $0x208] sm:$0xff]
        %v1268 = vld [vmem:[#allocation2 + $0x210] sm:$0xff]
        %v1269 = vld [vmem:[#allocation2 + $0x218] sm:$0xff]
        %v1270 = vld [vmem:[#allocation2 + $0x220] sm:$0xff]
        %v1271 = vld [vmem:[#allocation2 + $0x228] sm:$0xff]
        %v1272 = vld [vmem:[#allocation2 + $0x230] sm:$0xff]
        %v1273 = vld [vmem:[#allocation2 + $0x238] sm:$0xff]
        %v1274 = vld [vmem:[#allocation2 + $0x240] sm:$0xff]
        %v1275 = vld [vmem:[#allocation2 + $0x248] sm:$0xff]
        %v1276 = vld [vmem:[#allocation2 + $0x250] sm:$0xff]
        %v1277 = vld [vmem:[#allocation2 + $0x258] sm:$0xff]
        %v1278 = vld [vmem:[#allocation2 + $0x260] sm:$0xff]
        %v1279 = vld [vmem:[#allocation2 + $0x268] sm:$0xff]
        %v1280 = vld [vmem:[#allocation2 + $0x270] sm:$0xff]
        %v1281 = vld [vmem:[#allocation2 + $0x278] sm:$0xff]
        %v1282 = vld [vmem:[%s1] sm:$0xf]
        %v1283 = vld [vmem:[%s1 + $0x4] sm:$0xf]
        %v1284 = vld [vmem:[%s1 + $0x8] sm:$0xf]
        %v1285 = vld [vmem:[%s1 + $0xc] sm:$0xf]
        %v1286 = vld [vmem:[%s1 + $0x10] sm:$0xf]
        %v1287 = vld [vmem:[%s1 + $0x14] sm:$0xf]
        %v1288 = vld [vmem:[%s1 + $0x18] sm:$0xf]
        %v1289 = vld [vmem:[%s1 + $0x1c] sm:$0xf]
        %v1290 = vld [vmem:[%s1 + $0x20] sm:$0xf]
        %v1291 = vld [vmem:[%s1 + $0x24] sm:$0xf]
        %v1292 = vld [vmem:[%s1 + $0x28] sm:$0xf]
        %v1293 = vld [vmem:[%s1 + $0x2c] sm:$0xf]
        %v1294 = vld [vmem:[%s1 + $0x30] sm:$0xf]
        %v1295 = vld [vmem:[%s1 + $0x34] sm:$0xf]
        %v1296 = vld [vmem:[%s1 + $0x38] sm:$0xf]
        %v1297 = vld [vmem:[%s1 + $0x3c] sm:$0xf]
        %v1298 = vld [vmem:[%s1 + $0x40] sm:$0xf]
        %v1299 = vld [vmem:[%s1 + $0x44] sm:$0xf]
        %v1300 = vld [vmem:[%s1 + $0x48] sm:$0xf]
        %v1301 = vld [vmem:[%s1 + $0x4c] sm:$0xf]
        %v1302 = vld [vmem:[%s1 + $0x50] sm:$0xf]
        %v1303 = vld [vmem:[%s1 + $0x54] sm:$0xf]
        %v1304 = vld [vmem:[%s1 + $0x58] sm:$0xf]
        %v1305 = vld [vmem:[%s1 + $0x5c] sm:$0xf]
        %v1306 = vld [vmem:[%s1 + $0x60] sm:$0xf]
        %v1307 = vld [vmem:[%s1 + $0x64] sm:$0xf]
        %v1308 = vld [vmem:[%s1 + $0x68] sm:$0xf]
        %v1309 = vld [vmem:[%s1 + $0x6c] sm:$0xf]
        %v1310 = vld [vmem:[%s1 + $0x70] sm:$0xf]
        %v1311 = vld [vmem:[%s1 + $0x74] sm:$0xf]
        %v1312 = vld [vmem:[%s1 + $0x78] sm:$0xf]
        %v1313 = vld [vmem:[%s1 + $0x7c] sm:$0xf]
        %v1314 = vld [vmem:[%s1 + $0x80] sm:$0xf]
        %v1315 = vld [vmem:[%s1 + $0x84] sm:$0xf]
        %v1316 = vld [vmem:[%s1 + $0x88] sm:$0xf]
        %v1317 = vld [vmem:[%s1 + $0x8c] sm:$0xf]
        %v1318 = vld [vmem:[%s1 + $0x90] sm:$0xf]
        %v1319 = vld [vmem:[%s1 + $0x94] sm:$0xf]
        %v1320 = vld [vmem:[%s1 + $0x98] sm:$0xf]
        %v1321 = vld [vmem:[%s1 + $0x9c] sm:$0xf]
        %v1322 = vld [vmem:[%s1 + $0xa0] sm:$0xf]
        %v1323 = vld [vmem:[%s1 + $0xa4] sm:$0xf]
        %v1324 = vld [vmem:[%s1 + $0xa8] sm:$0xf]
        %v1325 = vld [vmem:[%s1 + $0xac] sm:$0xf]
        %v1326 = vld [vmem:[%s1 + $0xb0] sm:$0xf]
        %v1327 = vld [vmem:[%s1 + $0xb4] sm:$0xf]
        %v1328 = vld [vmem:[%s1 + $0xb8] sm:$0xf]
        %v1329 = vld [vmem:[%s1 + $0xbc] sm:$0xf]
        %v1330 = vld [vmem:[%s1 + $0xc0] sm:$0xf]
        %v1331 = vld [vmem:[%s1 + $0xc4] sm:$0xf]
        %v1332 = vld [vmem:[%s1 + $0xc8] sm:$0xf]
        %v1333 = vld [vmem:[%s1 + $0xcc] sm:$0xf]
        %v1334 = vld [vmem:[%s1 + $0xd0] sm:$0xf]
        %v1335 = vld [vmem:[%s1 + $0xd4] sm:$0xf]
        %v1336 = vld [vmem:[%s1 + $0xd8] sm:$0xf]
        %v1337 = vld [vmem:[%s1 + $0xdc] sm:$0xf]
        %v1338 = vld [vmem:[%s1 + $0xe0] sm:$0xf]
        %v1339 = vld [vmem:[%s1 + $0xe4] sm:$0xf]
        %v1340 = vld [vmem:[%s1 + $0xe8] sm:$0xf]
        %v1341 = vld [vmem:[%s1 + $0xec] sm:$0xf]
        %v1342 = vld [vmem:[%s1 + $0xf0] sm:$0xf]
        %v1343 = vld [vmem:[%s1 + $0xf4] sm:$0xf]
        %v1344 = vld [vmem:[%s1 + $0xf8] sm:$0xf]
        %v1345 = vld [vmem:[%s1 + $0xfc] sm:$0xf]
        %v1346 = vld [vmem:[%s1 + $0x100] sm:$0xf]
        %v1347 = vld [vmem:[%s1 + $0x104] sm:$0xf]
        %v1348 = vld [vmem:[%s1 + $0x108] sm:$0xf]
        %v1349 = vld [vmem:[%s1 + $0x10c] sm:$0xf]
        %v1350 = vld [vmem:[%s1 + $0x110] sm:$0xf]
        %v1351 = vld [vmem:[%s1 + $0x114] sm:$0xf]
        %v1352 = vld [vmem:[%s1 + $0x118] sm:$0xf]
        %v1353 = vld [vmem:[%s1 + $0x11c] sm:$0xf]
        %v1354 = vld [vmem:[%s1 + $0x120] sm:$0xf]
        %v1355 = vld [vmem:[%s1 + $0x124] sm:$0xf]
        %v1356 = vld [vmem:[%s1 + $0x128] sm:$0xf]
        %v1357 = vld [vmem:[%s1 + $0x12c] sm:$0xf]
        %v1358 = vld [vmem:[%s1 + $0x130] sm:$0xf]
        %v1359 = vld [vmem:[%s1 + $0x134] sm:$0xf]
        %v1360 = vld [vmem:[%s1 + $0x138] sm:$0xf]
        %v1361 = vld [vmem:[%s1 + $0x13c] sm:$0xf]
        %v1442 = vunpack.c.l.b16 %v1282
        %v1443 = vunpack.c.l.b16 %v1283
        %v1444 = vunpack.c.l.b16 %v1284
        %v1445 = vunpack.c.l.b16 %v1285
        %v1446 = vunpack.c.l.b16 %v1286
        %v1447 = vunpack.c.l.b16 %v1287
        %v1448 = vunpack.c.l.b16 %v1288
        %v1449 = vunpack.c.l.b16 %v1289
        %v1450 = vunpack.c.l.b16 %v1290
        %v1451 = vunpack.c.l.b16 %v1291
        %v1452 = vunpack.c.l.b16 %v1292
        %v1453 = vunpack.c.l.b16 %v1293
        %v1454 = vunpack.c.l.b16 %v1294
        %v1455 = vunpack.c.l.b16 %v1295
        %v1456 = vunpack.c.l.b16 %v1296
        %v1457 = vunpack.c.l.b16 %v1297
        %v1458 = vunpack.c.l.b16 %v1298
        %v1459 = vunpack.c.l.b16 %v1299
        %v1460 = vunpack.c.l.b16 %v1300
        %v1461 = vunpack.c.l.b16 %v1301
        %v1462 = vunpack.c.l.b16 %v1302
        %v1463 = vunpack.c.l.b16 %v1303
        %v1464 = vunpack.c.l.b16 %v1304
        %v1465 = vunpack.c.l.b16 %v1305
        %v1466 = vunpack.c.l.b16 %v1306
        %v1467 = vunpack.c.l.b16 %v1307
        %v1468 = vunpack.c.l.b16 %v1308
        %v1469 = vunpack.c.l.b16 %v1309
        %v1470 = vunpack.c.l.b16 %v1310
        %v1471 = vunpack.c.l.b16 %v1311
        %v1472 = vunpack.c.l.b16 %v1312
        %v1473 = vunpack.c.l.b16 %v1313
        %v1474 = vunpack.c.l.b16 %v1314
        %v1475 = vunpack.c.l.b16 %v1315
        %v1476 = vunpack.c.l.b16 %v1316
        %v1477 = vunpack.c.l.b16 %v1317
        %v1478 = vunpack.c.l.b16 %v1318
        %v1479 = vunpack.c.l.b16 %v1319
        %v1480 = vunpack.c.l.b16 %v1320
        %v1481 = vunpack.c.l.b16 %v1321
        %v1482 = vunpack.c.l.b16 %v1322
        %v1483 = vunpack.c.l.b16 %v1323
        %v1484 = vunpack.c.l.b16 %v1324
        %v1485 = vunpack.c.l.b16 %v1325
        %v1486 = vunpack.c.l.b16 %v1326
        %v1487 = vunpack.c.l.b16 %v1327
        %v1488 = vunpack.c.l.b16 %v1328
        %v1489 = vunpack.c.l.b16 %v1329
        %v1490 = vunpack.c.l.b16 %v1330
        %v1491 = vunpack.c.l.b16 %v1331
        %v1492 = vunpack.c.l.b16 %v1332
        %v1493 = vunpack.c.l.b16 %v1333
        %v1494 = vunpack.c.l.b16 %v1334
        %v1495 = vunpack.c.l.b16 %v1335
        %v1496 = vunpack.c.l.b16 %v1336
        %v1497 = vunpack.c.l.b16 %v1337
        %v1498 = vunpack.c.l.b16 %v1338
        %v1499 = vunpack.c.l.b16 %v1339
        %v1500 = vunpack.c.l.b16 %v1340
        %v1501 = vunpack.c.l.b16 %v1341
        %v1502 = vunpack.c.l.b16 %v1342
        %v1503 = vunpack.c.l.b16 %v1343
        %v1504 = vunpack.c.l.b16 %v1344
        %v1505 = vunpack.c.l.b16 %v1345
        %v1506 = vunpack.c.l.b16 %v1346
        %v1507 = vunpack.c.l.b16 %v1347
        %v1508 = vunpack.c.l.b16 %v1348
        %v1509 = vunpack.c.l.b16 %v1349
        %v1510 = vunpack.c.l.b16 %v1350
        %v1511 = vunpack.c.l.b16 %v1351
        %v1512 = vunpack.c.l.b16 %v1352
        %v1513 = vunpack.c.l.b16 %v1353
        %v1514 = vunpack.c.l.b16 %v1354
        %v1515 = vunpack.c.l.b16 %v1355
        %v1516 = vunpack.c.l.b16 %v1356
        %v1517 = vunpack.c.l.b16 %v1357
        %v1518 = vunpack.c.l.b16 %v1358
        %v1519 = vunpack.c.l.b16 %v1359
        %v1520 = vunpack.c.l.b16 %v1360
        %v1521 = vunpack.c.l.b16 %v1361
        %v1522 = vpack.c.b16 %v1443, %v1442
        %v1523 = vpack.c.b16 %v1445, %v1444
        %v1524 = vpack.c.b16 %v1447, %v1446
        %v1525 = vpack.c.b16 %v1449, %v1448
        %v1526 = vpack.c.b16 %v1451, %v1450
        %v1527 = vpack.c.b16 %v1453, %v1452
        %v1528 = vpack.c.b16 %v1455, %v1454
        %v1529 = vpack.c.b16 %v1457, %v1456
        %v1530 = vpack.c.b16 %v1459, %v1458
        %v1531 = vpack.c.b16 %v1461, %v1460
        %v1532 = vpack.c.b16 %v1463, %v1462
        %v1533 = vpack.c.b16 %v1465, %v1464
        %v1534 = vpack.c.b16 %v1467, %v1466
        %v1535 = vpack.c.b16 %v1469, %v1468
        %v1536 = vpack.c.b16 %v1471, %v1470
        %v1537 = vpack.c.b16 %v1473, %v1472
        %v1538 = vpack.c.b16 %v1475, %v1474
        %v1539 = vpack.c.b16 %v1477, %v1476
        %v1540 = vpack.c.b16 %v1479, %v1478
        %v1541 = vpack.c.b16 %v1481, %v1480
        %v1542 = vpack.c.b16 %v1483, %v1482
        %v1543 = vpack.c.b16 %v1485, %v1484
        %v1544 = vpack.c.b16 %v1487, %v1486
        %v1545 = vpack.c.b16 %v1489, %v1488
        %v1546 = vpack.c.b16 %v1491, %v1490
        %v1547 = vpack.c.b16 %v1493, %v1492
        %v1548 = vpack.c.b16 %v1495, %v1494
        %v1549 = vpack.c.b16 %v1497, %v1496
        %v1550 = vpack.c.b16 %v1499, %v1498
        %v1551 = vpack.c.b16 %v1501, %v1500
        %v1552 = vpack.c.b16 %v1503, %v1502
        %v1553 = vpack.c.b16 %v1505, %v1504
        %v1554 = vpack.c.b16 %v1507, %v1506
        %v1555 = vpack.c.b16 %v1509, %v1508
        %v1556 = vpack.c.b16 %v1511, %v1510
        %v1557 = vpack.c.b16 %v1513, %v1512
        %v1558 = vpack.c.b16 %v1515, %v1514
        %v1559 = vpack.c.b16 %v1517, %v1516
        %v1560 = vpack.c.b16 %v1519, %v1518
        %v1561 = vpack.c.b16 %v1521, %v1520
        %1602 = vmatprep.subr.bf16.mxu0 0
        %1603 = vmatpush1.bf16.msra.mxu0 %v1522
        %1604 = vmatprep.subr.bf16.mxu0 0
        %1605 = vmatpush1.bf16.msra.mxu0 %v1523
        %1606 = vmatprep.subr.bf16.mxu0 0
        %1607 = vmatpush1.bf16.msra.mxu0 %v1524
        %1608 = vmatprep.subr.bf16.mxu0 0
        %1609 = vmatpush1.bf16.msra.mxu0 %v1525
        %1610 = vmatprep.subr.bf16.mxu0 0
        %1611 = vmatpush1.bf16.msra.mxu0 %v1526
        %1612 = vmatprep.subr.bf16.mxu0 0
        %1613 = vmatpush1.bf16.msra.mxu0 %v1527
        %1614 = vmatprep.subr.bf16.mxu0 0
        %1615 = vmatpush1.bf16.msra.mxu0 %v1528
        %1616 = vmatprep.subr.bf16.mxu0 0
        %1617 = vmatpush1.bf16.msra.mxu0 %v1529
        %1618 = vmatprep.subr.bf16.mxu0 0
        %1619 = vmatpush1.bf16.msra.mxu0 %v1530
        %1620 = vmatprep.subr.bf16.mxu0 0
        %1621 = vmatpush1.bf16.msra.mxu0 %v1531
        %1622 = vmatprep.subr.bf16.mxu0 0
        %1623 = vmatpush1.bf16.msra.mxu0 %v1532
        %1624 = vmatprep.subr.bf16.mxu0 0
        %1625 = vmatpush1.bf16.msra.mxu0 %v1533
        %1626 = vmatprep.subr.bf16.mxu0 0
        %1627 = vmatpush1.bf16.msra.mxu0 %v1534
        %1628 = vmatprep.subr.bf16.mxu0 0
        %1629 = vmatpush1.bf16.msra.mxu0 %v1535
        %1630 = vmatprep.subr.bf16.mxu0 0
        %1631 = vmatpush1.bf16.msra.mxu0 %v1536
        %1632 = vmatprep.subr.bf16.mxu0 0
        %1633 = vmatpush1.bf16.msra.mxu0 %v1537
        %1634 = vmatprep.mubr.bf16.mxu0 %v1203
        %1635 = vmatmul.mubr.bf16.gmra.mrb[0].mxu0 %v1202
        %v1636 = vpop.f32.mrb[0].mxu0
        %v1637 = vadd.f32 0.0, %v1636
        %v1638 = vpop.f32.mrb[0].mxu0
        %v1639 = vpop.f32.mrb[0].mxu0
        %v1640 = vadd.f32 0.0, %v1639
        %v1641 = vpop.f32.mrb[0].mxu0
        %1642 = vmatprep.mubr.bf16.mxu0 %v1208
        %1643 = vmatmul.mubr.bf16.gmra.mrb[0].mxu0 %v1207
        %v1644 = vpop.f32.mrb[0].mxu0
        %v1645 = vadd.f32 0.0, %v1644
        %v1646 = vpop.f32.mrb[0].mxu0
        %v1647 = vpop.f32.mrb[0].mxu0
        %v1648 = vadd.f32 0.0, %v1647
        %v1649 = vpop.f32.mrb[0].mxu0
        %1650 = vmatprep.mubr.bf16.mxu0 %v1213
        %1651 = vmatmul.mubr.bf16.gmra.mrb[0].mxu0 %v1212
        %v1652 = vpop.f32.mrb[0].mxu0
        %v1653 = vadd.f32 0.0, %v1652
        %v1654 = vpop.f32.mrb[0].mxu0
        %v1655 = vpop.f32.mrb[0].mxu0
        %v1656 = vadd.f32 0.0, %v1655
        %v1657 = vpop.f32.mrb[0].mxu0
        %1658 = vmatprep.mubr.bf16.mxu0 %v1218
        %1659 = vmatmul.mubr.bf16.gmra.mrb[0].mxu0 %v1217
        %v1660 = vpop.f32.mrb[0].mxu0
        %v1661 = vadd.f32 0.0, %v1660
        %v1662 = vpop.f32.mrb[0].mxu0
        %v1663 = vpop.f32.mrb[0].mxu0
        %v1664 = vadd.f32 0.0, %v1663
        %v1665 = vpop.f32.mrb[0].mxu0
        %1666 = vmatprep.mubr.bf16.mxu0 %v1223
        %1667 = vmatmul.mubr.bf16.gmra.mrb[0].mxu0 %v1222
        %v1668 = vpop.f32.mrb[0].mxu0
        %v1669 = vadd.f32 0.0, %v1668
        %v1670 = vpop.f32.mrb[0].mxu0
        %v1671 = vpop.f32.mrb[0].mxu0
        %v1672 = vadd.f32 0.0, %v1671
        %v1673 = vpop.f32.mrb[0].mxu0
        %1674 = vmatprep.mubr.bf16.mxu0 %v1228
        %1675 = vmatmul.mubr.bf16.gmra.mrb[0].mxu0 %v1227
        %v1676 = vpop.f32.mrb[0].mxu0
        %v1677 = vadd.f32 0.0, %v1676
        %v1678 = vpop.f32.mrb[0].mxu0
        %v1679 = vpop.f32.mrb[0].mxu0
        %v1680 = vadd.f32 0.0, %v1679
        %v1681 = vpop.f32.mrb[0].mxu0
        %1682 = vmatprep.mubr.bf16.mxu0 %v1233
        %1683 = vmatmul.mubr.bf16.gmra.mrb[0].mxu0 %v1232
        %v1684 = vpop.f32.mrb[0].mxu0
        %v1685 = vadd.f32 0.0, %v1684
        %v1686 = vpop.f32.mrb[0].mxu0
        %v1687 = vpop.f32.mrb[0].mxu0
        %v1688 = vadd.f32 0.0, %v1687
        %v1689 = vpop.f32.mrb[0].mxu0
        %1690 = vmatprep.mubr.bf16.mxu0 %v1238
        %1691 = vmatmul.mubr.bf16.gmra.mrb[0].mxu0 %v1237
        %v1692 = vpop.f32.mrb[0].mxu0
        %v1693 = vadd.f32 0.0, %v1692
        %v1694 = vpop.f32.mrb[0].mxu0
        %v1695 = vpop.f32.mrb[0].mxu0
        %v1696 = vadd.f32 0.0, %v1695
        %v1697 = vpop.f32.mrb[0].mxu0
        %1698 = vmatprep.mubr.bf16.mxu0 %v1243
        %1699 = vmatmul.mubr.bf16.gmra.mrb[0].mxu0 %v1242
        %v1700 = vpop.f32.mrb[0].mxu0
        %v1701 = vadd.f32 0.0, %v1700
        %v1702 = vpop.f32.mrb[0].mxu0
        %v1703 = vpop.f32.mrb[0].mxu0
        %v1704 = vadd.f32 0.0, %v1703
        %v1705 = vpop.f32.mrb[0].mxu0
        %1706 = vmatprep.mubr.bf16.mxu0 %v1248
        %1707 = vmatmul.mubr.bf16.gmra.mrb[0].mxu0 %v1247
        %v1708 = vpop.f32.mrb[0].mxu0
        %v1709 = vadd.f32 0.0, %v1708
        %v1710 = vpop.f32.mrb[0].mxu0
        %v1711 = vpop.f32.mrb[0].mxu0
        %v1712 = vadd.f32 0.0, %v1711
        %v1713 = vpop.f32.mrb[0].mxu0
        %1714 = vmatprep.mubr.bf16.mxu0 %v1253
        %1715 = vmatmul.mubr.bf16.gmra.mrb[0].mxu0 %v1252
        %v1716 = vpop.f32.mrb[0].mxu0
        %v1717 = vadd.f32 0.0, %v1716
        %v1718 = vpop.f32.mrb[0].mxu0
        %v1719 = vpop.f32.mrb[0].mxu0
        %v1720 = vadd.f32 0.0, %v1719
        %v1721 = vpop.f32.mrb[0].mxu0
        %1722 = vmatprep.mubr.bf16.mxu0 %v1258
        %1723 = vmatmul.mubr.bf16.gmra.mrb[0].mxu0 %v1257
        %v1724 = vpop.f32.mrb[0].mxu0
        %v1725 = vadd.f32 0.0, %v1724
        %v1726 = vpop.f32.mrb[0].mxu0
        %v1727 = vpop.f32.mrb[0].mxu0
        %v1728 = vadd.f32 0.0, %v1727
        %v1729 = vpop.f32.mrb[0].mxu0
        %1730 = vmatprep.mubr.bf16.mxu0 %v1263
        %1731 = vmatmul.mubr.bf16.gmra.mrb[0].mxu0 %v1262
        %v1732 = vpop.f32.mrb[0].mxu0
        %v1733 = vadd.f32 0.0, %v1732
        %v1734 = vpop.f32.mrb[0].mxu0
        %v1735 = vpop.f32.mrb[0].mxu0
        %v1736 = vadd.f32 0.0, %v1735
        %v1737 = vpop.f32.mrb[0].mxu0
        %1738 = vmatprep.mubr.bf16.mxu0 %v1268
        %1739 = vmatmul.mubr.bf16.gmra.mrb[0].mxu0 %v1267
        %v1740 = vpop.f32.mrb[0].mxu0
        %v1741 = vadd.f32 0.0, %v1740
        %v1742 = vpop.f32.mrb[0].mxu0
        %v1743 = vpop.f32.mrb[0].mxu0
        %v1744 = vadd.f32 0.0, %v1743
        %v1745 = vpop.f32.mrb[0].mxu0
        %1746 = vmatprep.mubr.bf16.mxu0 %v1273
        %1747 = vmatmul.mubr.bf16.gmra.mrb[0].mxu0 %v1272
        %v1748 = vpop.f32.mrb[0].mxu0
        %v1749 = vadd.f32 0.0, %v1748
        %v1750 = vpop.f32.mrb[0].mxu0
        %v1751 = vpop.f32.mrb[0].mxu0
        %v1752 = vadd.f32 0.0, %v1751
        %v1753 = vpop.f32.mrb[0].mxu0
        %1754 = vmatprep.mubr.bf16.mxu0 %v1278
        %1755 = vmatmul.mubr.bf16.gmra.mrb[0].mxu0 %v1277
        %v1756 = vpop.f32.mrb[0].mxu0
        %v1757 = vadd.f32 0.0, %v1756
        %v1758 = vpop.f32.mrb[0].mxu0
        %v1759 = vpop.f32.mrb[0].mxu0
        %v1760 = vadd.f32 0.0, %v1759
        %v1761 = vpop.f32.mrb[0].mxu0
        %1762 = vdwg.mxu0
        %1763 = vmatprep.subr.bf16.mxu0 0
        %1764 = vmatpush1.bf16.msra.mxu0 %v1538
        %1765 = vmatprep.subr.bf16.mxu0 0
        %1766 = vmatpush1.bf16.msra.mxu0 %v1539
        %1767 = vmatprep.subr.bf16.mxu0 0
        %1768 = vmatpush1.bf16.msra.mxu0 %v1540
        %1769 = vmatprep.subr.bf16.mxu0 0
        %1770 = vmatpush1.bf16.msra.mxu0 %v1541
        %1771 = vmatprep.subr.bf16.mxu0 0
        %1772 = vmatpush1.bf16.msra.mxu0 %v1542
        %1773 = vmatprep.subr.bf16.mxu0 0
        %1774 = vmatpush1.bf16.msra.mxu0 %v1543
        %1775 = vmatprep.subr.bf16.mxu0 0
        %1776 = vmatpush1.bf16.msra.mxu0 %v1544
        %1777 = vmatprep.subr.bf16.mxu0 0
        %1778 = vmatpush1.bf16.msra.mxu0 %v1545
        %1779 = vmatprep.subr.bf16.mxu0 0
        %1780 = vmatpush1.bf16.msra.mxu0 %v1546
        %1781 = vmatprep.subr.bf16.mxu0 0
        %1782 = vmatpush1.bf16.msra.mxu0 %v1547
        %1783 = vmatprep.subr.bf16.mxu0 0
        %1784 = vmatpush1.bf16.msra.mxu0 %v1548
        %1785 = vmatprep.subr.bf16.mxu0 0
        %1786 = vmatpush1.bf16.msra.mxu0 %v1549
        %1787 = vmatprep.subr.bf16.mxu0 0
        %1788 = vmatpush1.bf16.msra.mxu0 %v1550
        %1789 = vmatprep.subr.bf16.mxu0 0
        %1790 = vmatpush1.bf16.msra.mxu0 %v1551
        %1791 = vmatprep.subr.bf16.mxu0 0
        %1792 = vmatpush1.bf16.msra.mxu0 %v1552
        %1793 = vmatprep.subr.bf16.mxu0 0
        %1794 = vmatpush1.bf16.msra.mxu0 %v1553
        %1795 = vmatprep.mubr.bf16.mxu0 %v1205
        %1796 = vmatmul.mubr.bf16.gmra.mrb[0].mxu0 %v1204
        %v1797 = vpop.f32.mrb[0].mxu0
        %v1798 = vadd.f32 %v1637, %v1797
        %v1799 = vpop.f32.mrb[0].mxu0
        %v1800 = vpop.f32.mrb[0].mxu0
        %v1801 = vadd.f32 %v1640, %v1800
        %v1802 = vpop.f32.mrb[0].mxu0
        %1803 = vmatprep.mubr.bf16.mxu0 %v1210
        %1804 = vmatmul.mubr.bf16.gmra.mrb[0].mxu0 %v1209
        %v1805 = vpop.f32.mrb[0].mxu0
        %v1806 = vadd.f32 %v1645, %v1805
        %v1807 = vpop.f32.mrb[0].mxu0
        %v1808 = vpop.f32.mrb[0].mxu0
        %v1809 = vadd.f32 %v1648, %v1808
        %v1810 = vpop.f32.mrb[0].mxu0
        %1811 = vmatprep.mubr.bf16.mxu0 %v1215
        %1812 = vmatmul.mubr.bf16.gmra.mrb[0].mxu0 %v1214
        %v1813 = vpop.f32.mrb[0].mxu0
        %v1814 = vadd.f32 %v1653, %v1813
        %v1815 = vpop.f32.mrb[0].mxu0
        %v1816 = vpop.f32.mrb[0].mxu0
        %v1817 = vadd.f32 %v1656, %v1816
        %v1818 = vpop.f32.mrb[0].mxu0
        %1819 = vmatprep.mubr.bf16.mxu0 %v1220
        %1820 = vmatmul.mubr.bf16.gmra.mrb[0].mxu0 %v1219
        %v1821 = vpop.f32.mrb[0].mxu0
        %v1822 = vadd.f32 %v1661, %v1821
        %v1823 = vpop.f32.mrb[0].mxu0
        %v1824 = vpop.f32.mrb[0].mxu0
        %v1825 = vadd.f32 %v1664, %v1824
        %v1826 = vpop.f32.mrb[0].mxu0
        %1827 = vmatprep.mubr.bf16.mxu0 %v1225
        %1828 = vmatmul.mubr.bf16.gmra.mrb[0].mxu0 %v1224
        %v1829 = vpop.f32.mrb[0].mxu0
        %v1830 = vadd.f32 %v1669, %v1829
        %v1831 = vpop.f32.mrb[0].mxu0
        %v1832 = vpop.f32.mrb[0].mxu0
        %v1833 = vadd.f32 %v1672, %v1832
        %v1834 = vpop.f32.mrb[0].mxu0
        %1835 = vmatprep.mubr.bf16.mxu0 %v1230
        %1836 = vmatmul.mubr.bf16.gmra.mrb[0].mxu0 %v1229
        %v1837 = vpop.f32.mrb[0].mxu0
        %v1838 = vadd.f32 %v1677, %v1837
        %v1839 = vpop.f32.mrb[0].mxu0
        %v1840 = vpop.f32.mrb[0].mxu0
        %v1841 = vadd.f32 %v1680, %v1840
        %v1842 = vpop.f32.mrb[0].mxu0
        %1843 = vmatprep.mubr.bf16.mxu0 %v1235
        %1844 = vmatmul.mubr.bf16.gmra.mrb[0].mxu0 %v1234
        %v1845 = vpop.f32.mrb[0].mxu0
        %v1846 = vadd.f32 %v1685, %v1845
        %v1847 = vpop.f32.mrb[0].mxu0
        %v1848 = vpop.f32.mrb[0].mxu0
        %v1849 = vadd.f32 %v1688, %v1848
        %v1850 = vpop.f32.mrb[0].mxu0
        %1851 = vmatprep.mubr.bf16.mxu0 %v1240
        %1852 = vmatmul.mubr.bf16.gmra.mrb[0].mxu0 %v1239
        %v1853 = vpop.f32.mrb[0].mxu0
        %v1854 = vadd.f32 %v1693, %v1853
        %v1855 = vpop.f32.mrb[0].mxu0
        %v1856 = vpop.f32.mrb[0].mxu0
        %v1857 = vadd.f32 %v1696, %v1856
        %v1858 = vpop.f32.mrb[0].mxu0
        %1859 = vmatprep.mubr.bf16.mxu0 %v1245
        %1860 = vmatmul.mubr.bf16.gmra.mrb[0].mxu0 %v1244
        %v1861 = vpop.f32.mrb[0].mxu0
        %v1862 = vadd.f32 %v1701, %v1861
        %v1863 = vpop.f32.mrb[0].mxu0
        %v1864 = vpop.f32.mrb[0].mxu0
        %v1865 = vadd.f32 %v1704, %v1864
        %v1866 = vpop.f32.mrb[0].mxu0
        %1867 = vmatprep.mubr.bf16.mxu0 %v1250
        %1868 = vmatmul.mubr.bf16.gmra.mrb[0].mxu0 %v1249
        %v1869 = vpop.f32.mrb[0].mxu0
        %v1870 = vadd.f32 %v1709, %v1869
        %v1871 = vpop.f32.mrb[0].mxu0
        %v1872 = vpop.f32.mrb[0].mxu0
        %v1873 = vadd.f32 %v1712, %v1872
        %v1874 = vpop.f32.mrb[0].mxu0
        %1875 = vmatprep.mubr.bf16.mxu0 %v1255
        %1876 = vmatmul.mubr.bf16.gmra.mrb[0].mxu0 %v1254
        %v1877 = vpop.f32.mrb[0].mxu0
        %v1878 = vadd.f32 %v1717, %v1877
        %v1879 = vpop.f32.mrb[0].mxu0
        %v1880 = vpop.f32.mrb[0].mxu0
        %v1881 = vadd.f32 %v1720, %v1880
        %v1882 = vpop.f32.mrb[0].mxu0
        %1883 = vmatprep.mubr.bf16.mxu0 %v1260
        %1884 = vmatmul.mubr.bf16.gmra.mrb[0].mxu0 %v1259
        %v1885 = vpop.f32.mrb[0].mxu0
        %v1886 = vadd.f32 %v1725, %v1885
        %v1887 = vpop.f32.mrb[0].mxu0
        %v1888 = vpop.f32.mrb[0].mxu0
        %v1889 = vadd.f32 %v1728, %v1888
        %v1890 = vpop.f32.mrb[0].mxu0
        %1891 = vmatprep.mubr.bf16.mxu0 %v1265
        %1892 = vmatmul.mubr.bf16.gmra.mrb[0].mxu0 %v1264
        %v1893 = vpop.f32.mrb[0].mxu0
        %v1894 = vadd.f32 %v1733, %v1893
        %v1895 = vpop.f32.mrb[0].mxu0
        %v1896 = vpop.f32.mrb[0].mxu0
        %v1897 = vadd.f32 %v1736, %v1896
        %v1898 = vpop.f32.mrb[0].mxu0
        %1899 = vmatprep.mubr.bf16.mxu0 %v1270
        %1900 = vmatmul.mubr.bf16.gmra.mrb[0].mxu0 %v1269
        %v1901 = vpop.f32.mrb[0].mxu0
        %v1902 = vadd.f32 %v1741, %v1901
        %v1903 = vpop.f32.mrb[0].mxu0
        %v1904 = vpop.f32.mrb[0].mxu0
        %v1905 = vadd.f32 %v1744, %v1904
        %v1906 = vpop.f32.mrb[0].mxu0
        %1907 = vmatprep.mubr.bf16.mxu0 %v1275
        %1908 = vmatmul.mubr.bf16.gmra.mrb[0].mxu0 %v1274
        %v1909 = vpop.f32.mrb[0].mxu0
        %v1910 = vadd.f32 %v1749, %v1909
        %v1911 = vpop.f32.mrb[0].mxu0
        %v1912 = vpop.f32.mrb[0].mxu0
        %v1913 = vadd.f32 %v1752, %v1912
        %v1914 = vpop.f32.mrb[0].mxu0
        %1915 = vmatprep.mubr.bf16.mxu0 %v1280
        %1916 = vmatmul.mubr.bf16.gmra.mrb[0].mxu0 %v1279
        %v1917 = vpop.f32.mrb[0].mxu0
        %v1918 = vadd.f32 %v1757, %v1917
        %v1919 = vpop.f32.mrb[0].mxu0
        %v1920 = vpop.f32.mrb[0].mxu0
        %v1921 = vadd.f32 %v1760, %v1920
        %v1922 = vpop.f32.mrb[0].mxu0
        %1923 = vdwg.mxu0
        %1924 = vmatprep.subr.bf16.mxu0 0
        %1925 = vmatpush1.bf16.msra.mxu0 %v1554
        %1926 = vmatprep.subr.bf16.mxu0 0
        %1927 = vmatpush1.bf16.msra.mxu0 %v1555
        %1928 = vmatprep.subr.bf16.mxu0 0
        %1929 = vmatpush1.bf16.msra.mxu0 %v1556
        %1930 = vmatprep.subr.bf16.mxu0 0
        %1931 = vmatpush1.bf16.msra.mxu0 %v1557
        %1932 = vmatprep.subr.bf16.mxu0 0
        %1933 = vmatpush1.bf16.msra.mxu0 %v1558
        %1934 = vmatprep.subr.bf16.mxu0 0
        %1935 = vmatpush1.bf16.msra.mxu0 %v1559
        %1936 = vmatprep.subr.bf16.mxu0 0
        %1937 = vmatpush1.bf16.msra.mxu0 %v1560
        %1938 = vmatprep.subr.bf16.mxu0 0
        %1939 = vmatpush1.bf16.msra.mxu0 %v1561
        %1940 = vmatprep.subr.bf16.mxu0 0
        %1941 = vmatpush1.bf16.msra.mxu0 0
        %1942 = vmatprep.subr.bf16.mxu0 0
        %1943 = vmatpush1.bf16.msra.mxu0 0
        %1944 = vmatprep.subr.bf16.mxu0 0
        %1945 = vmatpush1.bf16.msra.mxu0 0
        %1946 = vmatprep.subr.bf16.mxu0 0
        %1947 = vmatpush1.bf16.msra.mxu0 0
        %1948 = vmatprep.subr.bf16.mxu0 0
        %1949 = vmatpush1.bf16.msra.mxu0 0
        %1950 = vmatprep.subr.bf16.mxu0 0
        %1951 = vmatpush1.bf16.msra.mxu0 0
        %1952 = vmatprep.subr.bf16.mxu0 0
        %1953 = vmatpush1.bf16.msra.mxu0 0
        %1954 = vmatprep.subr.bf16.mxu0 0
        %1955 = vmatpush1.bf16.msra.mxu0 0
        %1956 = vmatprep.mubr.bf16.mxu0 0
        %1957 = vmatmul.mubr.bf16.gmra.mrb[0].mxu0 %v1206
        %v1958 = vpop.f32.mrb[0].mxu0
        %v1959 = vadd.f32 %v1798, %v1958
        %v1960 = vpop.f32.mrb[0].mxu0
        %v1961 = vpop.f32.mrb[0].mxu0
        %v1962 = vadd.f32 %v1801, %v1961
        %v1963 = vpop.f32.mrb[0].mxu0
        %1964 = vmatprep.mubr.bf16.mxu0 0
        %1965 = vmatmul.mubr.bf16.gmra.mrb[0].mxu0 %v1211
        %v1966 = vpop.f32.mrb[0].mxu0
        %v1967 = vadd.f32 %v1806, %v1966
        %v1968 = vpop.f32.mrb[0].mxu0
        %v1969 = vpop.f32.mrb[0].mxu0
        %v1970 = vadd.f32 %v1809, %v1969
        %v1971 = vpop.f32.mrb[0].mxu0
        %1972 = vmatprep.mubr.bf16.mxu0 0
        %1973 = vmatmul.mubr.bf16.gmra.mrb[0].mxu0 %v1216
        %v1974 = vpop.f32.mrb[0].mxu0
        %v1975 = vadd.f32 %v1814, %v1974
        %v1976 = vpop.f32.mrb[0].mxu0
        %v1977 = vpop.f32.mrb[0].mxu0
        %v1978 = vadd.f32 %v1817, %v1977
        %v1979 = vpop.f32.mrb[0].mxu0
        %1980 = vmatprep.mubr.bf16.mxu0 0
        %1981 = vmatmul.mubr.bf16.gmra.mrb[0].mxu0 %v1221
        %v1982 = vpop.f32.mrb[0].mxu0
        %v1983 = vadd.f32 %v1822, %v1982
        %v1984 = vpop.f32.mrb[0].mxu0
        %v1985 = vpop.f32.mrb[0].mxu0
        %v1986 = vadd.f32 %v1825, %v1985
        %v1987 = vpop.f32.mrb[0].mxu0
        %1988 = vmatprep.mubr.bf16.mxu0 0
        %1989 = vmatmul.mubr.bf16.gmra.mrb[0].mxu0 %v1226
        %v1990 = vpop.f32.mrb[0].mxu0
        %v1991 = vadd.f32 %v1830, %v1990
        %v1992 = vpop.f32.mrb[0].mxu0
        %v1993 = vpop.f32.mrb[0].mxu0
        %v1994 = vadd.f32 %v1833, %v1993
        %v1995 = vpop.f32.mrb[0].mxu0
        %1996 = vmatprep.mubr.bf16.mxu0 0
        %1997 = vmatmul.mubr.bf16.gmra.mrb[0].mxu0 %v1231
        %v1998 = vpop.f32.mrb[0].mxu0
        %v1999 = vadd.f32 %v1838, %v1998
        %v2000 = vpop.f32.mrb[0].mxu0
        %v2001 = vpop.f32.mrb[0].mxu0
        %v2002 = vadd.f32 %v1841, %v2001
        %v2003 = vpop.f32.mrb[0].mxu0
        %2004 = vmatprep.mubr.bf16.mxu0 0
        %2005 = vmatmul.mubr.bf16.gmra.mrb[0].mxu0 %v1236
        %v2006 = vpop.f32.mrb[0].mxu0
        %v2007 = vadd.f32 %v1846, %v2006
        %v2008 = vpop.f32.mrb[0].mxu0
        %v2009 = vpop.f32.mrb[0].mxu0
        %v2010 = vadd.f32 %v1849, %v2009
        %v2011 = vpop.f32.mrb[0].mxu0
        %2012 = vmatprep.mubr.bf16.mxu0 0
        %2013 = vmatmul.mubr.bf16.gmra.mrb[0].mxu0 %v1241
        %v2014 = vpop.f32.mrb[0].mxu0
        %v2015 = vadd.f32 %v1854, %v2014
        %v2016 = vpop.f32.mrb[0].mxu0
        %v2017 = vpop.f32.mrb[0].mxu0
        %v2018 = vadd.f32 %v1857, %v2017
        %v2019 = vpop.f32.mrb[0].mxu0
        %2020 = vmatprep.mubr.bf16.mxu0 0
        %2021 = vmatmul.mubr.bf16.gmra.mrb[0].mxu0 %v1246
        %v2022 = vpop.f32.mrb[0].mxu0
        %v2023 = vadd.f32 %v1862, %v2022
        %v2024 = vpop.f32.mrb[0].mxu0
        %v2025 = vpop.f32.mrb[0].mxu0
        %v2026 = vadd.f32 %v1865, %v2025
        %v2027 = vpop.f32.mrb[0].mxu0
        %2028 = vmatprep.mubr.bf16.mxu0 0
        %2029 = vmatmul.mubr.bf16.gmra.mrb[0].mxu0 %v1251
        %v2030 = vpop.f32.mrb[0].mxu0
        %v2031 = vadd.f32 %v1870, %v2030
        %v2032 = vpop.f32.mrb[0].mxu0
        %v2033 = vpop.f32.mrb[0].mxu0
        %v2034 = vadd.f32 %v1873, %v2033
        %v2035 = vpop.f32.mrb[0].mxu0
        %2036 = vmatprep.mubr.bf16.mxu0 0
        %2037 = vmatmul.mubr.bf16.gmra.mrb[0].mxu0 %v1256
        %v2038 = vpop.f32.mrb[0].mxu0
        %v2039 = vadd.f32 %v1878, %v2038
        %v2040 = vpop.f32.mrb[0].mxu0
        %v2041 = vpop.f32.mrb[0].mxu0
        %v2042 = vadd.f32 %v1881, %v2041
        %v2043 = vpop.f32.mrb[0].mxu0
        %2044 = vmatprep.mubr.bf16.mxu0 0
        %2045 = vmatmul.mubr.bf16.gmra.mrb[0].mxu0 %v1261
        %v2046 = vpop.f32.mrb[0].mxu0
        %v2047 = vadd.f32 %v1886, %v2046
        %v2048 = vpop.f32.mrb[0].mxu0
        %v2049 = vpop.f32.mrb[0].mxu0
        %v2050 = vadd.f32 %v1889, %v2049
        %v2051 = vpop.f32.mrb[0].mxu0
        %2052 = vmatprep.mubr.bf16.mxu0 0
        %2053 = vmatmul.mubr.bf16.gmra.mrb[0].mxu0 %v1266
        %v2054 = vpop.f32.mrb[0].mxu0
        %v2055 = vadd.f32 %v1894, %v2054
        %v2056 = vpop.f32.mrb[0].mxu0
        %v2057 = vpop.f32.mrb[0].mxu0
        %v2058 = vadd.f32 %v1897, %v2057
        %v2059 = vpop.f32.mrb[0].mxu0
        %2060 = vmatprep.mubr.bf16.mxu0 0
        %2061 = vmatmul.mubr.bf16.gmra.mrb[0].mxu0 %v1271
        %v2062 = vpop.f32.mrb[0].mxu0
        %v2063 = vadd.f32 %v1902, %v2062
        %v2064 = vpop.f32.mrb[0].mxu0
        %v2065 = vpop.f32.mrb[0].mxu0
        %v2066 = vadd.f32 %v1905, %v2065
        %v2067 = vpop.f32.mrb[0].mxu0
        %2068 = vmatprep.mubr.bf16.mxu0 0
        %2069 = vmatmul.mubr.bf16.gmra.mrb[0].mxu0 %v1276
        %v2070 = vpop.f32.mrb[0].mxu0
        %v2071 = vadd.f32 %v1910, %v2070
        %v2072 = vpop.f32.mrb[0].mxu0
        %v2073 = vpop.f32.mrb[0].mxu0
        %v2074 = vadd.f32 %v1913, %v2073
        %v2075 = vpop.f32.mrb[0].mxu0
        %2076 = vmatprep.mubr.bf16.mxu0 0
        %2077 = vmatmul.mubr.bf16.gmra.mrb[0].mxu0 %v1281
        %v2078 = vpop.f32.mrb[0].mxu0
        %v2079 = vadd.f32 %v1918, %v2078
        %v2080 = vpop.f32.mrb[0].mxu0
        %v2081 = vpop.f32.mrb[0].mxu0
        %v2082 = vadd.f32 %v1921, %v2081
        %v2083 = vpop.f32.mrb[0].mxu0
        %2084 = vdwg.mxu0
        %v2085 = vsel %vm339, %v1959, 0.0
        %v2086 = vsel %vm339, %v1962, 0.0
        %v2087 = vadd.f32 %v2085, %v2086
        %v2088 = vsel %vm339, %v1967, 0.0
        %v2089 = vadd.f32 %v2087, %v2088
        %v2090 = vsel %vm339, %v1970, 0.0
        %v2091 = vadd.f32 %v2089, %v2090
        %v2092 = vsel %vm339, %v1975, 0.0
        %v2093 = vadd.f32 %v2091, %v2092
        %v2094 = vsel %vm339, %v1978, 0.0
        %v2095 = vadd.f32 %v2093, %v2094
        %v2096 = vsel %vm339, %v1983, 0.0
        %v2097 = vadd.f32 %v2095, %v2096
        %v2098 = vsel %vm339, %v1986, 0.0
        %v2099 = vadd.f32 %v2097, %v2098
        %v2100 = vsel %vm339, %v1991, 0.0
        %v2101 = vadd.f32 %v2099, %v2100
        %v2102 = vsel %vm339, %v1994, 0.0
        %v2103 = vadd.f32 %v2101, %v2102
        %v2104 = vsel %vm339, %v1999, 0.0
        %v2105 = vadd.f32 %v2103, %v2104
        %v2106 = vsel %vm339, %v2002, 0.0
        %v2107 = vadd.f32 %v2105, %v2106
        %v2108 = vsel %vm339, %v2007, 0.0
        %v2109 = vadd.f32 %v2107, %v2108
        %v2110 = vsel %vm339, %v2010, 0.0
        %v2111 = vadd.f32 %v2109, %v2110
        %v2112 = vsel %vm339, %v2015, 0.0
        %v2113 = vadd.f32 %v2111, %v2112
        %v2114 = vsel %vm339, %v2018, 0.0
        %v2115 = vadd.f32 %v2113, %v2114
        %v2116 = vsel %vm339, %v2023, 0.0
        %v2117 = vadd.f32 %v2115, %v2116
        %v2118 = vsel %vm339, %v2026, 0.0
        %v2119 = vadd.f32 %v2117, %v2118
        %v2120 = vsel %vm339, %v2031, 0.0
        %v2121 = vadd.f32 %v2119, %v2120
        %v2122 = vsel %vm339, %v2034, 0.0
        %v2123 = vadd.f32 %v2121, %v2122
        %v2124 = vsel %vm339, %v2039, 0.0
        %v2125 = vadd.f32 %v2123, %v2124
        %v2126 = vsel %vm339, %v2042, 0.0
        %v2127 = vadd.f32 %v2125, %v2126
        %v2128 = vsel %vm339, %v2047, 0.0
        %v2129 = vadd.f32 %v2127, %v2128
        %v2130 = vsel %vm339, %v2050, 0.0
        %v2131 = vadd.f32 %v2129, %v2130
        %v2132 = vsel %vm339, %v2055, 0.0
        %v2133 = vadd.f32 %v2131, %v2132
        %v2134 = vsel %vm339, %v2058, 0.0
        %v2135 = vadd.f32 %v2133, %v2134
        %v2136 = vsel %vm339, %v2063, 0.0
        %v2137 = vadd.f32 %v2135, %v2136
        %v2138 = vsel %vm339, %v2066, 0.0
        %v2139 = vadd.f32 %v2137, %v2138
        %v2140 = vsel %vm339, %v2071, 0.0
        %v2141 = vadd.f32 %v2139, %v2140
        %v2142 = vsel %vm339, %v2074, 0.0
        %v2143 = vadd.f32 %v2141, %v2142
        %v2144 = vsel %vm339, %v2079, 0.0
        %v2145 = vadd.f32 %v2143, %v2144
        %v2146 = vsel %vm339, %v2082, 0.0
        %v2147 = vadd.f32 %v2145, %v2146
        %v2148 = vrot.slane %v2147, 4
        %v2149 = vadd.f32 %v2147, %v2148
        %v2150 = vrot.slane %v2149, 2
        %v2151 = vadd.f32 %v2149, %v2150
        %v2152 = vrot.slane %v2151, 1
        %v2153 = vadd.f32 %v2151, %v2152
        %v2154 = vmul.f32 %v1959, %v1959
        %v2155 = vmul.f32 %v1962, %v1962
        %v2156 = vmul.f32 %v1967, %v1967
        %v2157 = vmul.f32 %v1970, %v1970
        %v2158 = vmul.f32 %v1975, %v1975
        %v2159 = vmul.f32 %v1978, %v1978
        %v2160 = vmul.f32 %v1983, %v1983
        %v2161 = vmul.f32 %v1986, %v1986
        %v2162 = vmul.f32 %v1991, %v1991
        %v2163 = vmul.f32 %v1994, %v1994
        %v2164 = vmul.f32 %v1999, %v1999
        %v2165 = vmul.f32 %v2002, %v2002
        %v2166 = vmul.f32 %v2007, %v2007
        %v2167 = vmul.f32 %v2010, %v2010
        %v2168 = vmul.f32 %v2015, %v2015
        %v2169 = vmul.f32 %v2018, %v2018
        %v2170 = vmul.f32 %v2023, %v2023
        %v2171 = vmul.f32 %v2026, %v2026
        %v2172 = vmul.f32 %v2031, %v2031
        %v2173 = vmul.f32 %v2034, %v2034
        %v2174 = vmul.f32 %v2039, %v2039
        %v2175 = vmul.f32 %v2042, %v2042
        %v2176 = vmul.f32 %v2047, %v2047
        %v2177 = vmul.f32 %v2050, %v2050
        %v2178 = vmul.f32 %v2055, %v2055
        %v2179 = vmul.f32 %v2058, %v2058
        %v2180 = vmul.f32 %v2063, %v2063
        %v2181 = vmul.f32 %v2066, %v2066
        %v2182 = vmul.f32 %v2071, %v2071
        %v2183 = vmul.f32 %v2074, %v2074
        %v2184 = vmul.f32 %v2079, %v2079
        %v2185 = vmul.f32 %v2082, %v2082
        %v2186 = vsel %vm339, %v2154, 0.0
        %v2187 = vsel %vm339, %v2155, 0.0
        %v2188 = vadd.f32 %v2186, %v2187
        %v2189 = vsel %vm339, %v2156, 0.0
        %v2190 = vadd.f32 %v2188, %v2189
        %v2191 = vsel %vm339, %v2157, 0.0
        %v2192 = vadd.f32 %v2190, %v2191
        %v2193 = vsel %vm339, %v2158, 0.0
        %v2194 = vadd.f32 %v2192, %v2193
        %v2195 = vsel %vm339, %v2159, 0.0
        %v2196 = vadd.f32 %v2194, %v2195
        %v2197 = vsel %vm339, %v2160, 0.0
        %v2198 = vadd.f32 %v2196, %v2197
        %v2199 = vsel %vm339, %v2161, 0.0
        %v2200 = vadd.f32 %v2198, %v2199
        %v2201 = vsel %vm339, %v2162, 0.0
        %v2202 = vadd.f32 %v2200, %v2201
        %v2203 = vsel %vm339, %v2163, 0.0
        %v2204 = vadd.f32 %v2202, %v2203
        %v2205 = vsel %vm339, %v2164, 0.0
        %v2206 = vadd.f32 %v2204, %v2205
        %v2207 = vsel %vm339, %v2165, 0.0
        %v2208 = vadd.f32 %v2206, %v2207
        %v2209 = vsel %vm339, %v2166, 0.0
        %v2210 = vadd.f32 %v2208, %v2209
        %v2211 = vsel %vm339, %v2167, 0.0
        %v2212 = vadd.f32 %v2210, %v2211
        %v2213 = vsel %vm339, %v2168, 0.0
        %v2214 = vadd.f32 %v2212, %v2213
        %v2215 = vsel %vm339, %v2169, 0.0
        %v2216 = vadd.f32 %v2214, %v2215
        %v2217 = vsel %vm339, %v2170, 0.0
        %v2218 = vadd.f32 %v2216, %v2217
        %v2219 = vsel %vm339, %v2171, 0.0
        %v2220 = vadd.f32 %v2218, %v2219
        %v2221 = vsel %vm339, %v2172, 0.0
        %v2222 = vadd.f32 %v2220, %v2221
        %v2223 = vsel %vm339, %v2173, 0.0
        %v2224 = vadd.f32 %v2222, %v2223
        %v2225 = vsel %vm339, %v2174, 0.0
        %v2226 = vadd.f32 %v2224, %v2225
        %v2227 = vsel %vm339, %v2175, 0.0
        %v2228 = vadd.f32 %v2226, %v2227
        %v2229 = vsel %vm339, %v2176, 0.0
        %v2230 = vadd.f32 %v2228, %v2229
        %v2231 = vsel %vm339, %v2177, 0.0
        %v2232 = vadd.f32 %v2230, %v2231
        %v2233 = vsel %vm339, %v2178, 0.0
        %v2234 = vadd.f32 %v2232, %v2233
        %v2235 = vsel %vm339, %v2179, 0.0
        %v2236 = vadd.f32 %v2234, %v2235
        %v2237 = vsel %vm339, %v2180, 0.0
        %v2238 = vadd.f32 %v2236, %v2237
        %v2239 = vsel %vm339, %v2181, 0.0
        %v2240 = vadd.f32 %v2238, %v2239
        %v2241 = vsel %vm339, %v2182, 0.0
        %v2242 = vadd.f32 %v2240, %v2241
        %v2243 = vsel %vm339, %v2183, 0.0
        %v2244 = vadd.f32 %v2242, %v2243
        %v2245 = vsel %vm339, %v2184, 0.0
        %v2246 = vadd.f32 %v2244, %v2245
        %v2247 = vsel %vm339, %v2185, 0.0
        %v2248 = vadd.f32 %v2246, %v2247
        %v2249 = vrot.slane %v2248, 4
        %v2250 = vadd.f32 %v2248, %v2249
        %v2251 = vrot.slane %v2250, 2
        %v2252 = vadd.f32 %v2250, %v2251
        %v2253 = vrot.slane %v2252, 1
        %v2254 = vadd.f32 %v2252, %v2253
        %v2255 = vmul.f32 %v2153, 0.00390625
        %v2256 = vmul.f32 %v2254, 0.00390625
        %v2257 = vmul.f32 %v2255, %v2255
        %v2258 = vsub.f32 %v2256, %v2257
        %v2259 = vsub.f32 %v1959, %v2255
        %v2260 = vsub.f32 %v1962, %v2255
        %v2261 = vsub.f32 %v1967, %v2255
        %v2262 = vsub.f32 %v1970, %v2255
        %v2263 = vsub.f32 %v1975, %v2255
        %v2264 = vsub.f32 %v1978, %v2255
        %v2265 = vsub.f32 %v1983, %v2255
        %v2266 = vsub.f32 %v1986, %v2255
        %v2267 = vsub.f32 %v1991, %v2255
        %v2268 = vsub.f32 %v1994, %v2255
        %v2269 = vsub.f32 %v1999, %v2255
        %v2270 = vsub.f32 %v2002, %v2255
        %v2271 = vsub.f32 %v2007, %v2255
        %v2272 = vsub.f32 %v2010, %v2255
        %v2273 = vsub.f32 %v2015, %v2255
        %v2274 = vsub.f32 %v2018, %v2255
        %v2275 = vsub.f32 %v2023, %v2255
        %v2276 = vsub.f32 %v2026, %v2255
        %v2277 = vsub.f32 %v2031, %v2255
        %v2278 = vsub.f32 %v2034, %v2255
        %v2279 = vsub.f32 %v2039, %v2255
        %v2280 = vsub.f32 %v2042, %v2255
        %v2281 = vsub.f32 %v2047, %v2255
        %v2282 = vsub.f32 %v2050, %v2255
        %v2283 = vsub.f32 %v2055, %v2255
        %v2284 = vsub.f32 %v2058, %v2255
        %v2285 = vsub.f32 %v2063, %v2255
        %v2286 = vsub.f32 %v2066, %v2255
        %v2287 = vsub.f32 %v2071, %v2255
        %v2288 = vsub.f32 %v2074, %v2255
        %v2289 = vsub.f32 %v2079, %v2255
        %v2290 = vsub.f32 %v2082, %v2255
        %v2291 = vadd.f32 %v2258, 1e-05
        %v2292 = vrsqrt.pop %v2291
        %v2293 = vmul.f32 %v2259, %v2292
        %v2294 = vmul.f32 %v2260, %v2292
        %v2295 = vmul.f32 %v2261, %v2292
        %v2296 = vmul.f32 %v2262, %v2292
        %v2297 = vmul.f32 %v2263, %v2292
        %v2298 = vmul.f32 %v2264, %v2292
        %v2299 = vmul.f32 %v2265, %v2292
        %v2300 = vmul.f32 %v2266, %v2292
        %v2301 = vmul.f32 %v2267, %v2292
        %v2302 = vmul.f32 %v2268, %v2292
        %v2303 = vmul.f32 %v2269, %v2292
        %v2304 = vmul.f32 %v2270, %v2292
        %v2305 = vmul.f32 %v2271, %v2292
        %v2306 = vmul.f32 %v2272, %v2292
        %v2307 = vmul.f32 %v2273, %v2292
        %v2308 = vmul.f32 %v2274, %v2292
        %v2309 = vmul.f32 %v2275, %v2292
        %v2310 = vmul.f32 %v2276, %v2292
        %v2311 = vmul.f32 %v2277, %v2292
        %v2312 = vmul.f32 %v2278, %v2292
        %v2313 = vmul.f32 %v2279, %v2292
        %v2314 = vmul.f32 %v2280, %v2292
        %v2315 = vmul.f32 %v2281, %v2292
        %v2316 = vmul.f32 %v2282, %v2292
        %v2317 = vmul.f32 %v2283, %v2292
        %v2318 = vmul.f32 %v2284, %v2292
        %v2319 = vmul.f32 %v2285, %v2292
        %v2320 = vmul.f32 %v2286, %v2292
        %v2321 = vmul.f32 %v2287, %v2292
        %v2322 = vmul.f32 %v2288, %v2292
        %v2323 = vmul.f32 %v2289, %v2292
        %v2324 = vmul.f32 %v2290, %v2292
        %v2325 = vmax.f32 %v2293, 0.0
        %v2326 = vmax.f32 %v2294, 0.0
        %v2327 = vmax.f32 %v2295, 0.0
        %v2328 = vmax.f32 %v2296, 0.0
        %v2329 = vmax.f32 %v2297, 0.0
        %v2330 = vmax.f32 %v2298, 0.0
        %v2331 = vmax.f32 %v2299, 0.0
        %v2332 = vmax.f32 %v2300, 0.0
        %v2333 = vmax.f32 %v2301, 0.0
        %v2334 = vmax.f32 %v2302, 0.0
        %v2335 = vmax.f32 %v2303, 0.0
        %v2336 = vmax.f32 %v2304, 0.0
        %v2337 = vmax.f32 %v2305, 0.0
        %v2338 = vmax.f32 %v2306, 0.0
        %v2339 = vmax.f32 %v2307, 0.0
        %v2340 = vmax.f32 %v2308, 0.0
        %v2341 = vmax.f32 %v2309, 0.0
        %v2342 = vmax.f32 %v2310, 0.0
        %v2343 = vmax.f32 %v2311, 0.0
        %v2344 = vmax.f32 %v2312, 0.0
        %v2345 = vmax.f32 %v2313, 0.0
        %v2346 = vmax.f32 %v2314, 0.0
        %v2347 = vmax.f32 %v2315, 0.0
        %v2348 = vmax.f32 %v2316, 0.0
        %v2349 = vmax.f32 %v2317, 0.0
        %v2350 = vmax.f32 %v2318, 0.0
        %v2351 = vmax.f32 %v2319, 0.0
        %v2352 = vmax.f32 %v2320, 0.0
        %v2353 = vmax.f32 %v2321, 0.0
        %v2354 = vmax.f32 %v2322, 0.0
        %v2355 = vmax.f32 %v2323, 0.0
        %v2356 = vmax.f32 %v2324, 0.0
        %v2357 = vpack.c.bf16 %v2326, %v2325
        %v2358 = vpack.c.bf16 %v2328, %v2327
        %v2359 = vpack.c.bf16 %v2330, %v2329
        %v2360 = vpack.c.bf16 %v2332, %v2331
        %v2361 = vpack.c.bf16 %v2334, %v2333
        %v2362 = vpack.c.bf16 %v2336, %v2335
        %v2363 = vpack.c.bf16 %v2338, %v2337
        %v2364 = vpack.c.bf16 %v2340, %v2339
        %v2365 = vpack.c.bf16 %v2342, %v2341
        %v2366 = vpack.c.bf16 %v2344, %v2343
        %v2367 = vpack.c.bf16 %v2346, %v2345
        %v2368 = vpack.c.bf16 %v2348, %v2347
        %v2369 = vpack.c.bf16 %v2350, %v2349
        %v2370 = vpack.c.bf16 %v2352, %v2351
        %v2371 = vpack.c.bf16 %v2354, %v2353
        %v2372 = vpack.c.bf16 %v2356, %v2355
        %v2387 = vrot.slane %v2357, 7
        %v2388 = vrot.slane %v2358, 7
        %v2389 = vrot.slane %v2359, 7
        %v2390 = vrot.slane %v2360, 7
        %v2391 = vrot.slane %v2361, 7
        %v2392 = vrot.slane %v2362, 7
        %v2393 = vrot.slane %v2363, 7
        %v2394 = vrot.slane %v2364, 7
        %v2395 = vrot.slane %v2365, 7
        %v2396 = vrot.slane %v2366, 7
        %v2397 = vrot.slane %v2367, 7
        %v2398 = vrot.slane %v2368, 7
        %v2399 = vrot.slane %v2369, 7
        %v2400 = vrot.slane %v2370, 7
        %v2402 = vsel %vm707, 0, %v2387
        %v2404 = vsel %vm707, 0, %v2388
        %v2406 = vsel %vm707, 0, %v2389
        %v2408 = vsel %vm707, 0, %v2390
        %v2410 = vsel %vm707, 0, %v2391
        %v2412 = vsel %vm707, 0, %v2392
        %v2414 = vsel %vm707, 0, %v2393
        %v2416 = vsel %vm707, 0, %v2394
        %v2418 = vsel %vm707, 0, %v2395
        %v2420 = vsel %vm707, 0, %v2396
        %v2422 = vsel %vm707, 0, %v2397
        %v2424 = vsel %vm707, 0, %v2398
        %v2426 = vsel %vm707, 0, %v2399
        %v2428 = vsel %vm707, 0, %v2400
        %2429 = vrot.lane.b32.xlu0 %v2357, 64
        %v2430 = vpop.permute.xlu0 %2429
        %2431 = vrot.lane.b32.xlu0 %v2358, 64
        %v2432 = vpop.permute.xlu0 %2431
        %2433 = vrot.lane.b32.xlu0 %v2359, 64
        %v2434 = vpop.permute.xlu0 %2433
        %2435 = vrot.lane.b32.xlu0 %v2360, 64
        %v2436 = vpop.permute.xlu0 %2435
        %2437 = vrot.lane.b32.xlu0 %v2361, 64
        %v2438 = vpop.permute.xlu0 %2437
        %2439 = vrot.lane.b32.xlu0 %v2362, 64
        %v2440 = vpop.permute.xlu0 %2439
        %2441 = vrot.lane.b32.xlu0 %v2363, 64
        %v2442 = vpop.permute.xlu0 %2441
        %2443 = vrot.lane.b32.xlu0 %v2364, 64
        %v2444 = vpop.permute.xlu0 %2443
        %2445 = vrot.lane.b32.xlu0 %v2365, 64
        %v2446 = vpop.permute.xlu0 %2445
        %2447 = vrot.lane.b32.xlu0 %v2366, 64
        %v2448 = vpop.permute.xlu0 %2447
        %2449 = vrot.lane.b32.xlu0 %v2367, 64
        %v2450 = vpop.permute.xlu0 %2449
        %2451 = vrot.lane.b32.xlu0 %v2368, 64
        %v2452 = vpop.permute.xlu0 %2451
        %2453 = vrot.lane.b32.xlu0 %v2369, 64
        %v2454 = vpop.permute.xlu0 %2453
        %2455 = vrot.lane.b32.xlu0 %v2370, 64
        %v2456 = vpop.permute.xlu0 %2455
        %v2458 = vsel %vm339, %v2402, %v2430
        %v2461 = vsel %vm339, %v2404, %v2432
        %v2464 = vsel %vm339, %v2406, %v2434
        %v2467 = vsel %vm339, %v2408, %v2436
        %v2470 = vsel %vm339, %v2410, %v2438
        %v2473 = vsel %vm339, %v2412, %v2440
        %v2476 = vsel %vm339, %v2414, %v2442
        %v2479 = vsel %vm339, %v2416, %v2444
        %v2482 = vsel %vm339, %v2418, %v2446
        %v2485 = vsel %vm339, %v2420, %v2448
        %v2488 = vsel %vm339, %v2422, %v2450
        %v2491 = vsel %vm339, %v2424, %v2452
        %v2494 = vsel %vm339, %v2426, %v2454
        %v2497 = vsel %vm339, %v2428, %v2456
        %2499 = vst [vmem:[#allocation2] sm:$0xff] %v770
        %2500 = vst [vmem:[#allocation2 + $0x28] sm:$0xff] %v770
        %2501 = vst [vmem:[#allocation2 + $0x50] sm:$0xff] %v2458
        %2502 = vst [vmem:[#allocation2 + $0x78] sm:$0xff] %v2461
        %2503 = vst [vmem:[#allocation2 + $0xa0] sm:$0xff] %v2464
        %2504 = vst [vmem:[#allocation2 + $0xc8] sm:$0xff] %v2467
        %2505 = vst [vmem:[#allocation2 + $0xf0] sm:$0xff] %v2470
        %2506 = vst [vmem:[#allocation2 + $0x118] sm:$0xff] %v2473
        %2507 = vst [vmem:[#allocation2 + $0x140] sm:$0xff] %v2476
        %2508 = vst [vmem:[#allocation2 + $0x168] sm:$0xff] %v2479
        %2509 = vst [vmem:[#allocation2 + $0x190] sm:$0xff] %v2482
        %2510 = vst [vmem:[#allocation2 + $0x1b8] sm:$0xff] %v2485
        %2511 = vst [vmem:[#allocation2 + $0x1e0] sm:$0xff] %v2488
        %2512 = vst [vmem:[#allocation2 + $0x208] sm:$0xff] %v2491
        %2513 = vst [vmem:[#allocation2 + $0x230] sm:$0xff] %v2494
        %2514 = vst [vmem:[#allocation2 + $0x258] sm:$0xff] %v2497
        %v2515 = vrot.slane %v2357, 1
        %v2516 = vrot.slane %v2358, 1
        %v2517 = vrot.slane %v2359, 1
        %v2518 = vrot.slane %v2360, 1
        %v2519 = vrot.slane %v2361, 1
        %v2520 = vrot.slane %v2362, 1
        %v2521 = vrot.slane %v2363, 1
        %v2522 = vrot.slane %v2364, 1
        %v2523 = vrot.slane %v2365, 1
        %v2524 = vrot.slane %v2366, 1
        %v2525 = vrot.slane %v2367, 1
        %v2526 = vrot.slane %v2368, 1
        %v2527 = vrot.slane %v2369, 1
        %v2528 = vrot.slane %v2370, 1
        %v2530 = vsel %vm845, %v2515, 0
        %v2532 = vsel %vm845, %v2516, 0
        %v2534 = vsel %vm845, %v2517, 0
        %v2536 = vsel %vm845, %v2518, 0
        %v2538 = vsel %vm845, %v2519, 0
        %v2540 = vsel %vm845, %v2520, 0
        %v2542 = vsel %vm845, %v2521, 0
        %v2544 = vsel %vm845, %v2522, 0
        %v2546 = vsel %vm845, %v2523, 0
        %v2548 = vsel %vm845, %v2524, 0
        %v2550 = vsel %vm845, %v2525, 0
        %v2552 = vsel %vm845, %v2526, 0
        %v2554 = vsel %vm845, %v2527, 0
        %v2556 = vsel %vm845, %v2528, 0
        %v2559 = vrot.slane %v2371, 7
        %v2560 = vrot.slane %v2372, 7
        %v2562 = vsel %vm707, 0, %v2559
        %v2564 = vsel %vm707, 0, %v2560
        %2581 = vrot.lane.b32.xlu0 %v2402, 64
        %v2582 = vpop.permute.xlu0 %2581
        %2583 = vrot.lane.b32.xlu0 %v2404, 64
        %v2584 = vpop.permute.xlu0 %2583
        %2585 = vrot.lane.b32.xlu0 %v2406, 64
        %v2586 = vpop.permute.xlu0 %2585
        %2587 = vrot.lane.b32.xlu0 %v2408, 64
        %v2588 = vpop.permute.xlu0 %2587
        %2589 = vrot.lane.b32.xlu0 %v2410, 64
        %v2590 = vpop.permute.xlu0 %2589
        %2591 = vrot.lane.b32.xlu0 %v2412, 64
        %v2592 = vpop.permute.xlu0 %2591
        %2593 = vrot.lane.b32.xlu0 %v2414, 64
        %v2594 = vpop.permute.xlu0 %2593
        %2595 = vrot.lane.b32.xlu0 %v2416, 64
        %v2596 = vpop.permute.xlu0 %2595
        %2597 = vrot.lane.b32.xlu0 %v2418, 64
        %v2598 = vpop.permute.xlu0 %2597
        %2599 = vrot.lane.b32.xlu0 %v2420, 64
        %v2600 = vpop.permute.xlu0 %2599
        %2601 = vrot.lane.b32.xlu0 %v2422, 64
        %v2602 = vpop.permute.xlu0 %2601
        %2603 = vrot.lane.b32.xlu0 %v2424, 64
        %v2604 = vpop.permute.xlu0 %2603
        %2605 = vrot.lane.b32.xlu0 %v2426, 64
        %v2606 = vpop.permute.xlu0 %2605
        %2607 = vrot.lane.b32.xlu0 %v2428, 64
        %v2608 = vpop.permute.xlu0 %2607
        %2609 = vrot.lane.b32.xlu0 %v2562, 64
        %v2610 = vpop.permute.xlu0 %2609
        %2611 = vrot.lane.b32.xlu0 %v2564, 64
        %v2612 = vpop.permute.xlu0 %2611
        %v2614 = vsel %vm339, %v847, %v2582
        %v2617 = vsel %vm339, %v847, %v2584
        %v2620 = vsel %vm339, %v2530, %v2586
        %v2623 = vsel %vm339, %v2532, %v2588
        %v2626 = vsel %vm339, %v2534, %v2590
        %v2629 = vsel %vm339, %v2536, %v2592
        %v2632 = vsel %vm339, %v2538, %v2594
        %v2635 = vsel %vm339, %v2540, %v2596
        %v2638 = vsel %vm339, %v2542, %v2598
        %v2641 = vsel %vm339, %v2544, %v2600
        %v2644 = vsel %vm339, %v2546, %v2602
        %v2647 = vsel %vm339, %v2548, %v2604
        %v2650 = vsel %vm339, %v2550, %v2606
        %v2653 = vsel %vm339, %v2552, %v2608
        %v2656 = vsel %vm339, %v2554, %v2610
        %v2659 = vsel %vm339, %v2556, %v2612
        %2661 = vst [vmem:[#allocation2 + $0x8] sm:$0xff] %v2614
        %2662 = vst [vmem:[#allocation2 + $0x30] sm:$0xff] %v2617
        %2663 = vst [vmem:[#allocation2 + $0x58] sm:$0xff] %v2620
        %2664 = vst [vmem:[#allocation2 + $0x80] sm:$0xff] %v2623
        %2665 = vst [vmem:[#allocation2 + $0xa8] sm:$0xff] %v2626
        %2666 = vst [vmem:[#allocation2 + $0xd0] sm:$0xff] %v2629
        %2667 = vst [vmem:[#allocation2 + $0xf8] sm:$0xff] %v2632
        %2668 = vst [vmem:[#allocation2 + $0x120] sm:$0xff] %v2635
        %2669 = vst [vmem:[#allocation2 + $0x148] sm:$0xff] %v2638
        %2670 = vst [vmem:[#allocation2 + $0x170] sm:$0xff] %v2641
        %2671 = vst [vmem:[#allocation2 + $0x198] sm:$0xff] %v2644
        %2672 = vst [vmem:[#allocation2 + $0x1c0] sm:$0xff] %v2647
        %2673 = vst [vmem:[#allocation2 + $0x1e8] sm:$0xff] %v2650
        %2674 = vst [vmem:[#allocation2 + $0x210] sm:$0xff] %v2653
        %2675 = vst [vmem:[#allocation2 + $0x238] sm:$0xff] %v2656
        %2676 = vst [vmem:[#allocation2 + $0x260] sm:$0xff] %v2659
        %v2677 = vrot.slane %v2371, 1
        %v2678 = vrot.slane %v2372, 1
        %v2680 = vsel %vm845, %v2677, 0
        %v2682 = vsel %vm845, %v2678, 0
        %2699 = vrot.lane.b32.xlu0 %v2530, 64
        %v2700 = vpop.permute.xlu0 %2699
        %2701 = vrot.lane.b32.xlu0 %v2532, 64
        %v2702 = vpop.permute.xlu0 %2701
        %2703 = vrot.lane.b32.xlu0 %v2534, 64
        %v2704 = vpop.permute.xlu0 %2703
        %2705 = vrot.lane.b32.xlu0 %v2536, 64
        %v2706 = vpop.permute.xlu0 %2705
        %2707 = vrot.lane.b32.xlu0 %v2538, 64
        %v2708 = vpop.permute.xlu0 %2707
        %2709 = vrot.lane.b32.xlu0 %v2540, 64
        %v2710 = vpop.permute.xlu0 %2709
        %2711 = vrot.lane.b32.xlu0 %v2542, 64
        %v2712 = vpop.permute.xlu0 %2711
        %2713 = vrot.lane.b32.xlu0 %v2544, 64
        %v2714 = vpop.permute.xlu0 %2713
        %2715 = vrot.lane.b32.xlu0 %v2546, 64
        %v2716 = vpop.permute.xlu0 %2715
        %2717 = vrot.lane.b32.xlu0 %v2548, 64
        %v2718 = vpop.permute.xlu0 %2717
        %2719 = vrot.lane.b32.xlu0 %v2550, 64
        %v2720 = vpop.permute.xlu0 %2719
        %2721 = vrot.lane.b32.xlu0 %v2552, 64
        %v2722 = vpop.permute.xlu0 %2721
        %2723 = vrot.lane.b32.xlu0 %v2554, 64
        %v2724 = vpop.permute.xlu0 %2723
        %2725 = vrot.lane.b32.xlu0 %v2556, 64
        %v2726 = vpop.permute.xlu0 %2725
        %2727 = vrot.lane.b32.xlu0 %v2680, 64
        %v2728 = vpop.permute.xlu0 %2727
        %2729 = vrot.lane.b32.xlu0 %v2682, 64
        %v2730 = vpop.permute.xlu0 %2729
        %v2733 = vsel %vm339, %v2357, %v2700
        %v2737 = vsel %vm339, %v2358, %v2702
        %v2741 = vsel %vm339, %v2359, %v2704
        %v2745 = vsel %vm339, %v2360, %v2706
        %v2749 = vsel %vm339, %v2361, %v2708
        %v2753 = vsel %vm339, %v2362, %v2710
        %v2757 = vsel %vm339, %v2363, %v2712
        %v2761 = vsel %vm339, %v2364, %v2714
        %v2765 = vsel %vm339, %v2365, %v2716
        %v2769 = vsel %vm339, %v2366, %v2718
        %v2773 = vsel %vm339, %v2367, %v2720
        %v2777 = vsel %vm339, %v2368, %v2722
        %v2781 = vsel %vm339, %v2369, %v2724
        %v2785 = vsel %vm339, %v2370, %v2726
        %v2789 = vsel %vm339, %v2371, %v2728
        %v2793 = vsel %vm339, %v2372, %v2730
        %2795 = vst [vmem:[#allocation2 + $0x10] sm:$0xff] %v2733
        %2796 = vst [vmem:[#allocation2 + $0x38] sm:$0xff] %v2737
        %2797 = vst [vmem:[#allocation2 + $0x60] sm:$0xff] %v2741
        %2798 = vst [vmem:[#allocation2 + $0x88] sm:$0xff] %v2745
        %2799 = vst [vmem:[#allocation2 + $0xb0] sm:$0xff] %v2749
        %2800 = vst [vmem:[#allocation2 + $0xd8] sm:$0xff] %v2753
        %2801 = vst [vmem:[#allocation2 + $0x100] sm:$0xff] %v2757
        %2802 = vst [vmem:[#allocation2 + $0x128] sm:$0xff] %v2761
        %2803 = vst [vmem:[#allocation2 + $0x150] sm:$0xff] %v2765
        %2804 = vst [vmem:[#allocation2 + $0x178] sm:$0xff] %v2769
        %2805 = vst [vmem:[#allocation2 + $0x1a0] sm:$0xff] %v2773
        %2806 = vst [vmem:[#allocation2 + $0x1c8] sm:$0xff] %v2777
        %2807 = vst [vmem:[#allocation2 + $0x1f0] sm:$0xff] %v2781
        %2808 = vst [vmem:[#allocation2 + $0x218] sm:$0xff] %v2785
        %2809 = vst [vmem:[#allocation2 + $0x240] sm:$0xff] %v2789
        %2810 = vst [vmem:[#allocation2 + $0x268] sm:$0xff] %v2793
        %2811 = vrot.lane.b32.xlu0 %v2371, 64
        %v2812 = vpop.permute.xlu0 %2811
        %2813 = vrot.lane.b32.xlu0 %v2372, 64
        %v2814 = vpop.permute.xlu0 %2813
        %v2816 = vsel %vm339, %v2562, %v2812
        %v2819 = vsel %vm339, %v2564, %v2814
        %2821 = vst [vmem:[#allocation2 + $0x18] sm:$0xff] %v2464
        %2822 = vst [vmem:[#allocation2 + $0x40] sm:$0xff] %v2467
        %2823 = vst [vmem:[#allocation2 + $0x68] sm:$0xff] %v2470
        %2824 = vst [vmem:[#allocation2 + $0x90] sm:$0xff] %v2473
        %2825 = vst [vmem:[#allocation2 + $0xb8] sm:$0xff] %v2476
        %2826 = vst [vmem:[#allocation2 + $0xe0] sm:$0xff] %v2479
        %2827 = vst [vmem:[#allocation2 + $0x108] sm:$0xff] %v2482
        %2828 = vst [vmem:[#allocation2 + $0x130] sm:$0xff] %v2485
        %2829 = vst [vmem:[#allocation2 + $0x158] sm:$0xff] %v2488
        %2830 = vst [vmem:[#allocation2 + $0x180] sm:$0xff] %v2491
        %2831 = vst [vmem:[#allocation2 + $0x1a8] sm:$0xff] %v2494
        %2832 = vst [vmem:[#allocation2 + $0x1d0] sm:$0xff] %v2497
        %2833 = vst [vmem:[#allocation2 + $0x1f8] sm:$0xff] %v2816
        %2834 = vst [vmem:[#allocation2 + $0x220] sm:$0xff] %v2819
        %2835 = vst [vmem:[#allocation2 + $0x248] sm:$0xff] %v770
        %2836 = vst [vmem:[#allocation2 + $0x270] sm:$0xff] %v770
        %v2837 = vsel %vm339, %v2534, 0
        %v2839 = vsel %vm339, %v2536, 0
        %v2841 = vsel %vm339, %v2538, 0
        %v2843 = vsel %vm339, %v2540, 0
        %v2845 = vsel %vm339, %v2542, 0
        %v2847 = vsel %vm339, %v2544, 0
        %v2849 = vsel %vm339, %v2546, 0
        %v2851 = vsel %vm339, %v2548, 0
        %v2853 = vsel %vm339, %v2550, 0
        %v2855 = vsel %vm339, %v2552, 0
        %v2857 = vsel %vm339, %v2554, 0
        %v2859 = vsel %vm339, %v2556, 0
        %v2861 = vsel %vm339, %v2680, 0
        %v2863 = vsel %vm339, %v2682, 0
        %2865 = vst [vmem:[#allocation2 + $0x20] sm:$0xff] %v2837
        %2866 = vst [vmem:[#allocation2 + $0x48] sm:$0xff] %v2839
        %2867 = vst [vmem:[#allocation2 + $0x70] sm:$0xff] %v2841
        %2868 = vst [vmem:[#allocation2 + $0x98] sm:$0xff] %v2843
        %2869 = vst [vmem:[#allocation2 + $0xc0] sm:$0xff] %v2845
        %2870 = vst [vmem:[#allocation2 + $0xe8] sm:$0xff] %v2847
        %2871 = vst [vmem:[#allocation2 + $0x110] sm:$0xff] %v2849
        %2872 = vst [vmem:[#allocation2 + $0x138] sm:$0xff] %v2851
        %2873 = vst [vmem:[#allocation2 + $0x160] sm:$0xff] %v2853
        %2874 = vst [vmem:[#allocation2 + $0x188] sm:$0xff] %v2855
        %2875 = vst [vmem:[#allocation2 + $0x1b0] sm:$0xff] %v2857
        %2876 = vst [vmem:[#allocation2 + $0x1d8] sm:$0xff] %v2859
        %2877 = vst [vmem:[#allocation2 + $0x200] sm:$0xff] %v2861
        %2878 = vst [vmem:[#allocation2 + $0x228] sm:$0xff] %v2863
        %2879 = vst [vmem:[#allocation2 + $0x250] sm:$0xff] %v1184
        %2880 = vst [vmem:[#allocation2 + $0x278] sm:$0xff] %v1184
        %v2881 = vld [vmem:[#allocation2] sm:$0xff]
        %v2882 = vld [vmem:[#allocation2 + $0x8] sm:$0xff]
        %v2883 = vld [vmem:[#allocation2 + $0x10] sm:$0xff]
        %v2884 = vld [vmem:[#allocation2 + $0x18] sm:$0xff]
        %v2885 = vld [vmem:[#allocation2 + $0x20] sm:$0xff]
        %v2886 = vld [vmem:[#allocation2 + $0x28] sm:$0xff]
        %v2887 = vld [vmem:[#allocation2 + $0x30] sm:$0xff]
        %v2888 = vld [vmem:[#allocation2 + $0x38] sm:$0xff]
        %v2889 = vld [vmem:[#allocation2 + $0x40] sm:$0xff]
        %v2890 = vld [vmem:[#allocation2 + $0x48] sm:$0xff]
        %v2891 = vld [vmem:[#allocation2 + $0x50] sm:$0xff]
        %v2892 = vld [vmem:[#allocation2 + $0x58] sm:$0xff]
        %v2893 = vld [vmem:[#allocation2 + $0x60] sm:$0xff]
        %v2894 = vld [vmem:[#allocation2 + $0x68] sm:$0xff]
        %v2895 = vld [vmem:[#allocation2 + $0x70] sm:$0xff]
        %v2896 = vld [vmem:[#allocation2 + $0x78] sm:$0xff]
        %v2897 = vld [vmem:[#allocation2 + $0x80] sm:$0xff]
        %v2898 = vld [vmem:[#allocation2 + $0x88] sm:$0xff]
        %v2899 = vld [vmem:[#allocation2 + $0x90] sm:$0xff]
        %v2900 = vld [vmem:[#allocation2 + $0x98] sm:$0xff]
        %v2901 = vld [vmem:[#allocation2 + $0xa0] sm:$0xff]
        %v2902 = vld [vmem:[#allocation2 + $0xa8] sm:$0xff]
        %v2903 = vld [vmem:[#allocation2 + $0xb0] sm:$0xff]
        %v2904 = vld [vmem:[#allocation2 + $0xb8] sm:$0xff]
        %v2905 = vld [vmem:[#allocation2 + $0xc0] sm:$0xff]
        %v2906 = vld [vmem:[#allocation2 + $0xc8] sm:$0xff]
        %v2907 = vld [vmem:[#allocation2 + $0xd0] sm:$0xff]
        %v2908 = vld [vmem:[#allocation2 + $0xd8] sm:$0xff]
        %v2909 = vld [vmem:[#allocation2 + $0xe0] sm:$0xff]
        %v2910 = vld [vmem:[#allocation2 + $0xe8] sm:$0xff]
        %v2911 = vld [vmem:[#allocation2 + $0xf0] sm:$0xff]
        %v2912 = vld [vmem:[#allocation2 + $0xf8] sm:$0xff]
        %v2913 = vld [vmem:[#allocation2 + $0x100] sm:$0xff]
        %v2914 = vld [vmem:[#allocation2 + $0x108] sm:$0xff]
        %v2915 = vld [vmem:[#allocation2 + $0x110] sm:$0xff]
        %v2916 = vld [vmem:[#allocation2 + $0x118] sm:$0xff]
        %v2917 = vld [vmem:[#allocation2 + $0x120] sm:$0xff]
        %v2918 = vld [vmem:[#allocation2 + $0x128] sm:$0xff]
        %v2919 = vld [vmem:[#allocation2 + $0x130] sm:$0xff]
        %v2920 = vld [vmem:[#allocation2 + $0x138] sm:$0xff]
        %v2921 = vld [vmem:[#allocation2 + $0x140] sm:$0xff]
        %v2922 = vld [vmem:[#allocation2 + $0x148] sm:$0xff]
        %v2923 = vld [vmem:[#allocation2 + $0x150] sm:$0xff]
        %v2924 = vld [vmem:[#allocation2 + $0x158] sm:$0xff]
        %v2925 = vld [vmem:[#allocation2 + $0x160] sm:$0xff]
        %v2926 = vld [vmem:[#allocation2 + $0x168] sm:$0xff]
        %v2927 = vld [vmem:[#allocation2 + $0x170] sm:$0xff]
        %v2928 = vld [vmem:[#allocation2 + $0x178] sm:$0xff]
        %v2929 = vld [vmem:[#allocation2 + $0x180] sm:$0xff]
        %v2930 = vld [vmem:[#allocation2 + $0x188] sm:$0xff]
        %v2931 = vld [vmem:[#allocation2 + $0x190] sm:$0xff]
        %v2932 = vld [vmem:[#allocation2 + $0x198] sm:$0xff]
        %v2933 = vld [vmem:[#allocation2 + $0x1a0] sm:$0xff]
        %v2934 = vld [vmem:[#allocation2 + $0x1a8] sm:$0xff]
        %v2935 = vld [vmem:[#allocation2 + $0x1b0] sm:$0xff]
        %v2936 = vld [vmem:[#allocation2 + $0x1b8] sm:$0xff]
        %v2937 = vld [vmem:[#allocation2 + $0x1c0] sm:$0xff]
        %v2938 = vld [vmem:[#allocation2 + $0x1c8] sm:$0xff]
        %v2939 = vld [vmem:[#allocation2 + $0x1d0] sm:$0xff]
        %v2940 = vld [vmem:[#allocation2 + $0x1d8] sm:$0xff]
        %v2941 = vld [vmem:[#allocation2 + $0x1e0] sm:$0xff]
        %v2942 = vld [vmem:[#allocation2 + $0x1e8] sm:$0xff]
        %v2943 = vld [vmem:[#allocation2 + $0x1f0] sm:$0xff]
        %v2944 = vld [vmem:[#allocation2 + $0x1f8] sm:$0xff]
        %v2945 = vld [vmem:[#allocation2 + $0x200] sm:$0xff]
        %v2946 = vld [vmem:[#allocation2 + $0x208] sm:$0xff]
        %v2947 = vld [vmem:[#allocation2 + $0x210] sm:$0xff]
        %v2948 = vld [vmem:[#allocation2 + $0x218] sm:$0xff]
        %v2949 = vld [vmem:[#allocation2 + $0x220] sm:$0xff]
        %v2950 = vld [vmem:[#allocation2 + $0x228] sm:$0xff]
        %v2951 = vld [vmem:[#allocation2 + $0x230] sm:$0xff]
        %v2952 = vld [vmem:[#allocation2 + $0x238] sm:$0xff]
        %v2953 = vld [vmem:[#allocation2 + $0x240] sm:$0xff]
        %v2954 = vld [vmem:[#allocation2 + $0x248] sm:$0xff]
        %v2955 = vld [vmem:[#allocation2 + $0x250] sm:$0xff]
        %v2956 = vld [vmem:[#allocation2 + $0x258] sm:$0xff]
        %v2957 = vld [vmem:[#allocation2 + $0x260] sm:$0xff]
        %v2958 = vld [vmem:[#allocation2 + $0x268] sm:$0xff]
        %v2959 = vld [vmem:[#allocation2 + $0x270] sm:$0xff]
        %v2960 = vld [vmem:[#allocation2 + $0x278] sm:$0xff]
        %v2961 = vld [vmem:[%s2] sm:$0xf]
        %v2962 = vld [vmem:[%s2 + $0x4] sm:$0xf]
        %v2963 = vld [vmem:[%s2 + $0x8] sm:$0xf]
        %v2964 = vld [vmem:[%s2 + $0xc] sm:$0xf]
        %v2965 = vld [vmem:[%s2 + $0x10] sm:$0xf]
        %v2966 = vld [vmem:[%s2 + $0x14] sm:$0xf]
        %v2967 = vld [vmem:[%s2 + $0x18] sm:$0xf]
        %v2968 = vld [vmem:[%s2 + $0x1c] sm:$0xf]
        %v2969 = vld [vmem:[%s2 + $0x20] sm:$0xf]
        %v2970 = vld [vmem:[%s2 + $0x24] sm:$0xf]
        %v2971 = vld [vmem:[%s2 + $0x28] sm:$0xf]
        %v2972 = vld [vmem:[%s2 + $0x2c] sm:$0xf]
        %v2973 = vld [vmem:[%s2 + $0x30] sm:$0xf]
        %v2974 = vld [vmem:[%s2 + $0x34] sm:$0xf]
        %v2975 = vld [vmem:[%s2 + $0x38] sm:$0xf]
        %v2976 = vld [vmem:[%s2 + $0x3c] sm:$0xf]
        %v2977 = vld [vmem:[%s2 + $0x40] sm:$0xf]
        %v2978 = vld [vmem:[%s2 + $0x44] sm:$0xf]
        %v2979 = vld [vmem:[%s2 + $0x48] sm:$0xf]
        %v2980 = vld [vmem:[%s2 + $0x4c] sm:$0xf]
        %v2981 = vld [vmem:[%s2 + $0x50] sm:$0xf]
        %v2982 = vld [vmem:[%s2 + $0x54] sm:$0xf]
        %v2983 = vld [vmem:[%s2 + $0x58] sm:$0xf]
        %v2984 = vld [vmem:[%s2 + $0x5c] sm:$0xf]
        %v2985 = vld [vmem:[%s2 + $0x60] sm:$0xf]
        %v2986 = vld [vmem:[%s2 + $0x64] sm:$0xf]
        %v2987 = vld [vmem:[%s2 + $0x68] sm:$0xf]
        %v2988 = vld [vmem:[%s2 + $0x6c] sm:$0xf]
        %v2989 = vld [vmem:[%s2 + $0x70] sm:$0xf]
        %v2990 = vld [vmem:[%s2 + $0x74] sm:$0xf]
        %v2991 = vld [vmem:[%s2 + $0x78] sm:$0xf]
        %v2992 = vld [vmem:[%s2 + $0x7c] sm:$0xf]
        %v2993 = vld [vmem:[%s2 + $0x80] sm:$0xf]
        %v2994 = vld [vmem:[%s2 + $0x84] sm:$0xf]
        %v2995 = vld [vmem:[%s2 + $0x88] sm:$0xf]
        %v2996 = vld [vmem:[%s2 + $0x8c] sm:$0xf]
        %v2997 = vld [vmem:[%s2 + $0x90] sm:$0xf]
        %v2998 = vld [vmem:[%s2 + $0x94] sm:$0xf]
        %v2999 = vld [vmem:[%s2 + $0x98] sm:$0xf]
        %v3000 = vld [vmem:[%s2 + $0x9c] sm:$0xf]
        %v3001 = vld [vmem:[%s2 + $0xa0] sm:$0xf]
        %v3002 = vld [vmem:[%s2 + $0xa4] sm:$0xf]
        %v3003 = vld [vmem:[%s2 + $0xa8] sm:$0xf]
        %v3004 = vld [vmem:[%s2 + $0xac] sm:$0xf]
        %v3005 = vld [vmem:[%s2 + $0xb0] sm:$0xf]
        %v3006 = vld [vmem:[%s2 + $0xb4] sm:$0xf]
        %v3007 = vld [vmem:[%s2 + $0xb8] sm:$0xf]
        %v3008 = vld [vmem:[%s2 + $0xbc] sm:$0xf]
        %v3009 = vld [vmem:[%s2 + $0xc0] sm:$0xf]
        %v3010 = vld [vmem:[%s2 + $0xc4] sm:$0xf]
        %v3011 = vld [vmem:[%s2 + $0xc8] sm:$0xf]
        %v3012 = vld [vmem:[%s2 + $0xcc] sm:$0xf]
        %v3013 = vld [vmem:[%s2 + $0xd0] sm:$0xf]
        %v3014 = vld [vmem:[%s2 + $0xd4] sm:$0xf]
        %v3015 = vld [vmem:[%s2 + $0xd8] sm:$0xf]
        %v3016 = vld [vmem:[%s2 + $0xdc] sm:$0xf]
        %v3017 = vld [vmem:[%s2 + $0xe0] sm:$0xf]
        %v3018 = vld [vmem:[%s2 + $0xe4] sm:$0xf]
        %v3019 = vld [vmem:[%s2 + $0xe8] sm:$0xf]
        %v3020 = vld [vmem:[%s2 + $0xec] sm:$0xf]
        %v3021 = vld [vmem:[%s2 + $0xf0] sm:$0xf]
        %v3022 = vld [vmem:[%s2 + $0xf4] sm:$0xf]
        %v3023 = vld [vmem:[%s2 + $0xf8] sm:$0xf]
        %v3024 = vld [vmem:[%s2 + $0xfc] sm:$0xf]
        %v3025 = vld [vmem:[%s2 + $0x100] sm:$0xf]
        %v3026 = vld [vmem:[%s2 + $0x104] sm:$0xf]
        %v3027 = vld [vmem:[%s2 + $0x108] sm:$0xf]
        %v3028 = vld [vmem:[%s2 + $0x10c] sm:$0xf]
        %v3029 = vld [vmem:[%s2 + $0x110] sm:$0xf]
        %v3030 = vld [vmem:[%s2 + $0x114] sm:$0xf]
        %v3031 = vld [vmem:[%s2 + $0x118] sm:$0xf]
        %v3032 = vld [vmem:[%s2 + $0x11c] sm:$0xf]
        %v3033 = vld [vmem:[%s2 + $0x120] sm:$0xf]
        %v3034 = vld [vmem:[%s2 + $0x124] sm:$0xf]
        %v3035 = vld [vmem:[%s2 + $0x128] sm:$0xf]
        %v3036 = vld [vmem:[%s2 + $0x12c] sm:$0xf]
        %v3037 = vld [vmem:[%s2 + $0x130] sm:$0xf]
        %v3038 = vld [vmem:[%s2 + $0x134] sm:$0xf]
        %v3039 = vld [vmem:[%s2 + $0x138] sm:$0xf]
        %v3040 = vld [vmem:[%s2 + $0x13c] sm:$0xf]
        %v3121 = vunpack.c.l.b16 %v2961
        %v3122 = vunpack.c.l.b16 %v2962
        %v3123 = vunpack.c.l.b16 %v2963
        %v3124 = vunpack.c.l.b16 %v2964
        %v3125 = vunpack.c.l.b16 %v2965
        %v3126 = vunpack.c.l.b16 %v2966
        %v3127 = vunpack.c.l.b16 %v2967
        %v3128 = vunpack.c.l.b16 %v2968
        %v3129 = vunpack.c.l.b16 %v2969
        %v3130 = vunpack.c.l.b16 %v2970
        %v3131 = vunpack.c.l.b16 %v2971
        %v3132 = vunpack.c.l.b16 %v2972
        %v3133 = vunpack.c.l.b16 %v2973
        %v3134 = vunpack.c.l.b16 %v2974
        %v3135 = vunpack.c.l.b16 %v2975
        %v3136 = vunpack.c.l.b16 %v2976
        %v3137 = vunpack.c.l.b16 %v2977
        %v3138 = vunpack.c.l.b16 %v2978
        %v3139 = vunpack.c.l.b16 %v2979
        %v3140 = vunpack.c.l.b16 %v2980
        %v3141 = vunpack.c.l.b16 %v2981
        %v3142 = vunpack.c.l.b16 %v2982
        %v3143 = vunpack.c.l.b16 %v2983
        %v3144 = vunpack.c.l.b16 %v2984
        %v3145 = vunpack.c.l.b16 %v2985
        %v3146 = vunpack.c.l.b16 %v2986
        %v3147 = vunpack.c.l.b16 %v2987
        %v3148 = vunpack.c.l.b16 %v2988
        %v3149 = vunpack.c.l.b16 %v2989
        %v3150 = vunpack.c.l.b16 %v2990
        %v3151 = vunpack.c.l.b16 %v2991
        %v3152 = vunpack.c.l.b16 %v2992
        %v3153 = vunpack.c.l.b16 %v2993
        %v3154 = vunpack.c.l.b16 %v2994
        %v3155 = vunpack.c.l.b16 %v2995
        %v3156 = vunpack.c.l.b16 %v2996
        %v3157 = vunpack.c.l.b16 %v2997
        %v3158 = vunpack.c.l.b16 %v2998
        %v3159 = vunpack.c.l.b16 %v2999
        %v3160 = vunpack.c.l.b16 %v3000
        %v3161 = vunpack.c.l.b16 %v3001
        %v3162 = vunpack.c.l.b16 %v3002
        %v3163 = vunpack.c.l.b16 %v3003
        %v3164 = vunpack.c.l.b16 %v3004
        %v3165 = vunpack.c.l.b16 %v3005
        %v3166 = vunpack.c.l.b16 %v3006
        %v3167 = vunpack.c.l.b16 %v3007
        %v3168 = vunpack.c.l.b16 %v3008
        %v3169 = vunpack.c.l.b16 %v3009
        %v3170 = vunpack.c.l.b16 %v3010
        %v3171 = vunpack.c.l.b16 %v3011
        %v3172 = vunpack.c.l.b16 %v3012
        %v3173 = vunpack.c.l.b16 %v3013
        %v3174 = vunpack.c.l.b16 %v3014
        %v3175 = vunpack.c.l.b16 %v3015
        %v3176 = vunpack.c.l.b16 %v3016
        %v3177 = vunpack.c.l.b16 %v3017
        %v3178 = vunpack.c.l.b16 %v3018
        %v3179 = vunpack.c.l.b16 %v3019
        %v3180 = vunpack.c.l.b16 %v3020
        %v3181 = vunpack.c.l.b16 %v3021
        %v3182 = vunpack.c.l.b16 %v3022
        %v3183 = vunpack.c.l.b16 %v3023
        %v3184 = vunpack.c.l.b16 %v3024
        %v3185 = vunpack.c.l.b16 %v3025
        %v3186 = vunpack.c.l.b16 %v3026
        %v3187 = vunpack.c.l.b16 %v3027
        %v3188 = vunpack.c.l.b16 %v3028
        %v3189 = vunpack.c.l.b16 %v3029
        %v3190 = vunpack.c.l.b16 %v3030
        %v3191 = vunpack.c.l.b16 %v3031
        %v3192 = vunpack.c.l.b16 %v3032
        %v3193 = vunpack.c.l.b16 %v3033
        %v3194 = vunpack.c.l.b16 %v3034
        %v3195 = vunpack.c.l.b16 %v3035
        %v3196 = vunpack.c.l.b16 %v3036
        %v3197 = vunpack.c.l.b16 %v3037
        %v3198 = vunpack.c.l.b16 %v3038
        %v3199 = vunpack.c.l.b16 %v3039
        %v3200 = vunpack.c.l.b16 %v3040
        %v3201 = vpack.c.b16 %v3122, %v3121
        %v3202 = vpack.c.b16 %v3124, %v3123
        %v3203 = vpack.c.b16 %v3126, %v3125
        %v3204 = vpack.c.b16 %v3128, %v3127
        %v3205 = vpack.c.b16 %v3130, %v3129
        %v3206 = vpack.c.b16 %v3132, %v3131
        %v3207 = vpack.c.b16 %v3134, %v3133
        %v3208 = vpack.c.b16 %v3136, %v3135
        %v3209 = vpack.c.b16 %v3138, %v3137
        %v3210 = vpack.c.b16 %v3140, %v3139
        %v3211 = vpack.c.b16 %v3142, %v3141
        %v3212 = vpack.c.b16 %v3144, %v3143
        %v3213 = vpack.c.b16 %v3146, %v3145
        %v3214 = vpack.c.b16 %v3148, %v3147
        %v3215 = vpack.c.b16 %v3150, %v3149
        %v3216 = vpack.c.b16 %v3152, %v3151
        %v3217 = vpack.c.b16 %v3154, %v3153
        %v3218 = vpack.c.b16 %v3156, %v3155
        %v3219 = vpack.c.b16 %v3158, %v3157
        %v3220 = vpack.c.b16 %v3160, %v3159
        %v3221 = vpack.c.b16 %v3162, %v3161
        %v3222 = vpack.c.b16 %v3164, %v3163
        %v3223 = vpack.c.b16 %v3166, %v3165
        %v3224 = vpack.c.b16 %v3168, %v3167
        %v3225 = vpack.c.b16 %v3170, %v3169
        %v3226 = vpack.c.b16 %v3172, %v3171
        %v3227 = vpack.c.b16 %v3174, %v3173
        %v3228 = vpack.c.b16 %v3176, %v3175
        %v3229 = vpack.c.b16 %v3178, %v3177
        %v3230 = vpack.c.b16 %v3180, %v3179
        %v3231 = vpack.c.b16 %v3182, %v3181
        %v3232 = vpack.c.b16 %v3184, %v3183
        %v3233 = vpack.c.b16 %v3186, %v3185
        %v3234 = vpack.c.b16 %v3188, %v3187
        %v3235 = vpack.c.b16 %v3190, %v3189
        %v3236 = vpack.c.b16 %v3192, %v3191
        %v3237 = vpack.c.b16 %v3194, %v3193
        %v3238 = vpack.c.b16 %v3196, %v3195
        %v3239 = vpack.c.b16 %v3198, %v3197
        %v3240 = vpack.c.b16 %v3200, %v3199
        %3281 = vmatprep.subr.bf16.mxu0 0
        %3282 = vmatpush1.bf16.msra.mxu0 %v3201
        %3283 = vmatprep.subr.bf16.mxu0 0
        %3284 = vmatpush1.bf16.msra.mxu0 %v3202
        %3285 = vmatprep.subr.bf16.mxu0 0
        %3286 = vmatpush1.bf16.msra.mxu0 %v3203
        %3287 = vmatprep.subr.bf16.mxu0 0
        %3288 = vmatpush1.bf16.msra.mxu0 %v3204
        %3289 = vmatprep.subr.bf16.mxu0 0
        %3290 = vmatpush1.bf16.msra.mxu0 %v3205
        %3291 = vmatprep.subr.bf16.mxu0 0
        %3292 = vmatpush1.bf16.msra.mxu0 %v3206
        %3293 = vmatprep.subr.bf16.mxu0 0
        %3294 = vmatpush1.bf16.msra.mxu0 %v3207
        %3295 = vmatprep.subr.bf16.mxu0 0
        %3296 = vmatpush1.bf16.msra.mxu0 %v3208
        %3297 = vmatprep.subr.bf16.mxu0 0
        %3298 = vmatpush1.bf16.msra.mxu0 %v3209
        %3299 = vmatprep.subr.bf16.mxu0 0
        %3300 = vmatpush1.bf16.msra.mxu0 %v3210
        %3301 = vmatprep.subr.bf16.mxu0 0
        %3302 = vmatpush1.bf16.msra.mxu0 %v3211
        %3303 = vmatprep.subr.bf16.mxu0 0
        %3304 = vmatpush1.bf16.msra.mxu0 %v3212
        %3305 = vmatprep.subr.bf16.mxu0 0
        %3306 = vmatpush1.bf16.msra.mxu0 %v3213
        %3307 = vmatprep.subr.bf16.mxu0 0
        %3308 = vmatpush1.bf16.msra.mxu0 %v3214
        %3309 = vmatprep.subr.bf16.mxu0 0
        %3310 = vmatpush1.bf16.msra.mxu0 %v3215
        %3311 = vmatprep.subr.bf16.mxu0 0
        %3312 = vmatpush1.bf16.msra.mxu0 %v3216
        %3313 = vmatprep.mubr.bf16.mxu0 %v2882
        %3314 = vmatmul.mubr.bf16.gmra.mrb[0].mxu0 %v2881
        %v3315 = vpop.f32.mrb[0].mxu0
        %v3316 = vadd.f32 0.0, %v3315
        %v3317 = vpop.f32.mrb[0].mxu0
        %v3318 = vpop.f32.mrb[0].mxu0
        %v3319 = vadd.f32 0.0, %v3318
        %v3320 = vpop.f32.mrb[0].mxu0
        %3321 = vmatprep.mubr.bf16.mxu0 %v2887
        %3322 = vmatmul.mubr.bf16.gmra.mrb[0].mxu0 %v2886
        %v3323 = vpop.f32.mrb[0].mxu0
        %v3324 = vadd.f32 0.0, %v3323
        %v3325 = vpop.f32.mrb[0].mxu0
        %v3326 = vpop.f32.mrb[0].mxu0
        %v3327 = vadd.f32 0.0, %v3326
        %v3328 = vpop.f32.mrb[0].mxu0
        %3329 = vmatprep.mubr.bf16.mxu0 %v2892
        %3330 = vmatmul.mubr.bf16.gmra.mrb[0].mxu0 %v2891
        %v3331 = vpop.f32.mrb[0].mxu0
        %v3332 = vadd.f32 0.0, %v3331
        %v3333 = vpop.f32.mrb[0].mxu0
        %v3334 = vpop.f32.mrb[0].mxu0
        %v3335 = vadd.f32 0.0, %v3334
        %v3336 = vpop.f32.mrb[0].mxu0
        %3337 = vmatprep.mubr.bf16.mxu0 %v2897
        %3338 = vmatmul.mubr.bf16.gmra.mrb[0].mxu0 %v2896
        %v3339 = vpop.f32.mrb[0].mxu0
        %v3340 = vadd.f32 0.0, %v3339
        %v3341 = vpop.f32.mrb[0].mxu0
        %v3342 = vpop.f32.mrb[0].mxu0
        %v3343 = vadd.f32 0.0, %v3342
        %v3344 = vpop.f32.mrb[0].mxu0
        %3345 = vmatprep.mubr.bf16.mxu0 %v2902
        %3346 = vmatmul.mubr.bf16.gmra.mrb[0].mxu0 %v2901
        %v3347 = vpop.f32.mrb[0].mxu0
        %v3348 = vadd.f32 0.0, %v3347
        %v3349 = vpop.f32.mrb[0].mxu0
        %v3350 = vpop.f32.mrb[0].mxu0
        %v3351 = vadd.f32 0.0, %v3350
        %v3352 = vpop.f32.mrb[0].mxu0
        %3353 = vmatprep.mubr.bf16.mxu0 %v2907
        %3354 = vmatmul.mubr.bf16.gmra.mrb[0].mxu0 %v2906
        %v3355 = vpop.f32.mrb[0].mxu0
        %v3356 = vadd.f32 0.0, %v3355
        %v3357 = vpop.f32.mrb[0].mxu0
        %v3358 = vpop.f32.mrb[0].mxu0
        %v3359 = vadd.f32 0.0, %v3358
        %v3360 = vpop.f32.mrb[0].mxu0
        %3361 = vmatprep.mubr.bf16.mxu0 %v2912
        %3362 = vmatmul.mubr.bf16.gmra.mrb[0].mxu0 %v2911
        %v3363 = vpop.f32.mrb[0].mxu0
        %v3364 = vadd.f32 0.0, %v3363
        %v3365 = vpop.f32.mrb[0].mxu0
        %v3366 = vpop.f32.mrb[0].mxu0
        %v3367 = vadd.f32 0.0, %v3366
        %v3368 = vpop.f32.mrb[0].mxu0
        %3369 = vmatprep.mubr.bf16.mxu0 %v2917
        %3370 = vmatmul.mubr.bf16.gmra.mrb[0].mxu0 %v2916
        %v3371 = vpop.f32.mrb[0].mxu0
        %v3372 = vadd.f32 0.0, %v3371
        %v3373 = vpop.f32.mrb[0].mxu0
        %v3374 = vpop.f32.mrb[0].mxu0
        %v3375 = vadd.f32 0.0, %v3374
        %v3376 = vpop.f32.mrb[0].mxu0
        %3377 = vmatprep.mubr.bf16.mxu0 %v2922
        %3378 = vmatmul.mubr.bf16.gmra.mrb[0].mxu0 %v2921
        %v3379 = vpop.f32.mrb[0].mxu0
        %v3380 = vadd.f32 0.0, %v3379
        %v3381 = vpop.f32.mrb[0].mxu0
        %v3382 = vpop.f32.mrb[0].mxu0
        %v3383 = vadd.f32 0.0, %v3382
        %v3384 = vpop.f32.mrb[0].mxu0
        %3385 = vmatprep.mubr.bf16.mxu0 %v2927
        %3386 = vmatmul.mubr.bf16.gmra.mrb[0].mxu0 %v2926
        %v3387 = vpop.f32.mrb[0].mxu0
        %v3388 = vadd.f32 0.0, %v3387
        %v3389 = vpop.f32.mrb[0].mxu0
        %v3390 = vpop.f32.mrb[0].mxu0
        %v3391 = vadd.f32 0.0, %v3390
        %v3392 = vpop.f32.mrb[0].mxu0
        %3393 = vmatprep.mubr.bf16.mxu0 %v2932
        %3394 = vmatmul.mubr.bf16.gmra.mrb[0].mxu0 %v2931
        %v3395 = vpop.f32.mrb[0].mxu0
        %v3396 = vadd.f32 0.0, %v3395
        %v3397 = vpop.f32.mrb[0].mxu0
        %v3398 = vpop.f32.mrb[0].mxu0
        %v3399 = vadd.f32 0.0, %v3398
        %v3400 = vpop.f32.mrb[0].mxu0
        %3401 = vmatprep.mubr.bf16.mxu0 %v2937
        %3402 = vmatmul.mubr.bf16.gmra.mrb[0].mxu0 %v2936
        %v3403 = vpop.f32.mrb[0].mxu0
        %v3404 = vadd.f32 0.0, %v3403
        %v3405 = vpop.f32.mrb[0].mxu0
        %v3406 = vpop.f32.mrb[0].mxu0
        %v3407 = vadd.f32 0.0, %v3406
        %v3408 = vpop.f32.mrb[0].mxu0
        %3409 = vmatprep.mubr.bf16.mxu0 %v2942
        %3410 = vmatmul.mubr.bf16.gmra.mrb[0].mxu0 %v2941
        %v3411 = vpop.f32.mrb[0].mxu0
        %v3412 = vadd.f32 0.0, %v3411
        %v3413 = vpop.f32.mrb[0].mxu0
        %v3414 = vpop.f32.mrb[0].mxu0
        %v3415 = vadd.f32 0.0, %v3414
        %v3416 = vpop.f32.mrb[0].mxu0
        %3417 = vmatprep.mubr.bf16.mxu0 %v2947
        %3418 = vmatmul.mubr.bf16.gmra.mrb[0].mxu0 %v2946
        %v3419 = vpop.f32.mrb[0].mxu0
        %v3420 = vadd.f32 0.0, %v3419
        %v3421 = vpop.f32.mrb[0].mxu0
        %v3422 = vpop.f32.mrb[0].mxu0
        %v3423 = vadd.f32 0.0, %v3422
        %v3424 = vpop.f32.mrb[0].mxu0
        %3425 = vmatprep.mubr.bf16.mxu0 %v2952
        %3426 = vmatmul.mubr.bf16.gmra.mrb[0].mxu0 %v2951
        %v3427 = vpop.f32.mrb[0].mxu0
        %v3428 = vadd.f32 0.0, %v3427
        %v3429 = vpop.f32.mrb[0].mxu0
        %v3430 = vpop.f32.mrb[0].mxu0
        %v3431 = vadd.f32 0.0, %v3430
        %v3432 = vpop.f32.mrb[0].mxu0
        %3433 = vmatprep.mubr.bf16.mxu0 %v2957
        %3434 = vmatmul.mubr.bf16.gmra.mrb[0].mxu0 %v2956
        %v3435 = vpop.f32.mrb[0].mxu0
        %v3436 = vadd.f32 0.0, %v3435
        %v3437 = vpop.f32.mrb[0].mxu0
        %v3438 = vpop.f32.mrb[0].mxu0
        %v3439 = vadd.f32 0.0, %v3438
        %v3440 = vpop.f32.mrb[0].mxu0
        %3441 = vdwg.mxu0
        %3442 = vmatprep.subr.bf16.mxu0 0
        %3443 = vmatpush1.bf16.msra.mxu0 %v3217
        %3444 = vmatprep.subr.bf16.mxu0 0
        %3445 = vmatpush1.bf16.msra.mxu0 %v3218
        %3446 = vmatprep.subr.bf16.mxu0 0
        %3447 = vmatpush1.bf16.msra.mxu0 %v3219
        %3448 = vmatprep.subr.bf16.mxu0 0
        %3449 = vmatpush1.bf16.msra.mxu0 %v3220
        %3450 = vmatprep.subr.bf16.mxu0 0
        %3451 = vmatpush1.bf16.msra.mxu0 %v3221
        %3452 = vmatprep.subr.bf16.mxu0 0
        %3453 = vmatpush1.bf16.msra.mxu0 %v3222
        %3454 = vmatprep.subr.bf16.mxu0 0
        %3455 = vmatpush1.bf16.msra.mxu0 %v3223
        %3456 = vmatprep.subr.bf16.mxu0 0
        %3457 = vmatpush1.bf16.msra.mxu0 %v3224
        %3458 = vmatprep.subr.bf16.mxu0 0
        %3459 = vmatpush1.bf16.msra.mxu0 %v3225
        %3460 = vmatprep.subr.bf16.mxu0 0
        %3461 = vmatpush1.bf16.msra.mxu0 %v3226
        %3462 = vmatprep.subr.bf16.mxu0 0
        %3463 = vmatpush1.bf16.msra.mxu0 %v3227
        %3464 = vmatprep.subr.bf16.mxu0 0
        %3465 = vmatpush1.bf16.msra.mxu0 %v3228
        %3466 = vmatprep.subr.bf16.mxu0 0
        %3467 = vmatpush1.bf16.msra.mxu0 %v3229
        %3468 = vmatprep.subr.bf16.mxu0 0
        %3469 = vmatpush1.bf16.msra.mxu0 %v3230
        %3470 = vmatprep.subr.bf16.mxu0 0
        %3471 = vmatpush1.bf16.msra.mxu0 %v3231
        %3472 = vmatprep.subr.bf16.mxu0 0
        %3473 = vmatpush1.bf16.msra.mxu0 %v3232
        %3474 = vmatprep.mubr.bf16.mxu0 %v2884
        %3475 = vmatmul.mubr.bf16.gmra.mrb[0].mxu0 %v2883
        %v3476 = vpop.f32.mrb[0].mxu0
        %v3477 = vadd.f32 %v3316, %v3476
        %v3478 = vpop.f32.mrb[0].mxu0
        %v3479 = vpop.f32.mrb[0].mxu0
        %v3480 = vadd.f32 %v3319, %v3479
        %v3481 = vpop.f32.mrb[0].mxu0
        %3482 = vmatprep.mubr.bf16.mxu0 %v2889
        %3483 = vmatmul.mubr.bf16.gmra.mrb[0].mxu0 %v2888
        %v3484 = vpop.f32.mrb[0].mxu0
        %v3485 = vadd.f32 %v3324, %v3484
        %v3486 = vpop.f32.mrb[0].mxu0
        %v3487 = vpop.f32.mrb[0].mxu0
        %v3488 = vadd.f32 %v3327, %v3487
        %v3489 = vpop.f32.mrb[0].mxu0
        %3490 = vmatprep.mubr.bf16.mxu0 %v2894
        %3491 = vmatmul.mubr.bf16.gmra.mrb[0].mxu0 %v2893
        %v3492 = vpop.f32.mrb[0].mxu0
        %v3493 = vadd.f32 %v3332, %v3492
        %v3494 = vpop.f32.mrb[0].mxu0
        %v3495 = vpop.f32.mrb[0].mxu0
        %v3496 = vadd.f32 %v3335, %v3495
        %v3497 = vpop.f32.mrb[0].mxu0
        %3498 = vmatprep.mubr.bf16.mxu0 %v2899
        %3499 = vmatmul.mubr.bf16.gmra.mrb[0].mxu0 %v2898
        %v3500 = vpop.f32.mrb[0].mxu0
        %v3501 = vadd.f32 %v3340, %v3500
        %v3502 = vpop.f32.mrb[0].mxu0
        %v3503 = vpop.f32.mrb[0].mxu0
        %v3504 = vadd.f32 %v3343, %v3503
        %v3505 = vpop.f32.mrb[0].mxu0
        %3506 = vmatprep.mubr.bf16.mxu0 %v2904
        %3507 = vmatmul.mubr.bf16.gmra.mrb[0].mxu0 %v2903
        %v3508 = vpop.f32.mrb[0].mxu0
        %v3509 = vadd.f32 %v3348, %v3508
        %v3510 = vpop.f32.mrb[0].mxu0
        %v3511 = vpop.f32.mrb[0].mxu0
        %v3512 = vadd.f32 %v3351, %v3511
        %v3513 = vpop.f32.mrb[0].mxu0
        %3514 = vmatprep.mubr.bf16.mxu0 %v2909
        %3515 = vmatmul.mubr.bf16.gmra.mrb[0].mxu0 %v2908
        %v3516 = vpop.f32.mrb[0].mxu0
        %v3517 = vadd.f32 %v3356, %v3516
        %v3518 = vpop.f32.mrb[0].mxu0
        %v3519 = vpop.f32.mrb[0].mxu0
        %v3520 = vadd.f32 %v3359, %v3519
        %v3521 = vpop.f32.mrb[0].mxu0
        %3522 = vmatprep.mubr.bf16.mxu0 %v2914
        %3523 = vmatmul.mubr.bf16.gmra.mrb[0].mxu0 %v2913
        %v3524 = vpop.f32.mrb[0].mxu0
        %v3525 = vadd.f32 %v3364, %v3524
        %v3526 = vpop.f32.mrb[0].mxu0
        %v3527 = vpop.f32.mrb[0].mxu0
        %v3528 = vadd.f32 %v3367, %v3527
        %v3529 = vpop.f32.mrb[0].mxu0
        %3530 = vmatprep.mubr.bf16.mxu0 %v2919
        %3531 = vmatmul.mubr.bf16.gmra.mrb[0].mxu0 %v2918
        %v3532 = vpop.f32.mrb[0].mxu0
        %v3533 = vadd.f32 %v3372, %v3532
        %v3534 = vpop.f32.mrb[0].mxu0
        %v3535 = vpop.f32.mrb[0].mxu0
        %v3536 = vadd.f32 %v3375, %v3535
        %v3537 = vpop.f32.mrb[0].mxu0
        %3538 = vmatprep.mubr.bf16.mxu0 %v2924
        %3539 = vmatmul.mubr.bf16.gmra.mrb[0].mxu0 %v2923
        %v3540 = vpop.f32.mrb[0].mxu0
        %v3541 = vadd.f32 %v3380, %v3540
        %v3542 = vpop.f32.mrb[0].mxu0
        %v3543 = vpop.f32.mrb[0].mxu0
        %v3544 = vadd.f32 %v3383, %v3543
        %v3545 = vpop.f32.mrb[0].mxu0
        %3546 = vmatprep.mubr.bf16.mxu0 %v2929
        %3547 = vmatmul.mubr.bf16.gmra.mrb[0].mxu0 %v2928
        %v3548 = vpop.f32.mrb[0].mxu0
        %v3549 = vadd.f32 %v3388, %v3548
        %v3550 = vpop.f32.mrb[0].mxu0
        %v3551 = vpop.f32.mrb[0].mxu0
        %v3552 = vadd.f32 %v3391, %v3551
        %v3553 = vpop.f32.mrb[0].mxu0
        %3554 = vmatprep.mubr.bf16.mxu0 %v2934
        %3555 = vmatmul.mubr.bf16.gmra.mrb[0].mxu0 %v2933
        %v3556 = vpop.f32.mrb[0].mxu0
        %v3557 = vadd.f32 %v3396, %v3556
        %v3558 = vpop.f32.mrb[0].mxu0
        %v3559 = vpop.f32.mrb[0].mxu0
        %v3560 = vadd.f32 %v3399, %v3559
        %v3561 = vpop.f32.mrb[0].mxu0
        %3562 = vmatprep.mubr.bf16.mxu0 %v2939
        %3563 = vmatmul.mubr.bf16.gmra.mrb[0].mxu0 %v2938
        %v3564 = vpop.f32.mrb[0].mxu0
        %v3565 = vadd.f32 %v3404, %v3564
        %v3566 = vpop.f32.mrb[0].mxu0
        %v3567 = vpop.f32.mrb[0].mxu0
        %v3568 = vadd.f32 %v3407, %v3567
        %v3569 = vpop.f32.mrb[0].mxu0
        %3570 = vmatprep.mubr.bf16.mxu0 %v2944
        %3571 = vmatmul.mubr.bf16.gmra.mrb[0].mxu0 %v2943
        %v3572 = vpop.f32.mrb[0].mxu0
        %v3573 = vadd.f32 %v3412, %v3572
        %v3574 = vpop.f32.mrb[0].mxu0
        %v3575 = vpop.f32.mrb[0].mxu0
        %v3576 = vadd.f32 %v3415, %v3575
        %v3577 = vpop.f32.mrb[0].mxu0
        %3578 = vmatprep.mubr.bf16.mxu0 %v2949
        %3579 = vmatmul.mubr.bf16.gmra.mrb[0].mxu0 %v2948
        %v3580 = vpop.f32.mrb[0].mxu0
        %v3581 = vadd.f32 %v3420, %v3580
        %v3582 = vpop.f32.mrb[0].mxu0
        %v3583 = vpop.f32.mrb[0].mxu0
        %v3584 = vadd.f32 %v3423, %v3583
        %v3585 = vpop.f32.mrb[0].mxu0
        %3586 = vmatprep.mubr.bf16.mxu0 %v2954
        %3587 = vmatmul.mubr.bf16.gmra.mrb[0].mxu0 %v2953
        %v3588 = vpop.f32.mrb[0].mxu0
        %v3589 = vadd.f32 %v3428, %v3588
        %v3590 = vpop.f32.mrb[0].mxu0
        %v3591 = vpop.f32.mrb[0].mxu0
        %v3592 = vadd.f32 %v3431, %v3591
        %v3593 = vpop.f32.mrb[0].mxu0
        %3594 = vmatprep.mubr.bf16.mxu0 %v2959
        %3595 = vmatmul.mubr.bf16.gmra.mrb[0].mxu0 %v2958
        %v3596 = vpop.f32.mrb[0].mxu0
        %v3597 = vadd.f32 %v3436, %v3596
        %v3598 = vpop.f32.mrb[0].mxu0
        %v3599 = vpop.f32.mrb[0].mxu0
        %v3600 = vadd.f32 %v3439, %v3599
        %v3601 = vpop.f32.mrb[0].mxu0
        %3602 = vdwg.mxu0
        %3603 = vmatprep.subr.bf16.mxu0 0
        %3604 = vmatpush1.bf16.msra.mxu0 %v3233
        %3605 = vmatprep.subr.bf16.mxu0 0
        %3606 = vmatpush1.bf16.msra.mxu0 %v3234
        %3607 = vmatprep.subr.bf16.mxu0 0
        %3608 = vmatpush1.bf16.msra.mxu0 %v3235
        %3609 = vmatprep.subr.bf16.mxu0 0
        %3610 = vmatpush1.bf16.msra.mxu0 %v3236
        %3611 = vmatprep.subr.bf16.mxu0 0
        %3612 = vmatpush1.bf16.msra.mxu0 %v3237
        %3613 = vmatprep.subr.bf16.mxu0 0
        %3614 = vmatpush1.bf16.msra.mxu0 %v3238
        %3615 = vmatprep.subr.bf16.mxu0 0
        %3616 = vmatpush1.bf16.msra.mxu0 %v3239
        %3617 = vmatprep.subr.bf16.mxu0 0
        %3618 = vmatpush1.bf16.msra.mxu0 %v3240
        %3619 = vmatprep.subr.bf16.mxu0 0
        %3620 = vmatpush1.bf16.msra.mxu0 0
        %3621 = vmatprep.subr.bf16.mxu0 0
        %3622 = vmatpush1.bf16.msra.mxu0 0
        %3623 = vmatprep.subr.bf16.mxu0 0
        %3624 = vmatpush1.bf16.msra.mxu0 0
        %3625 = vmatprep.subr.bf16.mxu0 0
        %3626 = vmatpush1.bf16.msra.mxu0 0
        %3627 = vmatprep.subr.bf16.mxu0 0
        %3628 = vmatpush1.bf16.msra.mxu0 0
        %3629 = vmatprep.subr.bf16.mxu0 0
        %3630 = vmatpush1.bf16.msra.mxu0 0
        %3631 = vmatprep.subr.bf16.mxu0 0
        %3632 = vmatpush1.bf16.msra.mxu0 0
        %3633 = vmatprep.subr.bf16.mxu0 0
        %3634 = vmatpush1.bf16.msra.mxu0 0
        %3635 = vmatprep.mubr.bf16.mxu0 0
        %3636 = vmatmul.mubr.bf16.gmra.mrb[0].mxu0 %v2885
        %v3637 = vpop.f32.mrb[0].mxu0
        %v3638 = vadd.f32 %v3477, %v3637
        %v3639 = vpop.f32.mrb[0].mxu0
        %v3640 = vpop.f32.mrb[0].mxu0
        %v3641 = vadd.f32 %v3480, %v3640
        %v3642 = vpop.f32.mrb[0].mxu0
        %3643 = vmatprep.mubr.bf16.mxu0 0
        %3644 = vmatmul.mubr.bf16.gmra.mrb[0].mxu0 %v2890
        %v3645 = vpop.f32.mrb[0].mxu0
        %v3646 = vadd.f32 %v3485, %v3645
        %v3647 = vpop.f32.mrb[0].mxu0
        %v3648 = vpop.f32.mrb[0].mxu0
        %v3649 = vadd.f32 %v3488, %v3648
        %v3650 = vpop.f32.mrb[0].mxu0
        %3651 = vmatprep.mubr.bf16.mxu0 0
        %3652 = vmatmul.mubr.bf16.gmra.mrb[0].mxu0 %v2895
        %v3653 = vpop.f32.mrb[0].mxu0
        %v3654 = vadd.f32 %v3493, %v3653
        %v3655 = vpop.f32.mrb[0].mxu0
        %v3656 = vpop.f32.mrb[0].mxu0
        %v3657 = vadd.f32 %v3496, %v3656
        %v3658 = vpop.f32.mrb[0].mxu0
        %3659 = vmatprep.mubr.bf16.mxu0 0
        %3660 = vmatmul.mubr.bf16.gmra.mrb[0].mxu0 %v2900
        %v3661 = vpop.f32.mrb[0].mxu0
        %v3662 = vadd.f32 %v3501, %v3661
        %v3663 = vpop.f32.mrb[0].mxu0
        %v3664 = vpop.f32.mrb[0].mxu0
        %v3665 = vadd.f32 %v3504, %v3664
        %v3666 = vpop.f32.mrb[0].mxu0
        %3667 = vmatprep.mubr.bf16.mxu0 0
        %3668 = vmatmul.mubr.bf16.gmra.mrb[0].mxu0 %v2905
        %v3669 = vpop.f32.mrb[0].mxu0
        %v3670 = vadd.f32 %v3509, %v3669
        %v3671 = vpop.f32.mrb[0].mxu0
        %v3672 = vpop.f32.mrb[0].mxu0
        %v3673 = vadd.f32 %v3512, %v3672
        %v3674 = vpop.f32.mrb[0].mxu0
        %3675 = vmatprep.mubr.bf16.mxu0 0
        %3676 = vmatmul.mubr.bf16.gmra.mrb[0].mxu0 %v2910
        %v3677 = vpop.f32.mrb[0].mxu0
        %v3678 = vadd.f32 %v3517, %v3677
        %v3679 = vpop.f32.mrb[0].mxu0
        %v3680 = vpop.f32.mrb[0].mxu0
        %v3681 = vadd.f32 %v3520, %v3680
        %v3682 = vpop.f32.mrb[0].mxu0
        %3683 = vmatprep.mubr.bf16.mxu0 0
        %3684 = vmatmul.mubr.bf16.gmra.mrb[0].mxu0 %v2915
        %v3685 = vpop.f32.mrb[0].mxu0
        %v3686 = vadd.f32 %v3525, %v3685
        %v3687 = vpop.f32.mrb[0].mxu0
        %v3688 = vpop.f32.mrb[0].mxu0
        %v3689 = vadd.f32 %v3528, %v3688
        %v3690 = vpop.f32.mrb[0].mxu0
        %3691 = vmatprep.mubr.bf16.mxu0 0
        %3692 = vmatmul.mubr.bf16.gmra.mrb[0].mxu0 %v2920
        %v3693 = vpop.f32.mrb[0].mxu0
        %v3694 = vadd.f32 %v3533, %v3693
        %v3695 = vpop.f32.mrb[0].mxu0
        %v3696 = vpop.f32.mrb[0].mxu0
        %v3697 = vadd.f32 %v3536, %v3696
        %v3698 = vpop.f32.mrb[0].mxu0
        %3699 = vmatprep.mubr.bf16.mxu0 0
        %3700 = vmatmul.mubr.bf16.gmra.mrb[0].mxu0 %v2925
        %v3701 = vpop.f32.mrb[0].mxu0
        %v3702 = vadd.f32 %v3541, %v3701
        %v3703 = vpop.f32.mrb[0].mxu0
        %v3704 = vpop.f32.mrb[0].mxu0
        %v3705 = vadd.f32 %v3544, %v3704
        %v3706 = vpop.f32.mrb[0].mxu0
        %3707 = vmatprep.mubr.bf16.mxu0 0
        %3708 = vmatmul.mubr.bf16.gmra.mrb[0].mxu0 %v2930
        %v3709 = vpop.f32.mrb[0].mxu0
        %v3710 = vadd.f32 %v3549, %v3709
        %v3711 = vpop.f32.mrb[0].mxu0
        %v3712 = vpop.f32.mrb[0].mxu0
        %v3713 = vadd.f32 %v3552, %v3712
        %v3714 = vpop.f32.mrb[0].mxu0
        %3715 = vmatprep.mubr.bf16.mxu0 0
        %3716 = vmatmul.mubr.bf16.gmra.mrb[0].mxu0 %v2935
        %v3717 = vpop.f32.mrb[0].mxu0
        %v3718 = vadd.f32 %v3557, %v3717
        %v3719 = vpop.f32.mrb[0].mxu0
        %v3720 = vpop.f32.mrb[0].mxu0
        %v3721 = vadd.f32 %v3560, %v3720
        %v3722 = vpop.f32.mrb[0].mxu0
        %3723 = vmatprep.mubr.bf16.mxu0 0
        %3724 = vmatmul.mubr.bf16.gmra.mrb[0].mxu0 %v2940
        %v3725 = vpop.f32.mrb[0].mxu0
        %v3726 = vadd.f32 %v3565, %v3725
        %v3727 = vpop.f32.mrb[0].mxu0
        %v3728 = vpop.f32.mrb[0].mxu0
        %v3729 = vadd.f32 %v3568, %v3728
        %v3730 = vpop.f32.mrb[0].mxu0
        %3731 = vmatprep.mubr.bf16.mxu0 0
        %3732 = vmatmul.mubr.bf16.gmra.mrb[0].mxu0 %v2945
        %v3733 = vpop.f32.mrb[0].mxu0
        %v3734 = vadd.f32 %v3573, %v3733
        %v3735 = vpop.f32.mrb[0].mxu0
        %v3736 = vpop.f32.mrb[0].mxu0
        %v3737 = vadd.f32 %v3576, %v3736
        %v3738 = vpop.f32.mrb[0].mxu0
        %3739 = vmatprep.mubr.bf16.mxu0 0
        %3740 = vmatmul.mubr.bf16.gmra.mrb[0].mxu0 %v2950
        %v3741 = vpop.f32.mrb[0].mxu0
        %v3742 = vadd.f32 %v3581, %v3741
        %v3743 = vpop.f32.mrb[0].mxu0
        %v3744 = vpop.f32.mrb[0].mxu0
        %v3745 = vadd.f32 %v3584, %v3744
        %v3746 = vpop.f32.mrb[0].mxu0
        %3747 = vmatprep.mubr.bf16.mxu0 0
        %3748 = vmatmul.mubr.bf16.gmra.mrb[0].mxu0 %v2955
        %v3749 = vpop.f32.mrb[0].mxu0
        %v3750 = vadd.f32 %v3589, %v3749
        %v3751 = vpop.f32.mrb[0].mxu0
        %v3752 = vpop.f32.mrb[0].mxu0
        %v3753 = vadd.f32 %v3592, %v3752
        %v3754 = vpop.f32.mrb[0].mxu0
        %3755 = vmatprep.mubr.bf16.mxu0 0
        %3756 = vmatmul.mubr.bf16.gmra.mrb[0].mxu0 %v2960
        %v3757 = vpop.f32.mrb[0].mxu0
        %v3758 = vadd.f32 %v3597, %v3757
        %v3759 = vpop.f32.mrb[0].mxu0
        %v3760 = vpop.f32.mrb[0].mxu0
        %v3761 = vadd.f32 %v3600, %v3760
        %v3762 = vpop.f32.mrb[0].mxu0
        %3763 = vdwg.mxu0
        %v3764 = vsel %vm339, %v3638, 0.0
        %v3765 = vsel %vm339, %v3641, 0.0
        %v3766 = vadd.f32 %v3764, %v3765
        %v3767 = vsel %vm339, %v3646, 0.0
        %v3768 = vadd.f32 %v3766, %v3767
        %v3769 = vsel %vm339, %v3649, 0.0
        %v3770 = vadd.f32 %v3768, %v3769
        %v3771 = vsel %vm339, %v3654, 0.0
        %v3772 = vadd.f32 %v3770, %v3771
        %v3773 = vsel %vm339, %v3657, 0.0
        %v3774 = vadd.f32 %v3772, %v3773
        %v3775 = vsel %vm339, %v3662, 0.0
        %v3776 = vadd.f32 %v3774, %v3775
        %v3777 = vsel %vm339, %v3665, 0.0
        %v3778 = vadd.f32 %v3776, %v3777
        %v3779 = vsel %vm339, %v3670, 0.0
        %v3780 = vadd.f32 %v3778, %v3779
        %v3781 = vsel %vm339, %v3673, 0.0
        %v3782 = vadd.f32 %v3780, %v3781
        %v3783 = vsel %vm339, %v3678, 0.0
        %v3784 = vadd.f32 %v3782, %v3783
        %v3785 = vsel %vm339, %v3681, 0.0
        %v3786 = vadd.f32 %v3784, %v3785
        %v3787 = vsel %vm339, %v3686, 0.0
        %v3788 = vadd.f32 %v3786, %v3787
        %v3789 = vsel %vm339, %v3689, 0.0
        %v3790 = vadd.f32 %v3788, %v3789
        %v3791 = vsel %vm339, %v3694, 0.0
        %v3792 = vadd.f32 %v3790, %v3791
        %v3793 = vsel %vm339, %v3697, 0.0
        %v3794 = vadd.f32 %v3792, %v3793
        %v3795 = vsel %vm339, %v3702, 0.0
        %v3796 = vadd.f32 %v3794, %v3795
        %v3797 = vsel %vm339, %v3705, 0.0
        %v3798 = vadd.f32 %v3796, %v3797
        %v3799 = vsel %vm339, %v3710, 0.0
        %v3800 = vadd.f32 %v3798, %v3799
        %v3801 = vsel %vm339, %v3713, 0.0
        %v3802 = vadd.f32 %v3800, %v3801
        %v3803 = vsel %vm339, %v3718, 0.0
        %v3804 = vadd.f32 %v3802, %v3803
        %v3805 = vsel %vm339, %v3721, 0.0
        %v3806 = vadd.f32 %v3804, %v3805
        %v3807 = vsel %vm339, %v3726, 0.0
        %v3808 = vadd.f32 %v3806, %v3807
        %v3809 = vsel %vm339, %v3729, 0.0
        %v3810 = vadd.f32 %v3808, %v3809
        %v3811 = vsel %vm339, %v3734, 0.0
        %v3812 = vadd.f32 %v3810, %v3811
        %v3813 = vsel %vm339, %v3737, 0.0
        %v3814 = vadd.f32 %v3812, %v3813
        %v3815 = vsel %vm339, %v3742, 0.0
        %v3816 = vadd.f32 %v3814, %v3815
        %v3817 = vsel %vm339, %v3745, 0.0
        %v3818 = vadd.f32 %v3816, %v3817
        %v3819 = vsel %vm339, %v3750, 0.0
        %v3820 = vadd.f32 %v3818, %v3819
        %v3821 = vsel %vm339, %v3753, 0.0
        %v3822 = vadd.f32 %v3820, %v3821
        %v3823 = vsel %vm339, %v3758, 0.0
        %v3824 = vadd.f32 %v3822, %v3823
        %v3825 = vsel %vm339, %v3761, 0.0
        %v3826 = vadd.f32 %v3824, %v3825
        %v3827 = vrot.slane %v3826, 4
        %v3828 = vadd.f32 %v3826, %v3827
        %v3829 = vrot.slane %v3828, 2
        %v3830 = vadd.f32 %v3828, %v3829
        %v3831 = vrot.slane %v3830, 1
        %v3832 = vadd.f32 %v3830, %v3831
        %v3833 = vmul.f32 %v3638, %v3638
        %v3834 = vmul.f32 %v3641, %v3641
        %v3835 = vmul.f32 %v3646, %v3646
        %v3836 = vmul.f32 %v3649, %v3649
        %v3837 = vmul.f32 %v3654, %v3654
        %v3838 = vmul.f32 %v3657, %v3657
        %v3839 = vmul.f32 %v3662, %v3662
        %v3840 = vmul.f32 %v3665, %v3665
        %v3841 = vmul.f32 %v3670, %v3670
        %v3842 = vmul.f32 %v3673, %v3673
        %v3843 = vmul.f32 %v3678, %v3678
        %v3844 = vmul.f32 %v3681, %v3681
        %v3845 = vmul.f32 %v3686, %v3686
        %v3846 = vmul.f32 %v3689, %v3689
        %v3847 = vmul.f32 %v3694, %v3694
        %v3848 = vmul.f32 %v3697, %v3697
        %v3849 = vmul.f32 %v3702, %v3702
        %v3850 = vmul.f32 %v3705, %v3705
        %v3851 = vmul.f32 %v3710, %v3710
        %v3852 = vmul.f32 %v3713, %v3713
        %v3853 = vmul.f32 %v3718, %v3718
        %v3854 = vmul.f32 %v3721, %v3721
        %v3855 = vmul.f32 %v3726, %v3726
        %v3856 = vmul.f32 %v3729, %v3729
        %v3857 = vmul.f32 %v3734, %v3734
        %v3858 = vmul.f32 %v3737, %v3737
        %v3859 = vmul.f32 %v3742, %v3742
        %v3860 = vmul.f32 %v3745, %v3745
        %v3861 = vmul.f32 %v3750, %v3750
        %v3862 = vmul.f32 %v3753, %v3753
        %v3863 = vmul.f32 %v3758, %v3758
        %v3864 = vmul.f32 %v3761, %v3761
        %v3865 = vsel %vm339, %v3833, 0.0
        %v3866 = vsel %vm339, %v3834, 0.0
        %v3867 = vadd.f32 %v3865, %v3866
        %v3868 = vsel %vm339, %v3835, 0.0
        %v3869 = vadd.f32 %v3867, %v3868
        %v3870 = vsel %vm339, %v3836, 0.0
        %v3871 = vadd.f32 %v3869, %v3870
        %v3872 = vsel %vm339, %v3837, 0.0
        %v3873 = vadd.f32 %v3871, %v3872
        %v3874 = vsel %vm339, %v3838, 0.0
        %v3875 = vadd.f32 %v3873, %v3874
        %v3876 = vsel %vm339, %v3839, 0.0
        %v3877 = vadd.f32 %v3875, %v3876
        %v3878 = vsel %vm339, %v3840, 0.0
        %v3879 = vadd.f32 %v3877, %v3878
        %v3880 = vsel %vm339, %v3841, 0.0
        %v3881 = vadd.f32 %v3879, %v3880
        %v3882 = vsel %vm339, %v3842, 0.0
        %v3883 = vadd.f32 %v3881, %v3882
        %v3884 = vsel %vm339, %v3843, 0.0
        %v3885 = vadd.f32 %v3883, %v3884
        %v3886 = vsel %vm339, %v3844, 0.0
        %v3887 = vadd.f32 %v3885, %v3886
        %v3888 = vsel %vm339, %v3845, 0.0
        %v3889 = vadd.f32 %v3887, %v3888
        %v3890 = vsel %vm339, %v3846, 0.0
        %v3891 = vadd.f32 %v3889, %v3890
        %v3892 = vsel %vm339, %v3847, 0.0
        %v3893 = vadd.f32 %v3891, %v3892
        %v3894 = vsel %vm339, %v3848, 0.0
        %v3895 = vadd.f32 %v3893, %v3894
        %v3896 = vsel %vm339, %v3849, 0.0
        %v3897 = vadd.f32 %v3895, %v3896
        %v3898 = vsel %vm339, %v3850, 0.0
        %v3899 = vadd.f32 %v3897, %v3898
        %v3900 = vsel %vm339, %v3851, 0.0
        %v3901 = vadd.f32 %v3899, %v3900
        %v3902 = vsel %vm339, %v3852, 0.0
        %v3903 = vadd.f32 %v3901, %v3902
        %v3904 = vsel %vm339, %v3853, 0.0
        %v3905 = vadd.f32 %v3903, %v3904
        %v3906 = vsel %vm339, %v3854, 0.0
        %v3907 = vadd.f32 %v3905, %v3906
        %v3908 = vsel %vm339, %v3855, 0.0
        %v3909 = vadd.f32 %v3907, %v3908
        %v3910 = vsel %vm339, %v3856, 0.0
        %v3911 = vadd.f32 %v3909, %v3910
        %v3912 = vsel %vm339, %v3857, 0.0
        %v3913 = vadd.f32 %v3911, %v3912
        %v3914 = vsel %vm339, %v3858, 0.0
        %v3915 = vadd.f32 %v3913, %v3914
        %v3916 = vsel %vm339, %v3859, 0.0
        %v3917 = vadd.f32 %v3915, %v3916
        %v3918 = vsel %vm339, %v3860, 0.0
        %v3919 = vadd.f32 %v3917, %v3918
        %v3920 = vsel %vm339, %v3861, 0.0
        %v3921 = vadd.f32 %v3919, %v3920
        %v3922 = vsel %vm339, %v3862, 0.0
        %v3923 = vadd.f32 %v3921, %v3922
        %v3924 = vsel %vm339, %v3863, 0.0
        %v3925 = vadd.f32 %v3923, %v3924
        %v3926 = vsel %vm339, %v3864, 0.0
        %v3927 = vadd.f32 %v3925, %v3926
        %v3928 = vrot.slane %v3927, 4
        %v3929 = vadd.f32 %v3927, %v3928
        %v3930 = vrot.slane %v3929, 2
        %v3931 = vadd.f32 %v3929, %v3930
        %v3932 = vrot.slane %v3931, 1
        %v3933 = vadd.f32 %v3931, %v3932
        %v3934 = vmul.f32 %v3832, 0.00390625
        %v3935 = vmul.f32 %v3933, 0.00390625
        %v3936 = vmul.f32 %v3934, %v3934
        %v3937 = vsub.f32 %v3935, %v3936
        %v3938 = vsub.f32 %v3638, %v3934
        %v3939 = vsub.f32 %v3641, %v3934
        %v3940 = vsub.f32 %v3646, %v3934
        %v3941 = vsub.f32 %v3649, %v3934
        %v3942 = vsub.f32 %v3654, %v3934
        %v3943 = vsub.f32 %v3657, %v3934
        %v3944 = vsub.f32 %v3662, %v3934
        %v3945 = vsub.f32 %v3665, %v3934
        %v3946 = vsub.f32 %v3670, %v3934
        %v3947 = vsub.f32 %v3673, %v3934
        %v3948 = vsub.f32 %v3678, %v3934
        %v3949 = vsub.f32 %v3681, %v3934
        %v3950 = vsub.f32 %v3686, %v3934
        %v3951 = vsub.f32 %v3689, %v3934
        %v3952 = vsub.f32 %v3694, %v3934
        %v3953 = vsub.f32 %v3697, %v3934
        %v3954 = vsub.f32 %v3702, %v3934
        %v3955 = vsub.f32 %v3705, %v3934
        %v3956 = vsub.f32 %v3710, %v3934
        %v3957 = vsub.f32 %v3713, %v3934
        %v3958 = vsub.f32 %v3718, %v3934
        %v3959 = vsub.f32 %v3721, %v3934
        %v3960 = vsub.f32 %v3726, %v3934
        %v3961 = vsub.f32 %v3729, %v3934
        %v3962 = vsub.f32 %v3734, %v3934
        %v3963 = vsub.f32 %v3737, %v3934
        %v3964 = vsub.f32 %v3742, %v3934
        %v3965 = vsub.f32 %v3745, %v3934
        %v3966 = vsub.f32 %v3750, %v3934
        %v3967 = vsub.f32 %v3753, %v3934
        %v3968 = vsub.f32 %v3758, %v3934
        %v3969 = vsub.f32 %v3761, %v3934
        %v3970 = vadd.f32 %v3937, 1e-05
        %v3971 = vrsqrt.pop %v3970
        %v3972 = vmul.f32 %v3938, %v3971
        %v3973 = vmul.f32 %v3939, %v3971
        %v3974 = vmul.f32 %v3940, %v3971
        %v3975 = vmul.f32 %v3941, %v3971
        %v3976 = vmul.f32 %v3942, %v3971
        %v3977 = vmul.f32 %v3943, %v3971
        %v3978 = vmul.f32 %v3944, %v3971
        %v3979 = vmul.f32 %v3945, %v3971
        %v3980 = vmul.f32 %v3946, %v3971
        %v3981 = vmul.f32 %v3947, %v3971
        %v3982 = vmul.f32 %v3948, %v3971
        %v3983 = vmul.f32 %v3949, %v3971
        %v3984 = vmul.f32 %v3950, %v3971
        %v3985 = vmul.f32 %v3951, %v3971
        %v3986 = vmul.f32 %v3952, %v3971
        %v3987 = vmul.f32 %v3953, %v3971
        %v3988 = vmul.f32 %v3954, %v3971
        %v3989 = vmul.f32 %v3955, %v3971
        %v3990 = vmul.f32 %v3956, %v3971
        %v3991 = vmul.f32 %v3957, %v3971
        %v3992 = vmul.f32 %v3958, %v3971
        %v3993 = vmul.f32 %v3959, %v3971
        %v3994 = vmul.f32 %v3960, %v3971
        %v3995 = vmul.f32 %v3961, %v3971
        %v3996 = vmul.f32 %v3962, %v3971
        %v3997 = vmul.f32 %v3963, %v3971
        %v3998 = vmul.f32 %v3964, %v3971
        %v3999 = vmul.f32 %v3965, %v3971
        %v4000 = vmul.f32 %v3966, %v3971
        %v4001 = vmul.f32 %v3967, %v3971
        %v4002 = vmul.f32 %v3968, %v3971
        %v4003 = vmul.f32 %v3969, %v3971
        %v4004 = vsel %vm339, %v3972, 0.0
        %v4005 = vsel %vm339, %v3973, 0.0
        %v4006 = vadd.f32 %v4004, %v4005
        %v4007 = vsel %vm339, %v3974, 0.0
        %v4008 = vadd.f32 %v4006, %v4007
        %v4009 = vsel %vm339, %v3975, 0.0
        %v4010 = vadd.f32 %v4008, %v4009
        %v4011 = vsel %vm339, %v3976, 0.0
        %v4012 = vadd.f32 %v4010, %v4011
        %v4013 = vsel %vm339, %v3977, 0.0
        %v4014 = vadd.f32 %v4012, %v4013
        %v4015 = vsel %vm339, %v3978, 0.0
        %v4016 = vadd.f32 %v4014, %v4015
        %v4017 = vsel %vm339, %v3979, 0.0
        %v4018 = vadd.f32 %v4016, %v4017
        %v4019 = vsel %vm339, %v3980, 0.0
        %v4020 = vadd.f32 %v4018, %v4019
        %v4021 = vsel %vm339, %v3981, 0.0
        %v4022 = vadd.f32 %v4020, %v4021
        %v4023 = vsel %vm339, %v3982, 0.0
        %v4024 = vadd.f32 %v4022, %v4023
        %v4025 = vsel %vm339, %v3983, 0.0
        %v4026 = vadd.f32 %v4024, %v4025
        %v4027 = vsel %vm339, %v3984, 0.0
        %v4028 = vadd.f32 %v4026, %v4027
        %v4029 = vsel %vm339, %v3985, 0.0
        %v4030 = vadd.f32 %v4028, %v4029
        %v4031 = vsel %vm339, %v3986, 0.0
        %v4032 = vadd.f32 %v4030, %v4031
        %v4033 = vsel %vm339, %v3987, 0.0
        %v4034 = vadd.f32 %v4032, %v4033
        %v4035 = vsel %vm339, %v3988, 0.0
        %v4036 = vadd.f32 %v4034, %v4035
        %v4037 = vsel %vm339, %v3989, 0.0
        %v4038 = vadd.f32 %v4036, %v4037
        %v4039 = vsel %vm339, %v3990, 0.0
        %v4040 = vadd.f32 %v4038, %v4039
        %v4041 = vsel %vm339, %v3991, 0.0
        %v4042 = vadd.f32 %v4040, %v4041
        %v4043 = vsel %vm339, %v3992, 0.0
        %v4044 = vadd.f32 %v4042, %v4043
        %v4045 = vsel %vm339, %v3993, 0.0
        %v4046 = vadd.f32 %v4044, %v4045
        %v4047 = vsel %vm339, %v3994, 0.0
        %v4048 = vadd.f32 %v4046, %v4047
        %v4049 = vsel %vm339, %v3995, 0.0
        %v4050 = vadd.f32 %v4048, %v4049
        %v4051 = vsel %vm339, %v3996, 0.0
        %v4052 = vadd.f32 %v4050, %v4051
        %v4053 = vsel %vm339, %v3997, 0.0
        %v4054 = vadd.f32 %v4052, %v4053
        %v4055 = vsel %vm339, %v3998, 0.0
        %v4056 = vadd.f32 %v4054, %v4055
        %v4057 = vsel %vm339, %v3999, 0.0
        %v4058 = vadd.f32 %v4056, %v4057
        %v4059 = vsel %vm339, %v4000, 0.0
        %v4060 = vadd.f32 %v4058, %v4059
        %v4061 = vsel %vm339, %v4001, 0.0
        %v4062 = vadd.f32 %v4060, %v4061
        %v4063 = vsel %vm339, %v4002, 0.0
        %v4064 = vadd.f32 %v4062, %v4063
        %v4065 = vsel %vm339, %v4003, 0.0
        %v4066 = vadd.f32 %v4064, %v4065
        %v4067 = vrot.slane %v4066, 4
        %v4068 = vadd.f32 %v4066, %v4067
        %v4069 = vrot.slane %v4068, 2
        %v4070 = vadd.f32 %v4068, %v4069
        %v4071 = vrot.slane %v4070, 1
        %v4072 = vadd.f32 %v4070, %v4071
        %v4073 = vrcp.pop 256.0
        %v4074 = vmul.f32 %v4072, %v4073
        %v4075 = vld [vmem:[%s3] sm:$0xff]
        %v4076 = vld [vmem:[%s3 + $0x8] sm:$0xff]
        %v4077 = vld [vmem:[%s3 + $0x10] sm:$0xff]
        %v4078 = vld [vmem:[%s3 + $0x18] sm:$0xff]
        %v4079 = vld [vmem:[%s3 + $0x20] sm:$0xff]
        %v4080 = vld [vmem:[%s3 + $0x28] sm:$0xff]
        %v4081 = vld [vmem:[%s3 + $0x30] sm:$0xff]
        %v4082 = vld [vmem:[%s3 + $0x38] sm:$0xff]
        %v4084 = vsel %vm339, %v4074, 0
        %4086 = vmatprep.subr.mxu0 0.0
        %4087 = vmatpush1.msra.mxu0 %v4075
        %4088 = vmatprep.subr.mxu0 0.0
        %4089 = vmatpush1.msra.mxu0 %v4076
        %4090 = vmatprep.subr.mxu0 0.0
        %4091 = vmatpush1.msra.mxu0 %v4077
        %4092 = vmatprep.subr.mxu0 0.0
        %4093 = vmatpush1.msra.mxu0 %v4078
        %4094 = vmatprep.subr.mxu0 0.0
        %4095 = vmatpush1.msra.mxu0 %v4079
        %4096 = vmatprep.subr.mxu0 0.0
        %4097 = vmatpush1.msra.mxu0 %v4080
        %4098 = vmatprep.subr.mxu0 0.0
        %4099 = vmatpush1.msra.mxu0 %v4081
        %4100 = vmatprep.subr.mxu0 0.0
        %4101 = vmatpush1.msra.mxu0 %v4082
        %4102 = vmatprep.subr.mxu0 0.0
        %4103 = vmatpush1.msra.mxu0 0.0
        %4104 = vmatprep.subr.mxu0 0.0
        %4105 = vmatpush1.msra.mxu0 0.0
        %4106 = vmatprep.subr.mxu0 0.0
        %4107 = vmatpush1.msra.mxu0 0.0
        %4108 = vmatprep.subr.mxu0 0.0
        %4109 = vmatpush1.msra.mxu0 0.0
        %4110 = vmatprep.subr.mxu0 0.0
        %4111 = vmatpush1.msra.mxu0 0.0
        %4112 = vmatprep.subr.mxu0 0.0
        %4113 = vmatpush1.msra.mxu0 0.0
        %4114 = vmatprep.subr.mxu0 0.0
        %4115 = vmatpush1.msra.mxu0 0.0
        %4116 = vmatprep.subr.mxu0 0.0
        %4117 = vmatpush1.msra.mxu0 0.0
        %4118 = vmatprep.subr.mxu0 0.0
        %4119 = vmatpush1.msra.mxu0 0.0
        %4120 = vmatprep.subr.mxu0 0.0
        %4121 = vmatpush1.msra.mxu0 0.0
        %4122 = vmatprep.subr.mxu0 0.0
        %4123 = vmatpush1.msra.mxu0 0.0
        %4124 = vmatprep.subr.mxu0 0.0
        %4125 = vmatpush1.msra.mxu0 0.0
        %4126 = vmatprep.subr.mxu0 0.0
        %4127 = vmatpush1.msra.mxu0 0.0
        %4128 = vmatprep.subr.mxu0 0.0
        %4129 = vmatpush1.msra.mxu0 0.0
        %4130 = vmatprep.subr.mxu0 0.0
        %4131 = vmatpush1.msra.mxu0 0.0
        %4132 = vmatprep.subr.mxu0 0.0
        %4133 = vmatpush1.msra.mxu0 0.0
        %4134 = vmatprep.subr.mxu0 0.0
        %4135 = vmatpush1.msra.mxu0 0.0
        %4136 = vmatprep.subr.mxu0 0.0
        %4137 = vmatpush1.msra.mxu0 0.0
        %4138 = vmatprep.subr.mxu0 0.0
        %4139 = vmatpush1.msra.mxu0 0.0
        %4140 = vmatprep.subr.mxu0 0.0
        %4141 = vmatpush1.msra.mxu0 0.0
        %4142 = vmatprep.subr.mxu0 0.0
        %4143 = vmatpush1.msra.mxu0 0.0
        %4144 = vmatprep.subr.mxu0 0.0
        %4145 = vmatpush1.msra.mxu0 0.0
        %4146 = vmatprep.subr.mxu0 0.0
        %4147 = vmatpush1.msra.mxu0 0.0
        %4148 = vmatprep.subr.mxu0 0.0
        %4149 = vmatpush1.msra.mxu0 0.0
        %4150 = vmatprep.mubr.f32.mxu0 0.0
        %4151 = vmatmul.mubr.f32.gmra.mrb[0].mxu0 %v4084
        %v4152 = vpop.f32.mrb[0].mxu0
        %v4153 = vadd.f32 0.0, %v4152
        %v4154 = vpop.f32.mrb[0].mxu0
        %4155 = vdwg.mxu0
        %v4156 = vmax.f32 %v4153, 0.0
        %v4157 = vld [vmem:[%s4] sm:$0xff]
        %v4158 = vld [vmem:[%s4 + $0x8] sm:$0xff]
        %v4159 = vld [vmem:[%s4 + $0x10] sm:$0xff]
        %v4160 = vld [vmem:[%s4 + $0x18] sm:$0xff]
        %v4161 = vld [vmem:[%s4 + $0x20] sm:$0xff]
        %v4162 = vld [vmem:[%s4 + $0x28] sm:$0xff]
        %v4163 = vld [vmem:[%s4 + $0x30] sm:$0xff]
        %v4164 = vld [vmem:[%s4 + $0x38] sm:$0xff]
        %v4165 = vld [vmem:[%s4 + $0x40] sm:$0xff]
        %v4166 = vld [vmem:[%s4 + $0x48] sm:$0xff]
        %v4167 = vld [vmem:[%s4 + $0x50] sm:$0xff]
        %v4168 = vld [vmem:[%s4 + $0x58] sm:$0xff]
        %v4169 = vld [vmem:[%s4 + $0x60] sm:$0xff]
        %v4170 = vld [vmem:[%s4 + $0x68] sm:$0xff]
        %v4171 = vld [vmem:[%s4 + $0x70] sm:$0xff]
        %v4172 = vld [vmem:[%s4 + $0x78] sm:$0xff]
        %4173 = vmatprep.subr.mxu0 0.0
        %4174 = vmatpush1.msra.mxu0 %v4157
        %4175 = vmatprep.subr.mxu0 0.0
        %4176 = vmatpush1.msra.mxu0 %v4158
        %4177 = vmatprep.subr.mxu0 0.0
        %4178 = vmatpush1.msra.mxu0 %v4159
        %4179 = vmatprep.subr.mxu0 0.0
        %4180 = vmatpush1.msra.mxu0 %v4160
        %4181 = vmatprep.subr.mxu0 0.0
        %4182 = vmatpush1.msra.mxu0 %v4161
        %4183 = vmatprep.subr.mxu0 0.0
        %4184 = vmatpush1.msra.mxu0 %v4162
        %4185 = vmatprep.subr.mxu0 0.0
        %4186 = vmatpush1.msra.mxu0 %v4163
        %4187 = vmatprep.subr.mxu0 0.0
        %4188 = vmatpush1.msra.mxu0 %v4164
        %4189 = vmatprep.subr.mxu0 0.0
        %4190 = vmatpush1.msra.mxu0 %v4165
        %4191 = vmatprep.subr.mxu0 0.0
        %4192 = vmatpush1.msra.mxu0 %v4166
        %4193 = vmatprep.subr.mxu0 0.0
        %4194 = vmatpush1.msra.mxu0 %v4167
        %4195 = vmatprep.subr.mxu0 0.0
        %4196 = vmatpush1.msra.mxu0 %v4168
        %4197 = vmatprep.subr.mxu0 0.0
        %4198 = vmatpush1.msra.mxu0 %v4169
        %4199 = vmatprep.subr.mxu0 0.0
        %4200 = vmatpush1.msra.mxu0 %v4170
        %4201 = vmatprep.subr.mxu0 0.0
        %4202 = vmatpush1.msra.mxu0 %v4171
        %4203 = vmatprep.subr.mxu0 0.0
        %4204 = vmatpush1.msra.mxu0 %v4172
        %4205 = vmatprep.subr.mxu0 0.0
        %4206 = vmatpush1.msra.mxu0 0.0
        %4207 = vmatprep.subr.mxu0 0.0
        %4208 = vmatpush1.msra.mxu0 0.0
        %4209 = vmatprep.subr.mxu0 0.0
        %4210 = vmatpush1.msra.mxu0 0.0
        %4211 = vmatprep.subr.mxu0 0.0
        %4212 = vmatpush1.msra.mxu0 0.0
        %4213 = vmatprep.subr.mxu0 0.0
        %4214 = vmatpush1.msra.mxu0 0.0
        %4215 = vmatprep.subr.mxu0 0.0
        %4216 = vmatpush1.msra.mxu0 0.0
        %4217 = vmatprep.subr.mxu0 0.0
        %4218 = vmatpush1.msra.mxu0 0.0
        %4219 = vmatprep.subr.mxu0 0.0
        %4220 = vmatpush1.msra.mxu0 0.0
        %4221 = vmatprep.subr.mxu0 0.0
        %4222 = vmatpush1.msra.mxu0 0.0
        %4223 = vmatprep.subr.mxu0 0.0
        %4224 = vmatpush1.msra.mxu0 0.0
        %4225 = vmatprep.subr.mxu0 0.0
        %4226 = vmatpush1.msra.mxu0 0.0
        %4227 = vmatprep.subr.mxu0 0.0
        %4228 = vmatpush1.msra.mxu0 0.0
        %4229 = vmatprep.subr.mxu0 0.0
        %4230 = vmatpush1.msra.mxu0 0.0
        %4231 = vmatprep.subr.mxu0 0.0
        %4232 = vmatpush1.msra.mxu0 0.0
        %4233 = vmatprep.subr.mxu0 0.0
        %4234 = vmatpush1.msra.mxu0 0.0
        %4235 = vmatprep.subr.mxu0 0.0
        %4236 = vmatpush1.msra.mxu0 0.0
        %4237 = vmatprep.mubr.f32.mxu0 0.0
        %4238 = vmatmul.mubr.f32.gmra.mrb[0].mxu0 %v4156
        %v4239 = vpop.f32.mrb[0].mxu0
        %v4240 = vadd.f32 0.0, %v4239
        %v4241 = vpop.f32.mrb[0].mxu0
        %4242 = vdwg.mxu0
        %v4243 = vxor.u32 %v4240, 2147483648
        %v4244 = vmul.f32 %v4243, 1.442695
        %v4245 = vpow.pop %v4244
        %v4246 = vadd.f32 %v4245, 1.0
        %v4247 = vrcp.pop %v4246
        %v4248 = vmul.f32 1.0, %v4247
        %v4249 = vlaneseq
        %v4250 = vshrl.u32 %v4249, 7
        %v4251 = vsub.s32 0, %v4250
        %v4252 = vrot.slane %v4248, %v4251
        %v4253 = vmul.f32 %v3972, %v4252
        %v4254 = vmul.f32 %v3973, %v4252
        %v4255 = vmul.f32 %v3974, %v4252
        %v4256 = vmul.f32 %v3975, %v4252
        %v4257 = vmul.f32 %v3976, %v4252
        %v4258 = vmul.f32 %v3977, %v4252
        %v4259 = vmul.f32 %v3978, %v4252
        %v4260 = vmul.f32 %v3979, %v4252
        %v4261 = vmul.f32 %v3980, %v4252
        %v4262 = vmul.f32 %v3981, %v4252
        %v4263 = vmul.f32 %v3982, %v4252
        %v4264 = vmul.f32 %v3983, %v4252
        %v4265 = vmul.f32 %v3984, %v4252
        %v4266 = vmul.f32 %v3985, %v4252
        %v4267 = vmul.f32 %v3986, %v4252
        %v4268 = vmul.f32 %v3987, %v4252
        %v4269 = vmul.f32 %v3988, %v4252
        %v4270 = vmul.f32 %v3989, %v4252
        %v4271 = vmul.f32 %v3990, %v4252
        %v4272 = vmul.f32 %v3991, %v4252
        %v4273 = vmul.f32 %v3992, %v4252
        %v4274 = vmul.f32 %v3993, %v4252
        %v4275 = vmul.f32 %v3994, %v4252
        %v4276 = vmul.f32 %v3995, %v4252
        %v4277 = vmul.f32 %v3996, %v4252
        %v4278 = vmul.f32 %v3997, %v4252
        %v4279 = vmul.f32 %v3998, %v4252
        %v4280 = vmul.f32 %v3999, %v4252
        %v4281 = vmul.f32 %v4000, %v4252
        %v4282 = vmul.f32 %v4001, %v4252
        %v4283 = vmul.f32 %v4002, %v4252
        %v4284 = vmul.f32 %v4003, %v4252
        %v4285 = vld [vmem:[%s5] sm:$0xff]
        %v4286 = vld [vmem:[%s5 + $0x8] sm:$0xff]
        %v4287 = vld [vmem:[%s5 + $0x10] sm:$0xff]
        %v4288 = vld [vmem:[%s5 + $0x18] sm:$0xff]
        %v4289 = vld [vmem:[%s5 + $0x20] sm:$0xff]
        %v4290 = vld [vmem:[%s5 + $0x28] sm:$0xff]
        %v4291 = vld [vmem:[%s5 + $0x30] sm:$0xff]
        %v4292 = vld [vmem:[%s5 + $0x38] sm:$0xff]
        %v4293 = vld [vmem:[%s5 + $0x40] sm:$0xff]
        %v4294 = vld [vmem:[%s5 + $0x48] sm:$0xff]
        %v4295 = vld [vmem:[%s5 + $0x50] sm:$0xff]
        %v4296 = vld [vmem:[%s5 + $0x58] sm:$0xff]
        %v4297 = vld [vmem:[%s5 + $0x60] sm:$0xff]
        %v4298 = vld [vmem:[%s5 + $0x68] sm:$0xff]
        %v4299 = vld [vmem:[%s5 + $0x70] sm:$0xff]
        %v4300 = vld [vmem:[%s5 + $0x78] sm:$0xff]
        %v4301 = vld [vmem:[%s5 + $0x80] sm:$0xff]
        %v4302 = vld [vmem:[%s5 + $0x88] sm:$0xff]
        %v4303 = vld [vmem:[%s5 + $0x90] sm:$0xff]
        %v4304 = vld [vmem:[%s5 + $0x98] sm:$0xff]
        %v4305 = vld [vmem:[%s5 + $0xa0] sm:$0xff]
        %v4306 = vld [vmem:[%s5 + $0xa8] sm:$0xff]
        %v4307 = vld [vmem:[%s5 + $0xb0] sm:$0xff]
        %v4308 = vld [vmem:[%s5 + $0xb8] sm:$0xff]
        %v4309 = vld [vmem:[%s5 + $0xc0] sm:$0xff]
        %v4310 = vld [vmem:[%s5 + $0xc8] sm:$0xff]
        %v4311 = vld [vmem:[%s5 + $0xd0] sm:$0xff]
        %v4312 = vld [vmem:[%s5 + $0xd8] sm:$0xff]
        %v4313 = vld [vmem:[%s5 + $0xe0] sm:$0xff]
        %v4314 = vld [vmem:[%s5 + $0xe8] sm:$0xff]
        %v4315 = vld [vmem:[%s5 + $0xf0] sm:$0xff]
        %v4316 = vld [vmem:[%s5 + $0xf8] sm:$0xff]
        %v4317 = vld [vmem:[%s5 + $0x100] sm:$0xff]
        %v4318 = vld [vmem:[%s5 + $0x108] sm:$0xff]
        %v4319 = vld [vmem:[%s5 + $0x110] sm:$0xff]
        %v4320 = vld [vmem:[%s5 + $0x118] sm:$0xff]
        %v4321 = vld [vmem:[%s5 + $0x120] sm:$0xff]
        %v4322 = vld [vmem:[%s5 + $0x128] sm:$0xff]
        %v4323 = vld [vmem:[%s5 + $0x130] sm:$0xff]
        %v4324 = vld [vmem:[%s5 + $0x138] sm:$0xff]
        %v4325 = vld [vmem:[%s5 + $0x140] sm:$0xff]
        %v4326 = vld [vmem:[%s5 + $0x148] sm:$0xff]
        %v4327 = vld [vmem:[%s5 + $0x150] sm:$0xff]
        %v4328 = vld [vmem:[%s5 + $0x158] sm:$0xff]
        %v4329 = vld [vmem:[%s5 + $0x160] sm:$0xff]
        %v4330 = vld [vmem:[%s5 + $0x168] sm:$0xff]
        %v4331 = vld [vmem:[%s5 + $0x170] sm:$0xff]
        %v4332 = vld [vmem:[%s5 + $0x178] sm:$0xff]
        %v4333 = vld [vmem:[%s5 + $0x180] sm:$0xff]
        %v4334 = vld [vmem:[%s5 + $0x188] sm:$0xff]
        %v4335 = vld [vmem:[%s5 + $0x190] sm:$0xff]
        %v4336 = vld [vmem:[%s5 + $0x198] sm:$0xff]
        %v4337 = vld [vmem:[%s5 + $0x1a0] sm:$0xff]
        %v4338 = vld [vmem:[%s5 + $0x1a8] sm:$0xff]
        %v4339 = vld [vmem:[%s5 + $0x1b0] sm:$0xff]
        %v4340 = vld [vmem:[%s5 + $0x1b8] sm:$0xff]
        %v4341 = vld [vmem:[%s5 + $0x1c0] sm:$0xff]
        %v4342 = vld [vmem:[%s5 + $0x1c8] sm:$0xff]
        %v4343 = vld [vmem:[%s5 + $0x1d0] sm:$0xff]
        %v4344 = vld [vmem:[%s5 + $0x1d8] sm:$0xff]
        %v4345 = vld [vmem:[%s5 + $0x1e0] sm:$0xff]
        %v4346 = vld [vmem:[%s5 + $0x1e8] sm:$0xff]
        %v4347 = vld [vmem:[%s5 + $0x1f0] sm:$0xff]
        %v4348 = vld [vmem:[%s5 + $0x1f8] sm:$0xff]
        %v4349 = vld [vmem:[%s249] sm:$0xff]
        %v4350 = vld [vmem:[%s249 + $0x8] sm:$0xff]
        %v4351 = vld [vmem:[%s249 + $0x10] sm:$0xff]
        %v4352 = vld [vmem:[%s249 + $0x18] sm:$0xff]
        %v4353 = vld [vmem:[%s249 + $0x20] sm:$0xff]
        %v4354 = vld [vmem:[%s249 + $0x28] sm:$0xff]
        %v4355 = vld [vmem:[%s249 + $0x30] sm:$0xff]
        %v4356 = vld [vmem:[%s249 + $0x38] sm:$0xff]
        %v4357 = vld [vmem:[%s249 + $0x40] sm:$0xff]
        %v4358 = vld [vmem:[%s249 + $0x48] sm:$0xff]
        %v4359 = vld [vmem:[%s249 + $0x50] sm:$0xff]
        %v4360 = vld [vmem:[%s249 + $0x58] sm:$0xff]
        %v4361 = vld [vmem:[%s249 + $0x60] sm:$0xff]
        %v4362 = vld [vmem:[%s249 + $0x68] sm:$0xff]
        %v4363 = vld [vmem:[%s249 + $0x70] sm:$0xff]
        %v4364 = vld [vmem:[%s249 + $0x78] sm:$0xff]
        %4365 = vxpose.xlu0.b32.start [1/16] %v4253, 128
        %4366 = vxpose.xlu0.b32.cont [2/16] %v4254, 128
        %4367 = vxpose.xlu0.b32.cont [3/16] %v4255, 128
        %4368 = vxpose.xlu0.b32.cont [4/16] %v4256, 128
        %4369 = vxpose.xlu0.b32.cont [5/16] %v4257, 128
        %4370 = vxpose.xlu0.b32.cont [6/16] %v4258, 128
        %4371 = vxpose.xlu0.b32.cont [7/16] %v4259, 128
        %4372 = vxpose.xlu0.b32.cont [8/16] %v4260, 128
        %4373 = vxpose.xlu0.b32.cont [9/16] %v4261, 128
        %4374 = vxpose.xlu0.b32.cont [10/16] %v4262, 128
        %4375 = vxpose.xlu0.b32.cont [11/16] %v4263, 128
        %4376 = vxpose.xlu0.b32.cont [12/16] %v4264, 128
        %4377 = vxpose.xlu0.b32.cont [13/16] %v4265, 128
        %4378 = vxpose.xlu0.b32.cont [14/16] %v4266, 128
        %4379 = vxpose.xlu0.b32.cont [15/16] %v4267, 128
        %4380 = vxpose.xlu0.b32.end [16/16] %v4268, 128
        %v4381 = vpop.trf.xlu0
        %v4382 = vpop.trf.xlu0
        %v4383 = vpop.trf.xlu0
        %v4384 = vpop.trf.xlu0
        %v4385 = vpop.trf.xlu0
        %v4386 = vpop.trf.xlu0
        %v4387 = vpop.trf.xlu0
        %v4388 = vpop.trf.xlu0
        %v4389 = vpop.trf.xlu0
        %v4390 = vpop.trf.xlu0
        %v4391 = vpop.trf.xlu0
        %v4392 = vpop.trf.xlu0
        %v4393 = vpop.trf.xlu0
        %v4394 = vpop.trf.xlu0
        %v4395 = vpop.trf.xlu0
        %v4396 = vpop.trf.xlu0
        %4397 = vxpose.xlu0.b32.start [1/16] %v4269, 128
        %4398 = vxpose.xlu0.b32.cont [2/16] %v4270, 128
        %4399 = vxpose.xlu0.b32.cont [3/16] %v4271, 128
        %4400 = vxpose.xlu0.b32.cont [4/16] %v4272, 128
        %4401 = vxpose.xlu0.b32.cont [5/16] %v4273, 128
        %4402 = vxpose.xlu0.b32.cont [6/16] %v4274, 128
        %4403 = vxpose.xlu0.b32.cont [7/16] %v4275, 128
        %4404 = vxpose.xlu0.b32.cont [8/16] %v4276, 128
        %4405 = vxpose.xlu0.b32.cont [9/16] %v4277, 128
        %4406 = vxpose.xlu0.b32.cont [10/16] %v4278, 128
        %4407 = vxpose.xlu0.b32.cont [11/16] %v4279, 128
        %4408 = vxpose.xlu0.b32.cont [12/16] %v4280, 128
        %4409 = vxpose.xlu0.b32.cont [13/16] %v4281, 128
        %4410 = vxpose.xlu0.b32.cont [14/16] %v4282, 128
        %4411 = vxpose.xlu0.b32.cont [15/16] %v4283, 128
        %4412 = vxpose.xlu0.b32.end [16/16] %v4284, 128
        %v4413 = vpop.trf.xlu0
        %v4414 = vpop.trf.xlu0
        %v4415 = vpop.trf.xlu0
        %v4416 = vpop.trf.xlu0
        %v4417 = vpop.trf.xlu0
        %v4418 = vpop.trf.xlu0
        %v4419 = vpop.trf.xlu0
        %v4420 = vpop.trf.xlu0
        %v4421 = vpop.trf.xlu0
        %v4422 = vpop.trf.xlu0
        %v4423 = vpop.trf.xlu0
        %v4424 = vpop.trf.xlu0
        %v4425 = vpop.trf.xlu0
        %v4426 = vpop.trf.xlu0
        %v4427 = vpop.trf.xlu0
        %v4428 = vpop.trf.xlu0
        %4429 = vmatprep.subr.mxu0 %v4286
        %4430 = vmatpush1.msra.mxu0 %v4285
        %4431 = vmatprep.subr.mxu0 %v4288
        %4432 = vmatpush1.msra.mxu0 %v4287
        %4433 = vmatprep.subr.mxu0 %v4290
        %4434 = vmatpush1.msra.mxu0 %v4289
        %4435 = vmatprep.subr.mxu0 %v4292
        %4436 = vmatpush1.msra.mxu0 %v4291
        %4437 = vmatprep.subr.mxu0 %v4294
        %4438 = vmatpush1.msra.mxu0 %v4293
        %4439 = vmatprep.subr.mxu0 %v4296
        %4440 = vmatpush1.msra.mxu0 %v4295
        %4441 = vmatprep.subr.mxu0 %v4298
        %4442 = vmatpush1.msra.mxu0 %v4297
        %4443 = vmatprep.subr.mxu0 %v4300
        %4444 = vmatpush1.msra.mxu0 %v4299
        %4445 = vmatprep.subr.mxu0 %v4302
        %4446 = vmatpush1.msra.mxu0 %v4301
        %4447 = vmatprep.subr.mxu0 %v4304
        %4448 = vmatpush1.msra.mxu0 %v4303
        %4449 = vmatprep.subr.mxu0 %v4306
        %4450 = vmatpush1.msra.mxu0 %v4305
        %4451 = vmatprep.subr.mxu0 %v4308
        %4452 = vmatpush1.msra.mxu0 %v4307
        %4453 = vmatprep.subr.mxu0 %v4310
        %4454 = vmatpush1.msra.mxu0 %v4309
        %4455 = vmatprep.subr.mxu0 %v4312
        %4456 = vmatpush1.msra.mxu0 %v4311
        %4457 = vmatprep.subr.mxu0 %v4314
        %4458 = vmatpush1.msra.mxu0 %v4313
        %4459 = vmatprep.subr.mxu0 %v4316
        %4460 = vmatpush1.msra.mxu0 %v4315
        %4461 = vmatprep.subr.mxu0 %v4318
        %4462 = vmatpush1.msra.mxu0 %v4317
        %4463 = vmatprep.subr.mxu0 %v4320
        %4464 = vmatpush1.msra.mxu0 %v4319
        %4465 = vmatprep.subr.mxu0 %v4322
        %4466 = vmatpush1.msra.mxu0 %v4321
        %4467 = vmatprep.subr.mxu0 %v4324
        %4468 = vmatpush1.msra.mxu0 %v4323
        %4469 = vmatprep.subr.mxu0 %v4326
        %4470 = vmatpush1.msra.mxu0 %v4325
        %4471 = vmatprep.subr.mxu0 %v4328
        %4472 = vmatpush1.msra.mxu0 %v4327
        %4473 = vmatprep.subr.mxu0 %v4330
        %4474 = vmatpush1.msra.mxu0 %v4329
        %4475 = vmatprep.subr.mxu0 %v4332
        %4476 = vmatpush1.msra.mxu0 %v4331
        %4477 = vmatprep.subr.mxu0 %v4334
        %4478 = vmatpush1.msra.mxu0 %v4333
        %4479 = vmatprep.subr.mxu0 %v4336
        %4480 = vmatpush1.msra.mxu0 %v4335
        %4481 = vmatprep.subr.mxu0 %v4338
        %4482 = vmatpush1.msra.mxu0 %v4337
        %4483 = vmatprep.subr.mxu0 %v4340
        %4484 = vmatpush1.msra.mxu0 %v4339
        %4485 = vmatprep.subr.mxu0 %v4342
        %4486 = vmatpush1.msra.mxu0 %v4341
        %4487 = vmatprep.subr.mxu0 %v4344
        %4488 = vmatpush1.msra.mxu0 %v4343
        %4489 = vmatprep.subr.mxu0 %v4346
        %4490 = vmatpush1.msra.mxu0 %v4345
        %4491 = vmatprep.subr.mxu0 %v4348
        %4492 = vmatpush1.msra.mxu0 %v4347
        %4493 = vmatprep.mubr.f32.mxu0 %v4413
        %4494 = vmatmul.mubr.f32.gmra.mrb[0].mxu0 %v4381
        %v4495 = vpop.f32.mrb[0].mxu0
        %v4496 = vadd.f32 %v4349, %v4495
        %v4497 = vpop.f32.mrb[0].mxu0
        %v4498 = vadd.f32 %v4350, %v4497
        %4499 = vmatprep.mubr.f32.mxu0 %v4414
        %4500 = vmatmul.mubr.f32.gmra.mrb[0].mxu0 %v4382
        %v4501 = vpop.f32.mrb[0].mxu0
        %v4502 = vadd.f32 %v4351, %v4501
        %v4503 = vpop.f32.mrb[0].mxu0
        %v4504 = vadd.f32 %v4352, %v4503
        %4505 = vmatprep.mubr.f32.mxu0 %v4415
        %4506 = vmatmul.mubr.f32.gmra.mrb[0].mxu0 %v4383
        %v4507 = vpop.f32.mrb[0].mxu0
        %v4508 = vadd.f32 %v4353, %v4507
        %v4509 = vpop.f32.mrb[0].mxu0
        %v4510 = vadd.f32 %v4354, %v4509
        %4511 = vmatprep.mubr.f32.mxu0 %v4416
        %4512 = vmatmul.mubr.f32.gmra.mrb[0].mxu0 %v4384
        %v4513 = vpop.f32.mrb[0].mxu0
        %v4514 = vadd.f32 %v4355, %v4513
        %v4515 = vpop.f32.mrb[0].mxu0
        %v4516 = vadd.f32 %v4356, %v4515
        %4517 = vmatprep.mubr.f32.mxu0 %v4417
        %4518 = vmatmul.mubr.f32.gmra.mrb[0].mxu0 %v4385
        %v4519 = vpop.f32.mrb[0].mxu0
        %v4520 = vadd.f32 %v4357, %v4519
        %v4521 = vpop.f32.mrb[0].mxu0
        %v4522 = vadd.f32 %v4358, %v4521
        %4523 = vmatprep.mubr.f32.mxu0 %v4418
        %4524 = vmatmul.mubr.f32.gmra.mrb[0].mxu0 %v4386
        %v4525 = vpop.f32.mrb[0].mxu0
        %v4526 = vadd.f32 %v4359, %v4525
        %v4527 = vpop.f32.mrb[0].mxu0
        %v4528 = vadd.f32 %v4360, %v4527
        %4529 = vmatprep.mubr.f32.mxu0 %v4419
        %4530 = vmatmul.mubr.f32.gmra.mrb[0].mxu0 %v4387
        %v4531 = vpop.f32.mrb[0].mxu0
        %v4532 = vadd.f32 %v4361, %v4531
        %v4533 = vpop.f32.mrb[0].mxu0
        %v4534 = vadd.f32 %v4362, %v4533
        %4535 = vmatprep.mubr.f32.mxu0 %v4420
        %4536 = vmatmul.mubr.f32.gmra.mrb[0].mxu0 %v4388
        %v4537 = vpop.f32.mrb[0].mxu0
        %v4538 = vadd.f32 %v4363, %v4537
        %v4539 = vpop.f32.mrb[0].mxu0
        %v4540 = vadd.f32 %v4364, %v4539
        %4541 = vdwg.mxu0
        %4542 = vst [vmem:[%s244] sm:$0xff] %v4496
        %4543 = vst [vmem:[%s244 + $0x8] sm:$0xff] %v4498
        %4544 = vst [vmem:[%s244 + $0x10] sm:$0xff] %v4502
        %4545 = vst [vmem:[%s244 + $0x18] sm:$0xff] %v4504
        %4546 = vst [vmem:[%s244 + $0x20] sm:$0xff] %v4508
        %4547 = vst [vmem:[%s244 + $0x28] sm:$0xff] %v4510
        %4548 = vst [vmem:[%s244 + $0x30] sm:$0xff] %v4514
        %4549 = vst [vmem:[%s244 + $0x38] sm:$0xff] %v4516
        %4550 = vst [vmem:[%s244 + $0x40] sm:$0xff] %v4520
        %4551 = vst [vmem:[%s244 + $0x48] sm:$0xff] %v4522
        %4552 = vst [vmem:[%s244 + $0x50] sm:$0xff] %v4526
        %4553 = vst [vmem:[%s244 + $0x58] sm:$0xff] %v4528
        %4554 = vst [vmem:[%s244 + $0x60] sm:$0xff] %v4532
        %4555 = vst [vmem:[%s244 + $0x68] sm:$0xff] %v4534
        %4556 = vst [vmem:[%s244 + $0x70] sm:$0xff] %v4538
        %4557 = vst [vmem:[%s244 + $0x78] sm:$0xff] %v4540
        %s4558 = sand.u32 %s159, 1
        %s4559 = scalar_lea.sflag [#allocation4], %s4558
        %s4560 = sand.u32 %s159, 1
        %s4561 = smul.addr %s4560, 128
        %s4562 = scalar_lea.vmem [#allocation3], %s4561
        // Predicated region
        $region45: #{tpu_custom_call.1} parent=43 // pred_check
          %p4563 = pneg %p169
        $region46: #{tpu_custom_call.1} parent=43 // pred_check_branch
          %4565 = sbr.rel (%p4563) target = $region48
        $region47: #{tpu_custom_call.1} parent=43 // pred_region
          %s4567 = ssub.s32 2048, 2048
          %4568 = vsyncadd %s4559, %s4567
          %s4569 = smul.addr %s20, 16
          %s4570 = smul.addr %s4569, 128
          %s4571 = scalar_lea.hbm %s6, %s4570
          %s4572 = sshll.u32 %s4562, 4
          %s4573 = int_to_ptr.vmem [resolvable:$true] %s4572
          %4578 = dma.vmem_to_hbm [thread:$0]  %s4573, 2048, %s4571, %s4559, 256, 256, 16
        $region48: #{tpu_custom_call.1} parent=43 // pred_fallthru
          _
      $region44: #{tpu_custom_call.1} parent=5 // pred_fallthru
        _
      %p4579 = scmp.le.s32.totalorder 2, %s15
      // Predicated region
      $region49: #{tpu_custom_call.1} parent=5 // pred_check
        %p4580 = pneg %p4579
      $region50: #{tpu_custom_call.1} parent=5 // pred_check_branch
        %4582 = sbr.rel (%p4580) target = $region52
      $region51: #{tpu_custom_call.1} parent=5 // pred_region
        %s4583 = ssub.s32 %s15, 2
        // Predicated region
        $region53: #{tpu_custom_call.1} parent=51 // pred_check
          %p4584 = pneg %p175
        $region54: #{tpu_custom_call.1} parent=51 // pred_check_branch
          %4586 = sbr.rel (%p4584) target = $region56
        $region55: #{tpu_custom_call.1} parent=51 // pred_region
          %s4587 = sand.u32 %s160, 1
          %s4588 = scalar_lea.sflag [#allocation4], %s4587
          %s4589 = sand.u32 %s160, 1
          %s4590 = smul.addr %s4589, 128
          %s4591 = scalar_lea.vmem [#allocation3], %s4590
          %4592 = dma.done %s4588, 2048
        $region56: #{tpu_custom_call.1} parent=51 // pred_fallthru
          _
      $region52: #{tpu_custom_call.1} parent=5 // pred_fallthru
        _
    $region6: #{tpu_custom_call.1} parent=1 // loop_footer
      %s19 = sadd.s32 1, %s15
    $region7: #{tpu_custom_call.1} parent=1 // loop_footer_branch
      %14 = sbr.rel target = $region3
    $region8: #{tpu_custom_call.1} parent=1 // loop_exit
      _
    %4593 = vsyncpa [#allocation4], 1
    %s4594 = scalar_lea.sflag [#allocation4], 1
    %4595 = vsyncpa %s4594, 1

</llo_original>
